<compile_context>
chip_gen: v5e
topology: v5e:2x2
jax: 0.10.0
libtpu: 0.0.40
codegen_flags: <defaults>
</compile_context>

<pallas_src>
import jax
import jax.numpy as jnp
from jax.experimental import pallas as pl
from jax.experimental.pallas import tpu as pltpu

_PREC = jax.lax.Precision.HIGHEST


def _round_up(x, m):
    return ((x + m - 1) // m) * m


# ---------------------------------------------------------------------------
# RelationAttention — Pallas TPU kernel (TB rows of N per grid step,
# relations folded onto lanes, block-diagonal weights).
# ---------------------------------------------------------------------------

def _relation_attention_kernel(z_ref, w1_ref, b1_ref, w2_ref, exp_ref, sum_ref,
                               out_ref):
    z = z_ref[...]                                               # (TB, M*D)

    # Projection D->H per relation (block-diag), one MXU matmul + tanh.
    h = jnp.tanh(
        jnp.dot(z, w1_ref[...], preferred_element_type=jnp.float32,
                precision=_PREC)
        + b1_ref[...])                                           # (TB, M*H)

    # Scoring H->1 per relation, block-diag (M*H, M) matmul -> (TB, M).
    s = jnp.dot(h, w2_ref[...], preferred_element_type=jnp.float32,
                precision=_PREC)                                 # (TB, M)

    # Softmax over the relation axis (lanes).  Exact divide (no approx recip).
    s = s - jnp.max(s, axis=-1, keepdims=True)
    e = jnp.exp(s)
    beta = e / jnp.sum(e, axis=-1, keepdims=True)                # (TB, M)

    # Weighted sum over relations, kept lane-dense:
    #   beta_wide[n, m*D+d] = beta[n, m]          (0/1 expansion matmul)
    #   out[n, d] = sum_m beta[n, m] * z[n, m*D+d] (stacked-identity matmul)
    beta_wide = jnp.dot(beta, exp_ref[...], preferred_element_type=jnp.float32,
                        precision=_PREC)                         # (TB, M*D)
    out = jnp.dot(beta_wide * z.astype(jnp.float32), sum_ref[...],
                  preferred_element_type=jnp.float32, precision=_PREC)
    out_ref[...] = out.astype(out_ref.dtype)                     # (TB, D)


def _relation_attention_call(z2, w1_blk, b1_t, w2_blk, expand, csum, tb, d_out):
    n, md = z2.shape
    mh = w1_blk.shape[1]
    m = w2_blk.shape[1]

    cost = pl.CostEstimate(
        flops=2 * n * (md * mh + mh * m + m * md + md * d_out),
        transcendentals=n * (mh + m),
        bytes_accessed=4 * (n * md + n * d_out
                            + md * mh + mh + mh * m + m * md + md * d_out),
    )

    return pl.pallas_call(
        _relation_attention_kernel,
        out_shape=jax.ShapeDtypeStruct((n, d_out), z2.dtype),
        grid_spec=pltpu.PrefetchScalarGridSpec(
            num_scalar_prefetch=0,
            grid=(n // tb,),
            in_specs=[
                pl.BlockSpec((tb, md), lambda i: (i, 0)),      # lane-dense z tile
                pl.BlockSpec((md, mh), lambda i: (0, 0)),      # block-diag W1
                pl.BlockSpec((1, mh), lambda i: (0, 0)),       # tiled b1
                pl.BlockSpec((mh, m), lambda i: (0, 0)),       # block-diag w2
                pl.BlockSpec((m, md), lambda i: (0, 0)),       # beta expansion
                pl.BlockSpec((md, d_out), lambda i: (0, 0)),   # chunk-sum reducer
            ],
            out_specs=pl.BlockSpec((tb, d_out), lambda i: (i, 0)),
        ),
        compiler_params=pltpu.CompilerParams(
            dimension_semantics=("parallel",),
        ),
        cost_estimate=cost,
    )(z2, w1_blk, b1_t, w2_blk, expand, csum)


def relation_attention(z2, w1, b1, w2, *, num_relations, block_rows=2048):
    """RelationAttention forward.

    z2: (N, M*D) relation-concatenated embeddings (relation m lives in columns
        [m*D, (m+1)*D)).  w1: (D, H); b1: (H,); w2: (H,).  Returns (N, D).
    """
    n, md = z2.shape
    m = num_relations
    d = md // m
    h = w1.shape[1]
    assert md == m * d

    wdt = w1.dtype
    eye_m = jnp.eye(m, dtype=wdt)
    w1_blk = jnp.kron(eye_m, w1)                                    # (M*D, M*H)
    b1_t = jnp.tile(b1.reshape(1, h), (1, m))                       # (1, M*H)
    w2_blk = jnp.kron(eye_m, w2.reshape(h, 1))                      # (M*H, M)
    expand = jnp.kron(eye_m, jnp.ones((1, d), wdt))                 # (M, M*D)
    csum = jnp.kron(jnp.ones((m, 1), wdt), jnp.eye(d, dtype=wdt))   # (M*D, D)

    # Row tile: large (amortize per-step overhead), multiple of 8, capped so
    # the grid keeps >= 2 steps when possible (v7x has 2 TCs sharing the
    # "parallel" grid axis).  VMEM footprint stays tiny with the 2D layout.
    half = _round_up(max(pl.cdiv(n, 2), 8), 8)
    tb = min(_round_up(max(block_rows, 8), 8), half)

    n_main = (n // tb) * tb
    pieces = []
    if n_main > 0:
        pieces.append(_relation_attention_call(
            z2[:n_main], w1_blk, b1_t, w2_blk, expand, csum, tb, d))
    rem = n - n_main
    if rem > 0:
        # Ragged tail: pad only the tail rows (zero rows -> equal relation
        # scores -> uniform softmax over zero embeddings -> zero output).
        tb_tail = _round_up(rem, 8)
        z_tail = z2[n_main:]
        if tb_tail != rem:
            z_tail = jnp.pad(z_tail, ((0, tb_tail - rem), (0, 0)))
        tail = _relation_attention_call(
            z_tail, w1_blk, b1_t, w2_blk, expand, csum, tb_tail, d)
        pieces.append(tail[:rem])
    return pieces[0] if len(pieces) == 1 else jnp.concatenate(pieces, axis=0)


def relation_attention_ref(z, w1, b1, w2):
    """Pure-JAX reference matching PyTorch RelationAttention.forward; z: (N, M, D)."""
    h = jnp.tanh(jnp.einsum("nmd,dh->nmh", z, w1, precision=_PREC) + b1)
    w = jnp.einsum("nmh,h->nm", h, w2, precision=_PREC)[..., None]  # (N, M, 1)
    beta = jax.nn.softmax(w, axis=1)
    return (beta * z).sum(axis=1)


# ---------------------------------------------------------------------------
# GCNCell + NHGCFLayer forward (Laplacian aggregation stays in XLA; the
# relation attention is the Pallas kernel above).
# TODO(synk): torch.sparse.mm has no clean Pallas equivalent here; the GCN
# Laplacian aggregation is realised as dense XLA matmuls outside the kernel.
# ---------------------------------------------------------------------------

def gcn_cell(p, L, self_loop, x):
    part1 = (L + self_loop) @ (x @ p["wt"] + p["bt"])
    part2 = L @ ((x * x) @ p["wi"] + p["bi"])
    return part1 + part2


def nhgcf_layer_forward(params, u2i_pack, u2e_pack, i2e_pack, u_feature, i_feature,
                        u2e_features=None, i2e_features=None, *, use_pallas=True):
    """Mirrors NHGCFLayer.forward; entity features of None take the
    features-only branch (the branch the original module exercises)."""
    u_num = u2i_pack[2][0]
    i_num = i_feature.shape[0]
    if u2e_features is None:
        u2e_features = [None] * len(u2e_pack)
    if i2e_features is None:
        i2e_features = [None] * len(i2e_pack)

    u_embeddings, i_embeddings = [], []
    u2e_embeddings, i2e_embeddings = [], []

    for (L, sL), u2e_feature, cell_p in zip(u2e_pack, u2e_features, params["u2e_cells"]):
        if u2e_feature is not None:
            temp = gcn_cell(cell_p, L, sL,
                            jnp.concatenate([u_feature, u2e_feature], axis=0))
            u2e_embeddings.append(temp[u_num:])
            u_embeddings.append(temp[:u_num])
        else:
            u2e_embeddings.append(None)
            u_embeddings.append(gcn_cell(cell_p, L, sL, u_feature))
    for (L, sL), i2e_feature, cell_p in zip(i2e_pack, i2e_features, params["i2e_cells"]):
        if i2e_feature is not None:
            temp = gcn_cell(cell_p, L, sL,
                            jnp.concatenate([i_feature, i2e_feature], axis=0))
            i2e_embeddings.append(temp[i_num:])
            i_embeddings.append(temp[:i_num])
        else:
            i2e_embeddings.append(None)
            i_embeddings.append(gcn_cell(cell_p, L, sL, i_feature))

    temp = gcn_cell(params["u2i_cell"], u2i_pack[0], u2i_pack[1],
                    jnp.concatenate([u_feature, i_feature], axis=0))
    i_embeddings.append(temp[u_num:])
    u_embeddings.append(temp[:u_num])

    ua, ia = params["u_attn"], params["i_attn"]
    if use_pallas:
        # Build z directly in the lane-dense (N, M*D) layout the kernel consumes.
        u_out = relation_attention(jnp.concatenate(u_embeddings, axis=1),
                                   ua["w1"], ua["b1"], ua["w2"],
                                   num_relations=len(u_embeddings))
        i_out = relation_attention(jnp.concatenate(i_embeddings, axis=1),
                                   ia["w1"], ia["b1"], ia["w2"],
                                   num_relations=len(i_embeddings))
    else:
        u_out = relation_attention_ref(jnp.stack(u_embeddings, axis=1),
                                       ua["w1"], ua["b1"], ua["w2"])
        i_out = relation_attention_ref(jnp.stack(i_embeddings, axis=1),
                                       ia["w1"], ia["b1"], ia["w2"])
    return u_out, i_out, u2e_embeddings, i2e_embeddings


if __name__ == "__main__":
    key = jax.random.PRNGKey(0)

    inF = outF = 32            # GCN feature dim == attention in_size
    hidden = 32                # RelationAttention hidden_size
    n_u2e, n_i2e = 2, 2        # relation counts -> M = 3 per side
    u_num, i_num = 10, 6       # small user / item counts

    keys = iter(jax.random.split(key, 64))

    def normal(shape, scale=1.0):
        return scale * jax.random.normal(next(keys), shape, dtype=jnp.float32)

    def gcn_params():
        s = 1.0 / float(inF) ** 0.5
        return {"wt": normal((inF, outF), s), "bt": normal((1, outF), 0.01),
                "wi": normal((inF, outF), s), "bi": normal((1, outF), 0.01)}

    def attn_params():
        return {"w1": normal((inF, hidden), 1.0 / float(inF) ** 0.5),
                "b1": normal((hidden,), 0.01),
                "w2": normal((hidden,), 1.0 / float(hidden) ** 0.5)}

    params = {
        "u2i_cell": gcn_params(),
        "u2e_cells": [gcn_params() for _ in range(n_u2e)],
        "i2e_cells": [gcn_params() for _ in range(n_i2e)],
        "u_attn": attn_params(),
        "i_attn": attn_params(),
    }

    u_feature = normal((u_num, inF))
    i_feature = normal((i_num, inF))

    def dense_laplacian(n):
        a = (jax.random.uniform(next(keys), (n, n)) < 0.3).astype(jnp.float32)
        deg = jnp.maximum(a.sum(axis=1, keepdims=True), 1.0)
        return a / deg

    u2e_pack = [(dense_laplacian(u_num), jnp.eye(u_num, dtype=jnp.float32))
                for _ in range(n_u2e)]
    i2e_pack = [(dense_laplacian(i_num), jnp.eye(i_num, dtype=jnp.float32))
                for _ in range(n_i2e)]
    n_ui = u_num + i_num
    u2i_pack = (dense_laplacian(n_ui), jnp.eye(n_ui, dtype=jnp.float32), (u_num,))

    # 1) Direct RelationAttention kernel check at a size that exercises both
    #    the multi-step main call and the padded ragged-tail call.
    N_chk, M_chk = 300, 3
    z3 = normal((N_chk, M_chk, inF))
    ap = params["u_attn"]
    out = jax.block_until_ready(
        relation_attention(z3.reshape(N_chk, M_chk * inF),
                           ap["w1"], ap["b1"], ap["w2"],
                           num_relations=M_chk, block_rows=128))
    ref = relation_attention_ref(z3, ap["w1"], ap["b1"], ap["w2"])
    assert out.shape == (N_chk, inF)
    assert jnp.allclose(out, ref, atol=5e-4, rtol=5e-4), "relation attention mismatch"

    # 2) Full NHGCFLayer forward with the Pallas attention vs pure-JAX reference.
    u_out, i_out, _, _ = nhgcf_layer_forward(
        params, u2i_pack, u2e_pack, i2e_pack, u_feature, i_feature, use_pallas=True)
    u_out = jax.block_until_ready(u_out)
    i_out = jax.block_until_ready(i_out)
    u_ref, i_ref, _, _ = nhgcf_layer_forward(
        params, u2i_pack, u2e_pack, i2e_pack, u_feature, i_feature, use_pallas=False)
    assert u_out.shape == (u_num, outF) and i_out.shape == (i_num, outF)
    assert jnp.allclose(u_out, u_ref, atol=5e-4, rtol=5e-4), "u attention mismatch"
    assert jnp.allclose(i_out, i_ref, atol=5e-4, rtol=5e-4), "i attention mismatch"

    print("KERNEL_OK")
</pallas_src>

<mosaic_0001>
module attributes {stable_mosaic.version = 11 : i64} {
  func.func @_relation_attention_kernel(%arg0: i32, %arg1: memref<128x96xf32, #tpu.memory_space<vmem>>, %arg2: memref<96x96xf32, #tpu.memory_space<vmem>>, %arg3: memref<1x96xf32, #tpu.memory_space<vmem>>, %arg4: memref<96x3xf32, #tpu.memory_space<vmem>>, %arg5: memref<3x96xf32, #tpu.memory_space<vmem>>, %arg6: memref<96x32xf32, #tpu.memory_space<vmem>>, %arg7: memref<128x32xf32, #tpu.memory_space<vmem>>) attributes {dimension_semantics = [#tpu.dimension_semantics<parallel>], iteration_bounds = array<i64: 2>, scalar_prefetch = 0 : i64, scratch_operands = 0 : i64, tpu.core_type = #tpu.core_type<tc>, window_params = [{transform_indices = @transform_0, window_bounds = array<i64: 128, 96>}, {pipeline_mode = #tpu.pipeline_mode<synchronous>, transform_indices = @transform_1, window_bounds = array<i64: 96, 96>}, {pipeline_mode = #tpu.pipeline_mode<synchronous>, transform_indices = @transform_2, window_bounds = array<i64: 1, 96>}, {pipeline_mode = #tpu.pipeline_mode<synchronous>, transform_indices = @transform_3, window_bounds = array<i64: 96, 3>}, {pipeline_mode = #tpu.pipeline_mode<synchronous>, transform_indices = @transform_4, window_bounds = array<i64: 3, 96>}, {pipeline_mode = #tpu.pipeline_mode<synchronous>, transform_indices = @transform_5, window_bounds = array<i64: 96, 32>}, {transform_indices = @transform_6, window_bounds = array<i64: 128, 32>}]} {
    %c0 = arith.constant 0 : index
    %c0_0 = arith.constant 0 : index
    %0 = vector.load %arg1[%c0, %c0_0] : memref<128x96xf32, #tpu.memory_space<vmem>>, vector<128x96xf32>
    %c0_1 = arith.constant 0 : index
    %c0_2 = arith.constant 0 : index
    %1 = vector.load %arg2[%c0_1, %c0_2] : memref<96x96xf32, #tpu.memory_space<vmem>>, vector<96x96xf32>
    %cst = arith.constant dense<0.000000e+00> : vector<128x96xf32>
    %2 = tpu.matmul %0, %1, %cst {dimension_numbers = #tpu.dot_dimension_numbers<[1], [0], [0], [1], [0, 0, 1, 1], [], []>, precision = #tpu.contract_precision<fp32>} : vector<128x96xf32>, vector<96x96xf32>, vector<128x96xf32> -> vector<128x96xf32>
    %c0_3 = arith.constant 0 : index
    %c0_4 = arith.constant 0 : index
    %3 = vector.load %arg3[%c0_3, %c0_4] : memref<1x96xf32, #tpu.memory_space<vmem>>, vector<1x96xf32>
    %4 = vector.broadcast %3 : vector<1x96xf32> to vector<128x96xf32>
    %5 = arith.addf %2, %4 : vector<128x96xf32>
    %6 = math.tanh %5 : vector<128x96xf32>
    %c0_5 = arith.constant 0 : index
    %c0_6 = arith.constant 0 : index
    %7 = vector.load %arg4[%c0_5, %c0_6] : memref<96x3xf32, #tpu.memory_space<vmem>>, vector<96x3xf32>
    %cst_7 = arith.constant dense<0.000000e+00> : vector<128x3xf32>
    %8 = tpu.matmul %6, %7, %cst_7 {dimension_numbers = #tpu.dot_dimension_numbers<[1], [0], [0], [1], [0, 0, 1, 1], [], []>, precision = #tpu.contract_precision<fp32>} : vector<128x96xf32>, vector<96x3xf32>, vector<128x3xf32> -> vector<128x3xf32>
    %cst_8 = arith.constant dense<0xFF800000> : vector<128xf32>
    %9 = vector.multi_reduction <maximumf>, %8, %cst_8 [1] : vector<128x3xf32> to vector<128xf32>
    %10 = vector.shape_cast %9 : vector<128xf32> to vector<128x1xf32>
    %11 = vector.broadcast %10 : vector<128x1xf32> to vector<128x3xf32>
    %12 = arith.subf %8, %11 : vector<128x3xf32>
    %13 = math.exp %12 : vector<128x3xf32>
    %cst_9 = arith.constant dense<0.000000e+00> : vector<128xf32>
    %14 = vector.multi_reduction <add>, %13, %cst_9 [1] : vector<128x3xf32> to vector<128xf32>
    %15 = vector.shape_cast %14 : vector<128xf32> to vector<128x1xf32>
    %16 = vector.broadcast %15 : vector<128x1xf32> to vector<128x3xf32>
    %17 = arith.divf %13, %16 : vector<128x3xf32>
    %c0_10 = arith.constant 0 : index
    %c0_11 = arith.constant 0 : index
    %18 = vector.load %arg5[%c0_10, %c0_11] : memref<3x96xf32, #tpu.memory_space<vmem>>, vector<3x96xf32>
    %cst_12 = arith.constant dense<0.000000e+00> : vector<128x96xf32>
    %19 = tpu.matmul %17, %18, %cst_12 {dimension_numbers = #tpu.dot_dimension_numbers<[1], [0], [0], [1], [0, 0, 1, 1], [], []>, precision = #tpu.contract_precision<fp32>} : vector<128x3xf32>, vector<3x96xf32>, vector<128x96xf32> -> vector<128x96xf32>
    %20 = arith.mulf %19, %0 : vector<128x96xf32>
    %c0_13 = arith.constant 0 : index
    %c0_14 = arith.constant 0 : index
    %21 = vector.load %arg6[%c0_13, %c0_14] : memref<96x32xf32, #tpu.memory_space<vmem>>, vector<96x32xf32>
    %cst_15 = arith.constant dense<0.000000e+00> : vector<128x32xf32>
    %22 = tpu.matmul %20, %21, %cst_15 {dimension_numbers = #tpu.dot_dimension_numbers<[1], [0], [0], [1], [0, 0, 1, 1], [], []>, precision = #tpu.contract_precision<fp32>} : vector<128x96xf32>, vector<96x32xf32>, vector<128x32xf32> -> vector<128x32xf32>
    %c0_16 = arith.constant 0 : index
    %c0_17 = arith.constant 0 : index
    %23 = vector.load %arg7[%c0_16, %c0_17] : memref<128x32xf32, #tpu.memory_space<vmem>>, vector<128x32xf32>
    tpu.vector_store %arg7[%c0_16, %c0_17], %22 {strides = array<i32>} : memref<128x32xf32, #tpu.memory_space<vmem>>, vector<128x32xf32>,
    return
  }
  func.func @transform_0(%arg0: i32) -> (i32, i32) {
    %c0_i32 = arith.constant 0 : i32
    %c0_i32_0 = arith.constant 0 : i32
    return %arg0, %c0_i32 : i32, i32
  }
  func.func @transform_1(%arg0: i32) -> (i32, i32) {
    %c0_i32 = arith.constant 0 : i32
    %c0_i32_0 = arith.constant 0 : i32
    %c0_i32_1 = arith.constant 0 : i32
    return %c0_i32, %c0_i32_0 : i32, i32
  }
  func.func @transform_2(%arg0: i32) -> (i32, i32) {
    %c0_i32 = arith.constant 0 : i32
    %c0_i32_0 = arith.constant 0 : i32
    %c0_i32_1 = arith.constant 0 : i32
    return %c0_i32, %c0_i32_0 : i32, i32
  }
  func.func @transform_3(%arg0: i32) -> (i32, i32) {
    %c0_i32 = arith.constant 0 : i32
    %c0_i32_0 = arith.constant 0 : i32
    %c0_i32_1 = arith.constant 0 : i32
    return %c0_i32, %c0_i32_0 : i32, i32
  }
  func.func @transform_4(%arg0: i32) -> (i32, i32) {
    %c0_i32 = arith.constant 0 : i32
    %c0_i32_0 = arith.constant 0 : i32
    %c0_i32_1 = arith.constant 0 : i32
    return %c0_i32, %c0_i32_0 : i32, i32
  }
  func.func @transform_5(%arg0: i32) -> (i32, i32) {
    %c0_i32 = arith.constant 0 : i32
    %c0_i32_0 = arith.constant 0 : i32
    %c0_i32_1 = arith.constant 0 : i32
    return %c0_i32, %c0_i32_0 : i32, i32
  }
  func.func @transform_6(%arg0: i32) -> (i32, i32) {
    %c0_i32 = arith.constant 0 : i32
    %c0_i32_0 = arith.constant 0 : i32
    return %arg0, %c0_i32 : i32, i32
  }
}

</mosaic_0001>

<llo_original>
// kernel: tpu_custom_call.1
$region0: #{tpu_custom_call.1}
  #allocation0 [shape = 'u32[]', space=smem, size = 0x4, offset = 0x4, fixed_abs, tag = 'smem constant byte address 0x4 - core index']
  #allocation1 [shape = 'u32[72,128]{1,0:T(1,128)}', space=vmem, size = 0x9000, scoped, tag = 'internal scratch']
  %s0 = inlined_call_operand.vmem [shape: f32[256,96], index: 0, kind: input, shape index: {}]
  %s1 = inlined_call_operand.vmem [shape: f32[96,96], index: 1, kind: input, shape index: {}]
  %s2 = inlined_call_operand.vmem [shape: f32[1,96], index: 2, kind: input, shape index: {}]
  %s3 = inlined_call_operand.vmem [shape: f32[96,3], index: 3, kind: input, shape index: {}]
  %s4 = inlined_call_operand.vmem [shape: f32[3,96], index: 4, kind: input, shape index: {}]
  %s5 = inlined_call_operand.vmem [shape: f32[96,32], index: 5, kind: input, shape index: {}]
  %s6 = inlined_call_operand.vmem [shape: f32[256,32], index: 6, kind: output, shape index: {}]
  %s7 = sld [smem:[#allocation0]]
  $region57: #{tpu_custom_call.1} parent=0
    _
  %s9 = ssub.s32 1, %s7
  %s10 = scalar_select 0, %s9, %s7
  loop: start=0, step=1, limit=4
  $region2: #{tpu_custom_call.1} parent=0 // loop_pre_header
    _
  $region3: #{tpu_custom_call.1} parent=0 // loop_header
    %s12 = sphi 0, %s16
    %p13 = scmp.ge.s32.totalorder %s12, 4
    %s22 = sphi 0, %s24
    %s25 = sphi 0, %s22
    %s26 = sphi 0, %s25
    %s42 = sphi 0, %s26
    %s46 = sphi 0, %s46
    %s48 = sphi 0, %s46
    %s49 = sphi 0, %s48
    %s63 = sphi 0, %s49
    %s67 = sphi 0, %s67
    %s69 = sphi 0, %s67
    %s70 = sphi 0, %s69
    %s84 = sphi 0, %s70
    %s88 = sphi 0, %s88
    %s90 = sphi 0, %s88
    %s91 = sphi 0, %s90
    %s105 = sphi 0, %s91
    %s109 = sphi 0, %s109
    %s111 = sphi 0, %s109
    %s112 = sphi 0, %s111
    %s126 = sphi 0, %s112
    %s130 = sphi 0, %s130
    %s132 = sphi 0, %s130
    %s133 = sphi 0, %s132
    %s147 = sphi 0, %s133
    %s153 = sphi 0, %s155
    %s156 = sphi 0, %s153
    %s157 = sphi 0, %s156
    %s173 = sphi 0, %s157
  $region4: #{tpu_custom_call.1} parent=0 // loop_header_branch
    %15 = sbr.rel (%p13) target = $region8
  $region5: #{tpu_custom_call.1} parent=0 // loop_body
    %s17 = ssub.s32 %s12, 1
    %s18 = ssub.s32 %s12, 2
    %s19 = sadd.s32 %s12, 1
    %s20 = ssub.s32 %s12, %s19
    %p21 = scmp.eq.s32.totalorder %s20, 0
    %s23 = sadd.s32 %s22, 1
    %s24 = scalar_select %p21, %s22, %s23
    %p27 = pneg %p21
    %p28 = scmp.eq.s32.totalorder %s12, 1
    %p29 = por %p27, %p28
    %p30 = scmp.ne.s32.totalorder %s22, %s25
    %p31 = scmp.eq.s32.totalorder %s12, 0
    %p32 = por %p30, %p31
    %p33 = scmp.ne.s32.totalorder %s22, %s25
    %p34 = scmp.eq.s32.totalorder %s17, 1
    %p35 = por %p33, %p34
    %p36 = scmp.ne.s32.totalorder %s25, %s26
    %p37 = scmp.eq.s32.totalorder %s17, 0
    %p38 = por %p36, %p37
    %p39 = scmp.ne.s32.totalorder %s25, %s26
    %p40 = scmp.eq.s32.totalorder %s18, 1
    %p41 = por %p39, %p40
    %p43 = scmp.ne.s32.totalorder %s26, %s42
    %p44 = scmp.eq.s32.totalorder %s18, 0
    %p45 = por %p43, %p44
    %s47 = sadd.s32 %s46, 1
    %p50 = scmp.eq.s32.totalorder %s12, 1
    %p51 = scmp.ne.s32.totalorder %s46, %s48
    %p52 = scmp.eq.s32.totalorder %s12, 0
    %p53 = por %p51, %p52
    %p54 = scmp.ne.s32.totalorder %s46, %s48
    %p55 = scmp.eq.s32.totalorder %s17, 1
    %p56 = por %p54, %p55
    %p57 = scmp.ne.s32.totalorder %s48, %s49
    %p58 = scmp.eq.s32.totalorder %s17, 0
    %p59 = por %p57, %p58
    %p60 = scmp.ne.s32.totalorder %s48, %s49
    %p61 = scmp.eq.s32.totalorder %s18, 1
    %p62 = por %p60, %p61
    %p64 = scmp.ne.s32.totalorder %s49, %s63
    %p65 = scmp.eq.s32.totalorder %s18, 0
    %p66 = por %p64, %p65
    %s68 = sadd.s32 %s67, 1
    %p71 = scmp.eq.s32.totalorder %s12, 1
    %p72 = scmp.ne.s32.totalorder %s67, %s69
    %p73 = scmp.eq.s32.totalorder %s12, 0
    %p74 = por %p72, %p73
    %p75 = scmp.ne.s32.totalorder %s67, %s69
    %p76 = scmp.eq.s32.totalorder %s17, 1
    %p77 = por %p75, %p76
    %p78 = scmp.ne.s32.totalorder %s69, %s70
    %p79 = scmp.eq.s32.totalorder %s17, 0
    %p80 = por %p78, %p79
    %p81 = scmp.ne.s32.totalorder %s69, %s70
    %p82 = scmp.eq.s32.totalorder %s18, 1
    %p83 = por %p81, %p82
    %p85 = scmp.ne.s32.totalorder %s70, %s84
    %p86 = scmp.eq.s32.totalorder %s18, 0
    %p87 = por %p85, %p86
    %s89 = sadd.s32 %s88, 1
    %p92 = scmp.eq.s32.totalorder %s12, 1
    %p93 = scmp.ne.s32.totalorder %s88, %s90
    %p94 = scmp.eq.s32.totalorder %s12, 0
    %p95 = por %p93, %p94
    %p96 = scmp.ne.s32.totalorder %s88, %s90
    %p97 = scmp.eq.s32.totalorder %s17, 1
    %p98 = por %p96, %p97
    %p99 = scmp.ne.s32.totalorder %s90, %s91
    %p100 = scmp.eq.s32.totalorder %s17, 0
    %p101 = por %p99, %p100
    %p102 = scmp.ne.s32.totalorder %s90, %s91
    %p103 = scmp.eq.s32.totalorder %s18, 1
    %p104 = por %p102, %p103
    %p106 = scmp.ne.s32.totalorder %s91, %s105
    %p107 = scmp.eq.s32.totalorder %s18, 0
    %p108 = por %p106, %p107
    %s110 = sadd.s32 %s109, 1
    %p113 = scmp.eq.s32.totalorder %s12, 1
    %p114 = scmp.ne.s32.totalorder %s109, %s111
    %p115 = scmp.eq.s32.totalorder %s12, 0
    %p116 = por %p114, %p115
    %p117 = scmp.ne.s32.totalorder %s109, %s111
    %p118 = scmp.eq.s32.totalorder %s17, 1
    %p119 = por %p117, %p118
    %p120 = scmp.ne.s32.totalorder %s111, %s112
    %p121 = scmp.eq.s32.totalorder %s17, 0
    %p122 = por %p120, %p121
    %p123 = scmp.ne.s32.totalorder %s111, %s112
    %p124 = scmp.eq.s32.totalorder %s18, 1
    %p125 = por %p123, %p124
    %p127 = scmp.ne.s32.totalorder %s112, %s126
    %p128 = scmp.eq.s32.totalorder %s18, 0
    %p129 = por %p127, %p128
    %s131 = sadd.s32 %s130, 1
    %p134 = scmp.eq.s32.totalorder %s12, 1
    %p135 = scmp.ne.s32.totalorder %s130, %s132
    %p136 = scmp.eq.s32.totalorder %s12, 0
    %p137 = por %p135, %p136
    %p138 = scmp.ne.s32.totalorder %s130, %s132
    %p139 = scmp.eq.s32.totalorder %s17, 1
    %p140 = por %p138, %p139
    %p141 = scmp.ne.s32.totalorder %s132, %s133
    %p142 = scmp.eq.s32.totalorder %s17, 0
    %p143 = por %p141, %p142
    %p144 = scmp.ne.s32.totalorder %s132, %s133
    %p145 = scmp.eq.s32.totalorder %s18, 1
    %p146 = por %p144, %p145
    %p148 = scmp.ne.s32.totalorder %s133, %s147
    %p149 = scmp.eq.s32.totalorder %s18, 0
    %p150 = por %p148, %p149
    %s151 = ssub.s32 %s12, %s19
    %p152 = scmp.eq.s32.totalorder %s151, 0
    %s154 = sadd.s32 %s153, 1
    %s155 = scalar_select %p152, %s153, %s154
    %p158 = pneg %p152
    %p159 = scmp.eq.s32.totalorder %s12, 1
    %p160 = por %p158, %p159
    %p161 = scmp.ne.s32.totalorder %s153, %s156
    %p162 = scmp.eq.s32.totalorder %s12, 0
    %p163 = por %p161, %p162
    %p164 = scmp.ne.s32.totalorder %s153, %s156
    %p165 = scmp.eq.s32.totalorder %s17, 1
    %p166 = por %p164, %p165
    %p167 = scmp.ne.s32.totalorder %s156, %s157
    %p168 = scmp.eq.s32.totalorder %s17, 0
    %p169 = por %p167, %p168
    %p170 = scmp.ne.s32.totalorder %s156, %s157
    %p171 = scmp.eq.s32.totalorder %s18, 1
    %p172 = por %p170, %p171
    %p174 = scmp.ne.s32.totalorder %s157, %s173
    %p175 = scmp.eq.s32.totalorder %s18, 0
    %p176 = por %p174, %p175
    %p177 = scmp.le.s32.totalorder 1, %s12
    %p178 = scmp.lt.s32.totalorder %s12, 3
    %p179 = pnand %p177, %p178
    %p180 = pneg %p179
    // Predicated region
    $region9: #{tpu_custom_call.1} parent=5 // pred_check
      _
    $region10: #{tpu_custom_call.1} parent=5 // pred_check_branch
      %182 = sbr.rel (%p179) target = $region12
    $region11: #{tpu_custom_call.1} parent=5 // pred_region
      %s183 = ssub.s32 %s12, 1
      // Predicated region
      $region13: #{tpu_custom_call.1} parent=11 // pred_check
        %p184 = pneg %p59
      $region14: #{tpu_custom_call.1} parent=11 // pred_check_branch
        %186 = sbr.rel (%p184) target = $region16
      $region15: #{tpu_custom_call.1} parent=11 // pred_region
        _
      $region16: #{tpu_custom_call.1} parent=11 // pred_fallthru
        _
      // Predicated region
      $region17: #{tpu_custom_call.1} parent=11 // pred_check
        %p187 = pneg %p80
      $region18: #{tpu_custom_call.1} parent=11 // pred_check_branch
        %189 = sbr.rel (%p187) target = $region20
      $region19: #{tpu_custom_call.1} parent=11 // pred_region
        _
      $region20: #{tpu_custom_call.1} parent=11 // pred_fallthru
        _
      // Predicated region
      $region21: #{tpu_custom_call.1} parent=11 // pred_check
        %p190 = pneg %p101
      $region22: #{tpu_custom_call.1} parent=11 // pred_check_branch
        %192 = sbr.rel (%p190) target = $region24
      $region23: #{tpu_custom_call.1} parent=11 // pred_region
        _
      $region24: #{tpu_custom_call.1} parent=11 // pred_fallthru
        _
      // Predicated region
      $region25: #{tpu_custom_call.1} parent=11 // pred_check
        %p193 = pneg %p122
      $region26: #{tpu_custom_call.1} parent=11 // pred_check_branch
        %195 = sbr.rel (%p193) target = $region28
      $region27: #{tpu_custom_call.1} parent=11 // pred_region
        _
      $region28: #{tpu_custom_call.1} parent=11 // pred_fallthru
        _
      // Predicated region
      $region29: #{tpu_custom_call.1} parent=11 // pred_check
        %p196 = pneg %p143
      $region30: #{tpu_custom_call.1} parent=11 // pred_check_branch
        %198 = sbr.rel (%p196) target = $region32
      $region31: #{tpu_custom_call.1} parent=11 // pred_region
        _
      $region32: #{tpu_custom_call.1} parent=11 // pred_fallthru
        _
    $region12: #{tpu_custom_call.1} parent=5 // pred_fallthru
      _
    %p199 = scmp.lt.s32.totalorder %s12, 2
    // Predicated region
    $region33: #{tpu_custom_call.1} parent=5 // pred_check
      %p200 = pneg %p199
    $region34: #{tpu_custom_call.1} parent=5 // pred_check_branch
      %202 = sbr.rel (%p200) target = $region36
    $region35: #{tpu_custom_call.1} parent=5 // pred_region
      // Predicated region
      $region37: #{tpu_custom_call.1} parent=35 // pred_check
        %p203 = pneg %p32
      $region38: #{tpu_custom_call.1} parent=35 // pred_check_branch
        %205 = sbr.rel (%p203) target = $region40
      $region39: #{tpu_custom_call.1} parent=35 // pred_region
        %s206 = smul.u32 16, %s12
        %p207 = scmp.lt.s32.totalorder %s206, 31
        %s208 = scalar_select %p207, %s206, 31
        %s209 = smul.addr %s208, 8
        %s210 = scalar_lea.vmem %s0, %s209
        %s211 = smul.u32 16, %s12
      $region40: #{tpu_custom_call.1} parent=35 // pred_fallthru
        _
    $region36: #{tpu_custom_call.1} parent=5 // pred_fallthru
      _
    %p212 = scmp.le.s32.totalorder 1, %s12
    %p213 = scmp.lt.s32.totalorder %s12, 3
    %p214 = pnand %p212, %p213
    %p215 = pneg %p214
    // Predicated region
    $region41: #{tpu_custom_call.1} parent=5 // pred_check
      _
    $region42: #{tpu_custom_call.1} parent=5 // pred_check_branch
      %217 = sbr.rel (%p214) target = $region44
    $region43: #{tpu_custom_call.1} parent=5 // pred_region
      %s218 = ssub.s32 %s12, 1
      %s219 = smul.u32 16, %s17
      %p220 = scmp.lt.s32.totalorder %s219, 31
      %s221 = scalar_select %p220, %s219, 31
      %s222 = smul.addr %s221, 8
      %s223 = scalar_lea.vmem %s0, %s222
      %p224 = pneg %p38
      %p225 = pneg %p35
      %p226 = pneg %p59
      %p227 = pneg %p56
      %p228 = pneg %p80
      %p229 = pneg %p77
      %p230 = pneg %p101
      %p231 = pneg %p98
      %p232 = pneg %p122
      %p233 = pneg %p119
      %p234 = pneg %p143
      %p235 = pneg %p140
      %p236 = pneg %p169
      %p237 = pneg %p166
      %s238 = smul.u32 16, %s17
      %p239 = scmp.lt.s32.totalorder %s238, 31
      %s240 = scalar_select %p239, %s238, 31
      %s241 = smul.addr %s240, 8
      %s242 = scalar_lea.vmem %s6, %s241
      %s243 = smul.u32 16, %s17
      %p244 = scmp.lt.s32.totalorder %s243, 31
      %s245 = scalar_select %p244, %s243, 31
      %s246 = smul.addr %s245, 8
      %s247 = scalar_lea.vmem %s0, %s246
      %s248 = smul.u32 16, %s17
      %s249 = smul.u32 16, %s17
      %p250 = scmp.lt.s32.totalorder %s249, 31
      %s251 = scalar_select %p250, %s249, 31
      %s252 = smul.addr %s251, 8
      %s253 = scalar_lea.vmem %s6, %s252
      %s254 = smul.u32 16, %s17
      %v255 = vld [vmem:[%s247] sm:$0xff]
      %v256 = vld [vmem:[%s247 + $0x8] sm:$0xff]
      %v257 = vld [vmem:[%s247 + $0x10] sm:$0xff]
      %v258 = vld [vmem:[%s247 + $0x18] sm:$0xff]
      %v259 = vld [vmem:[%s247 + $0x20] sm:$0xff]
      %v260 = vld [vmem:[%s247 + $0x28] sm:$0xff]
      %v261 = vld [vmem:[%s247 + $0x30] sm:$0xff]
      %v262 = vld [vmem:[%s247 + $0x38] sm:$0xff]
      %v263 = vld [vmem:[%s247 + $0x40] sm:$0xff]
      %v264 = vld [vmem:[%s247 + $0x48] sm:$0xff]
      %v265 = vld [vmem:[%s247 + $0x50] sm:$0xff]
      %v266 = vld [vmem:[%s247 + $0x58] sm:$0xff]
      %v267 = vld [vmem:[%s247 + $0x60] sm:$0xff]
      %v268 = vld [vmem:[%s247 + $0x68] sm:$0xff]
      %v269 = vld [vmem:[%s247 + $0x70] sm:$0xff]
      %v270 = vld [vmem:[%s247 + $0x78] sm:$0xff]
      %v271 = vld [vmem:[%s1] sm:$0xff]
      %v272 = vld [vmem:[%s1 + $0x8] sm:$0xff]
      %v273 = vld [vmem:[%s1 + $0x10] sm:$0xff]
      %v274 = vld [vmem:[%s1 + $0x18] sm:$0xff]
      %v275 = vld [vmem:[%s1 + $0x20] sm:$0xff]
      %v276 = vld [vmem:[%s1 + $0x28] sm:$0xff]
      %v277 = vld [vmem:[%s1 + $0x30] sm:$0xff]
      %v278 = vld [vmem:[%s1 + $0x38] sm:$0xff]
      %v279 = vld [vmem:[%s1 + $0x40] sm:$0xff]
      %v280 = vld [vmem:[%s1 + $0x48] sm:$0xff]
      %v281 = vld [vmem:[%s1 + $0x50] sm:$0xff]
      %v282 = vld [vmem:[%s1 + $0x58] sm:$0xff]
      %v283 = vld [vmem:[%s2] sm:$0x1]
      %v285 = vperm.slane %v283, 0
      %vm287 = vcmask 785408
      %v289 = vsel %vm287, %v255, 0
      %v292 = vsel %vm287, %v256, 0
      %v295 = vsel %vm287, %v257, 0
      %v298 = vsel %vm287, %v258, 0
      %v301 = vsel %vm287, %v259, 0
      %v304 = vsel %vm287, %v260, 0
      %v307 = vsel %vm287, %v261, 0
      %v310 = vsel %vm287, %v262, 0
      %v313 = vsel %vm287, %v263, 0
      %v316 = vsel %vm287, %v264, 0
      %v319 = vsel %vm287, %v265, 0
      %v322 = vsel %vm287, %v266, 0
      %v325 = vsel %vm287, %v267, 0
      %v328 = vsel %vm287, %v268, 0
      %v331 = vsel %vm287, %v269, 0
      %v334 = vsel %vm287, %v270, 0
      %336 = vmatpush.msra.mxu0 0.0
      %337 = vmatpush.msra.mxu0 0.0
      %338 = vmatpush.msra.mxu0 0.0
      %339 = vmatpush.msra.mxu0 0.0
      %v340 = vand.u32 %v282, 4294901760
      %341 = vmatpush.msra.mxu0 %v340
      %v342 = vand.u32 %v281, 4294901760
      %343 = vmatpush.msra.mxu0 %v342
      %v344 = vand.u32 %v280, 4294901760
      %345 = vmatpush.msra.mxu0 %v344
      %v346 = vand.u32 %v279, 4294901760
      %347 = vmatpush.msra.mxu0 %v346
      %v348 = vand.u32 %v278, 4294901760
      %349 = vmatpush.msra.mxu0 %v348
      %v350 = vand.u32 %v277, 4294901760
      %351 = vmatpush.msra.mxu0 %v350
      %v352 = vand.u32 %v276, 4294901760
      %353 = vmatpush.msra.mxu0 %v352
      %v354 = vand.u32 %v275, 4294901760
      %355 = vmatpush.msra.mxu0 %v354
      %v356 = vand.u32 %v274, 4294901760
      %357 = vmatpush.msra.mxu0 %v356
      %v358 = vand.u32 %v273, 4294901760
      %359 = vmatpush.msra.mxu0 %v358
      %v360 = vand.u32 %v272, 4294901760
      %361 = vmatpush.msra.mxu0 %v360
      %v362 = vand.u32 %v271, 4294901760
      %363 = vmatpush.msra.mxu0 %v362
      %v364 = vand.u32 %v289, 4294901760
      %v365 = vsub.f32 %v289, %v364
      %v366 = vand.u32 %v365, 4294901760
      %v367 = vsub.f32 %v365, %v366
      %v368 = vand.u32 %v367, 4294901760
      %369 = vmatmul.f32.gmra.mxu0 %v368
      %v370 = vpop.f32.mrf.mxu0
      %v371 = vadd.f32 %v285, %v370
      %v372 = vand.u32 %v292, 4294901760
      %v373 = vsub.f32 %v292, %v372
      %v374 = vand.u32 %v373, 4294901760
      %v375 = vsub.f32 %v373, %v374
      %v376 = vand.u32 %v375, 4294901760
      %377 = vmatmul.f32.gmra.mxu0 %v376
      %v378 = vpop.f32.mrf.mxu0
      %v379 = vadd.f32 %v285, %v378
      %v380 = vand.u32 %v295, 4294901760
      %v381 = vsub.f32 %v295, %v380
      %v382 = vand.u32 %v381, 4294901760
      %v383 = vsub.f32 %v381, %v382
      %v384 = vand.u32 %v383, 4294901760
      %385 = vmatmul.f32.gmra.mxu0 %v384
      %v386 = vpop.f32.mrf.mxu0
      %v387 = vadd.f32 %v285, %v386
      %v388 = vand.u32 %v298, 4294901760
      %v389 = vsub.f32 %v298, %v388
      %v390 = vand.u32 %v389, 4294901760
      %v391 = vsub.f32 %v389, %v390
      %v392 = vand.u32 %v391, 4294901760
      %393 = vmatmul.f32.gmra.mxu0 %v392
      %v394 = vpop.f32.mrf.mxu0
      %v395 = vadd.f32 %v285, %v394
      %v396 = vand.u32 %v301, 4294901760
      %v397 = vsub.f32 %v301, %v396
      %v398 = vand.u32 %v397, 4294901760
      %v399 = vsub.f32 %v397, %v398
      %v400 = vand.u32 %v399, 4294901760
      %401 = vmatmul.f32.gmra.mxu0 %v400
      %v402 = vpop.f32.mrf.mxu0
      %v403 = vadd.f32 %v285, %v402
      %v404 = vand.u32 %v304, 4294901760
      %v405 = vsub.f32 %v304, %v404
      %v406 = vand.u32 %v405, 4294901760
      %v407 = vsub.f32 %v405, %v406
      %v408 = vand.u32 %v407, 4294901760
      %409 = vmatmul.f32.gmra.mxu0 %v408
      %v410 = vpop.f32.mrf.mxu0
      %v411 = vadd.f32 %v285, %v410
      %v412 = vand.u32 %v307, 4294901760
      %v413 = vsub.f32 %v307, %v412
      %v414 = vand.u32 %v413, 4294901760
      %v415 = vsub.f32 %v413, %v414
      %v416 = vand.u32 %v415, 4294901760
      %417 = vmatmul.f32.gmra.mxu0 %v416
      %v418 = vpop.f32.mrf.mxu0
      %v419 = vadd.f32 %v285, %v418
      %v420 = vand.u32 %v310, 4294901760
      %v421 = vsub.f32 %v310, %v420
      %v422 = vand.u32 %v421, 4294901760
      %v423 = vsub.f32 %v421, %v422
      %v424 = vand.u32 %v423, 4294901760
      %425 = vmatmul.f32.gmra.mxu0 %v424
      %v426 = vpop.f32.mrf.mxu0
      %v427 = vadd.f32 %v285, %v426
      %v428 = vand.u32 %v313, 4294901760
      %v429 = vsub.f32 %v313, %v428
      %v430 = vand.u32 %v429, 4294901760
      %v431 = vsub.f32 %v429, %v430
      %v432 = vand.u32 %v431, 4294901760
      %433 = vmatmul.f32.gmra.mxu0 %v432
      %v434 = vpop.f32.mrf.mxu0
      %v435 = vadd.f32 %v285, %v434
      %v436 = vand.u32 %v316, 4294901760
      %v437 = vsub.f32 %v316, %v436
      %v438 = vand.u32 %v437, 4294901760
      %v439 = vsub.f32 %v437, %v438
      %v440 = vand.u32 %v439, 4294901760
      %441 = vmatmul.f32.gmra.mxu0 %v440
      %v442 = vpop.f32.mrf.mxu0
      %v443 = vadd.f32 %v285, %v442
      %v444 = vand.u32 %v319, 4294901760
      %v445 = vsub.f32 %v319, %v444
      %v446 = vand.u32 %v445, 4294901760
      %v447 = vsub.f32 %v445, %v446
      %v448 = vand.u32 %v447, 4294901760
      %449 = vmatmul.f32.gmra.mxu0 %v448
      %v450 = vpop.f32.mrf.mxu0
      %v451 = vadd.f32 %v285, %v450
      %v452 = vand.u32 %v322, 4294901760
      %v453 = vsub.f32 %v322, %v452
      %v454 = vand.u32 %v453, 4294901760
      %v455 = vsub.f32 %v453, %v454
      %v456 = vand.u32 %v455, 4294901760
      %457 = vmatmul.f32.gmra.mxu0 %v456
      %v458 = vpop.f32.mrf.mxu0
      %v459 = vadd.f32 %v285, %v458
      %v460 = vand.u32 %v325, 4294901760
      %v461 = vsub.f32 %v325, %v460
      %v462 = vand.u32 %v461, 4294901760
      %v463 = vsub.f32 %v461, %v462
      %v464 = vand.u32 %v463, 4294901760
      %465 = vmatmul.f32.gmra.mxu0 %v464
      %v466 = vpop.f32.mrf.mxu0
      %v467 = vadd.f32 %v285, %v466
      %v468 = vand.u32 %v328, 4294901760
      %v469 = vsub.f32 %v328, %v468
      %v470 = vand.u32 %v469, 4294901760
      %v471 = vsub.f32 %v469, %v470
      %v472 = vand.u32 %v471, 4294901760
      %473 = vmatmul.f32.gmra.mxu0 %v472
      %v474 = vpop.f32.mrf.mxu0
      %v475 = vadd.f32 %v285, %v474
      %v476 = vand.u32 %v331, 4294901760
      %v477 = vsub.f32 %v331, %v476
      %v478 = vand.u32 %v477, 4294901760
      %v479 = vsub.f32 %v477, %v478
      %v480 = vand.u32 %v479, 4294901760
      %481 = vmatmul.f32.gmra.mxu0 %v480
      %v482 = vpop.f32.mrf.mxu0
      %v483 = vadd.f32 %v285, %v482
      %v484 = vand.u32 %v334, 4294901760
      %v485 = vsub.f32 %v334, %v484
      %v486 = vand.u32 %v485, 4294901760
      %v487 = vsub.f32 %v485, %v486
      %v488 = vand.u32 %v487, 4294901760
      %489 = vmatmul.f32.gmra.mxu0 %v488
      %v490 = vpop.f32.mrf.mxu0
      %v491 = vadd.f32 %v285, %v490
      %492 = vdwg.mxu0
      %493 = vmatpush.msra.mxu0 0.0
      %494 = vmatpush.msra.mxu0 0.0
      %495 = vmatpush.msra.mxu0 0.0
      %496 = vmatpush.msra.mxu0 0.0
      %v497 = vand.u32 %v282, 4294901760
      %v498 = vsub.f32 %v282, %v497
      %v499 = vand.u32 %v498, 4294901760
      %v500 = vsub.f32 %v498, %v499
      %v501 = vand.u32 %v500, 4294901760
      %502 = vmatpush.msra.mxu0 %v501
      %v503 = vand.u32 %v281, 4294901760
      %v504 = vsub.f32 %v281, %v503
      %v505 = vand.u32 %v504, 4294901760
      %v506 = vsub.f32 %v504, %v505
      %v507 = vand.u32 %v506, 4294901760
      %508 = vmatpush.msra.mxu0 %v507
      %v509 = vand.u32 %v280, 4294901760
      %v510 = vsub.f32 %v280, %v509
      %v511 = vand.u32 %v510, 4294901760
      %v512 = vsub.f32 %v510, %v511
      %v513 = vand.u32 %v512, 4294901760
      %514 = vmatpush.msra.mxu0 %v513
      %v515 = vand.u32 %v279, 4294901760
      %v516 = vsub.f32 %v279, %v515
      %v517 = vand.u32 %v516, 4294901760
      %v518 = vsub.f32 %v516, %v517
      %v519 = vand.u32 %v518, 4294901760
      %520 = vmatpush.msra.mxu0 %v519
      %v521 = vand.u32 %v278, 4294901760
      %v522 = vsub.f32 %v278, %v521
      %v523 = vand.u32 %v522, 4294901760
      %v524 = vsub.f32 %v522, %v523
      %v525 = vand.u32 %v524, 4294901760
      %526 = vmatpush.msra.mxu0 %v525
      %v527 = vand.u32 %v277, 4294901760
      %v528 = vsub.f32 %v277, %v527
      %v529 = vand.u32 %v528, 4294901760
      %v530 = vsub.f32 %v528, %v529
      %v531 = vand.u32 %v530, 4294901760
      %532 = vmatpush.msra.mxu0 %v531
      %v533 = vand.u32 %v276, 4294901760
      %v534 = vsub.f32 %v276, %v533
      %v535 = vand.u32 %v534, 4294901760
      %v536 = vsub.f32 %v534, %v535
      %v537 = vand.u32 %v536, 4294901760
      %538 = vmatpush.msra.mxu0 %v537
      %v539 = vand.u32 %v275, 4294901760
      %v540 = vsub.f32 %v275, %v539
      %v541 = vand.u32 %v540, 4294901760
      %v542 = vsub.f32 %v540, %v541
      %v543 = vand.u32 %v542, 4294901760
      %544 = vmatpush.msra.mxu0 %v543
      %v545 = vand.u32 %v274, 4294901760
      %v546 = vsub.f32 %v274, %v545
      %v547 = vand.u32 %v546, 4294901760
      %v548 = vsub.f32 %v546, %v547
      %v549 = vand.u32 %v548, 4294901760
      %550 = vmatpush.msra.mxu0 %v549
      %v551 = vand.u32 %v273, 4294901760
      %v552 = vsub.f32 %v273, %v551
      %v553 = vand.u32 %v552, 4294901760
      %v554 = vsub.f32 %v552, %v553
      %v555 = vand.u32 %v554, 4294901760
      %556 = vmatpush.msra.mxu0 %v555
      %v557 = vand.u32 %v272, 4294901760
      %v558 = vsub.f32 %v272, %v557
      %v559 = vand.u32 %v558, 4294901760
      %v560 = vsub.f32 %v558, %v559
      %v561 = vand.u32 %v560, 4294901760
      %562 = vmatpush.msra.mxu0 %v561
      %v563 = vand.u32 %v271, 4294901760
      %v564 = vsub.f32 %v271, %v563
      %v565 = vand.u32 %v564, 4294901760
      %v566 = vsub.f32 %v564, %v565
      %v567 = vand.u32 %v566, 4294901760
      %568 = vmatpush.msra.mxu0 %v567
      %v569 = vand.u32 %v289, 4294901760
      %570 = vmatmul.f32.gmra.mxu0 %v569
      %v571 = vpop.f32.mrf.mxu0
      %v572 = vadd.f32 %v371, %v571
      %v573 = vand.u32 %v292, 4294901760
      %574 = vmatmul.f32.gmra.mxu0 %v573
      %v575 = vpop.f32.mrf.mxu0
      %v576 = vadd.f32 %v379, %v575
      %v577 = vand.u32 %v295, 4294901760
      %578 = vmatmul.f32.gmra.mxu0 %v577
      %v579 = vpop.f32.mrf.mxu0
      %v580 = vadd.f32 %v387, %v579
      %v581 = vand.u32 %v298, 4294901760
      %582 = vmatmul.f32.gmra.mxu0 %v581
      %v583 = vpop.f32.mrf.mxu0
      %v584 = vadd.f32 %v395, %v583
      %v585 = vand.u32 %v301, 4294901760
      %586 = vmatmul.f32.gmra.mxu0 %v585
      %v587 = vpop.f32.mrf.mxu0
      %v588 = vadd.f32 %v403, %v587
      %v589 = vand.u32 %v304, 4294901760
      %590 = vmatmul.f32.gmra.mxu0 %v589
      %v591 = vpop.f32.mrf.mxu0
      %v592 = vadd.f32 %v411, %v591
      %v593 = vand.u32 %v307, 4294901760
      %594 = vmatmul.f32.gmra.mxu0 %v593
      %v595 = vpop.f32.mrf.mxu0
      %v596 = vadd.f32 %v419, %v595
      %v597 = vand.u32 %v310, 4294901760
      %598 = vmatmul.f32.gmra.mxu0 %v597
      %v599 = vpop.f32.mrf.mxu0
      %v600 = vadd.f32 %v427, %v599
      %v601 = vand.u32 %v313, 4294901760
      %602 = vmatmul.f32.gmra.mxu0 %v601
      %v603 = vpop.f32.mrf.mxu0
      %v604 = vadd.f32 %v435, %v603
      %v605 = vand.u32 %v316, 4294901760
      %606 = vmatmul.f32.gmra.mxu0 %v605
      %v607 = vpop.f32.mrf.mxu0
      %v608 = vadd.f32 %v443, %v607
      %v609 = vand.u32 %v319, 4294901760
      %610 = vmatmul.f32.gmra.mxu0 %v609
      %v611 = vpop.f32.mrf.mxu0
      %v612 = vadd.f32 %v451, %v611
      %v613 = vand.u32 %v322, 4294901760
      %614 = vmatmul.f32.gmra.mxu0 %v613
      %v615 = vpop.f32.mrf.mxu0
      %v616 = vadd.f32 %v459, %v615
      %v617 = vand.u32 %v325, 4294901760
      %618 = vmatmul.f32.gmra.mxu0 %v617
      %v619 = vpop.f32.mrf.mxu0
      %v620 = vadd.f32 %v467, %v619
      %v621 = vand.u32 %v328, 4294901760
      %622 = vmatmul.f32.gmra.mxu0 %v621
      %v623 = vpop.f32.mrf.mxu0
      %v624 = vadd.f32 %v475, %v623
      %v625 = vand.u32 %v331, 4294901760
      %626 = vmatmul.f32.gmra.mxu0 %v625
      %v627 = vpop.f32.mrf.mxu0
      %v628 = vadd.f32 %v483, %v627
      %v629 = vand.u32 %v334, 4294901760
      %630 = vmatmul.f32.gmra.mxu0 %v629
      %v631 = vpop.f32.mrf.mxu0
      %v632 = vadd.f32 %v491, %v631
      %633 = vdwg.mxu0
      %634 = vmatpush.msra.mxu0 0.0
      %635 = vmatpush.msra.mxu0 0.0
      %636 = vmatpush.msra.mxu0 0.0
      %637 = vmatpush.msra.mxu0 0.0
      %v638 = vand.u32 %v282, 4294901760
      %v639 = vsub.f32 %v282, %v638
      %640 = vmatpush.msra.mxu0 %v639
      %v641 = vand.u32 %v281, 4294901760
      %v642 = vsub.f32 %v281, %v641
      %643 = vmatpush.msra.mxu0 %v642
      %v644 = vand.u32 %v280, 4294901760
      %v645 = vsub.f32 %v280, %v644
      %646 = vmatpush.msra.mxu0 %v645
      %v647 = vand.u32 %v279, 4294901760
      %v648 = vsub.f32 %v279, %v647
      %649 = vmatpush.msra.mxu0 %v648
      %v650 = vand.u32 %v278, 4294901760
      %v651 = vsub.f32 %v278, %v650
      %652 = vmatpush.msra.mxu0 %v651
      %v653 = vand.u32 %v277, 4294901760
      %v654 = vsub.f32 %v277, %v653
      %655 = vmatpush.msra.mxu0 %v654
      %v656 = vand.u32 %v276, 4294901760
      %v657 = vsub.f32 %v276, %v656
      %658 = vmatpush.msra.mxu0 %v657
      %v659 = vand.u32 %v275, 4294901760
      %v660 = vsub.f32 %v275, %v659
      %661 = vmatpush.msra.mxu0 %v660
      %v662 = vand.u32 %v274, 4294901760
      %v663 = vsub.f32 %v274, %v662
      %664 = vmatpush.msra.mxu0 %v663
      %v665 = vand.u32 %v273, 4294901760
      %v666 = vsub.f32 %v273, %v665
      %667 = vmatpush.msra.mxu0 %v666
      %v668 = vand.u32 %v272, 4294901760
      %v669 = vsub.f32 %v272, %v668
      %670 = vmatpush.msra.mxu0 %v669
      %v671 = vand.u32 %v271, 4294901760
      %v672 = vsub.f32 %v271, %v671
      %673 = vmatpush.msra.mxu0 %v672
      %v674 = vand.u32 %v289, 4294901760
      %v675 = vsub.f32 %v289, %v674
      %676 = vmatmul.f32.gmra.mxu0 %v675
      %v677 = vpop.f32.mrf.mxu0
      %v678 = vadd.f32 %v572, %v677
      %v679 = vand.u32 %v292, 4294901760
      %v680 = vsub.f32 %v292, %v679
      %681 = vmatmul.f32.gmra.mxu0 %v680
      %v682 = vpop.f32.mrf.mxu0
      %v683 = vadd.f32 %v576, %v682
      %v684 = vand.u32 %v295, 4294901760
      %v685 = vsub.f32 %v295, %v684
      %686 = vmatmul.f32.gmra.mxu0 %v685
      %v687 = vpop.f32.mrf.mxu0
      %v688 = vadd.f32 %v580, %v687
      %v689 = vand.u32 %v298, 4294901760
      %v690 = vsub.f32 %v298, %v689
      %691 = vmatmul.f32.gmra.mxu0 %v690
      %v692 = vpop.f32.mrf.mxu0
      %v693 = vadd.f32 %v584, %v692
      %v694 = vand.u32 %v301, 4294901760
      %v695 = vsub.f32 %v301, %v694
      %696 = vmatmul.f32.gmra.mxu0 %v695
      %v697 = vpop.f32.mrf.mxu0
      %v698 = vadd.f32 %v588, %v697
      %v699 = vand.u32 %v304, 4294901760
      %v700 = vsub.f32 %v304, %v699
      %701 = vmatmul.f32.gmra.mxu0 %v700
      %v702 = vpop.f32.mrf.mxu0
      %v703 = vadd.f32 %v592, %v702
      %v704 = vand.u32 %v307, 4294901760
      %v705 = vsub.f32 %v307, %v704
      %706 = vmatmul.f32.gmra.mxu0 %v705
      %v707 = vpop.f32.mrf.mxu0
      %v708 = vadd.f32 %v596, %v707
      %v709 = vand.u32 %v310, 4294901760
      %v710 = vsub.f32 %v310, %v709
      %711 = vmatmul.f32.gmra.mxu0 %v710
      %v712 = vpop.f32.mrf.mxu0
      %v713 = vadd.f32 %v600, %v712
      %v714 = vand.u32 %v313, 4294901760
      %v715 = vsub.f32 %v313, %v714
      %716 = vmatmul.f32.gmra.mxu0 %v715
      %v717 = vpop.f32.mrf.mxu0
      %v718 = vadd.f32 %v604, %v717
      %v719 = vand.u32 %v316, 4294901760
      %v720 = vsub.f32 %v316, %v719
      %721 = vmatmul.f32.gmra.mxu0 %v720
      %v722 = vpop.f32.mrf.mxu0
      %v723 = vadd.f32 %v608, %v722
      %v724 = vand.u32 %v319, 4294901760
      %v725 = vsub.f32 %v319, %v724
      %726 = vmatmul.f32.gmra.mxu0 %v725
      %v727 = vpop.f32.mrf.mxu0
      %v728 = vadd.f32 %v612, %v727
      %v729 = vand.u32 %v322, 4294901760
      %v730 = vsub.f32 %v322, %v729
      %731 = vmatmul.f32.gmra.mxu0 %v730
      %v732 = vpop.f32.mrf.mxu0
      %v733 = vadd.f32 %v616, %v732
      %v734 = vand.u32 %v325, 4294901760
      %v735 = vsub.f32 %v325, %v734
      %736 = vmatmul.f32.gmra.mxu0 %v735
      %v737 = vpop.f32.mrf.mxu0
      %v738 = vadd.f32 %v620, %v737
      %v739 = vand.u32 %v328, 4294901760
      %v740 = vsub.f32 %v328, %v739
      %741 = vmatmul.f32.gmra.mxu0 %v740
      %v742 = vpop.f32.mrf.mxu0
      %v743 = vadd.f32 %v624, %v742
      %v744 = vand.u32 %v331, 4294901760
      %v745 = vsub.f32 %v331, %v744
      %746 = vmatmul.f32.gmra.mxu0 %v745
      %v747 = vpop.f32.mrf.mxu0
      %v748 = vadd.f32 %v628, %v747
      %v749 = vand.u32 %v334, 4294901760
      %v750 = vsub.f32 %v334, %v749
      %751 = vmatmul.f32.gmra.mxu0 %v750
      %v752 = vpop.f32.mrf.mxu0
      %v753 = vadd.f32 %v632, %v752
      %754 = vdwg.mxu0
      %755 = vmatpush.msra.mxu0 0.0
      %756 = vmatpush.msra.mxu0 0.0
      %757 = vmatpush.msra.mxu0 0.0
      %758 = vmatpush.msra.mxu0 0.0
      %v759 = vand.u32 %v282, 4294901760
      %760 = vmatpush.msra.mxu0 %v759
      %v761 = vand.u32 %v281, 4294901760
      %762 = vmatpush.msra.mxu0 %v761
      %v763 = vand.u32 %v280, 4294901760
      %764 = vmatpush.msra.mxu0 %v763
      %v765 = vand.u32 %v279, 4294901760
      %766 = vmatpush.msra.mxu0 %v765
      %v767 = vand.u32 %v278, 4294901760
      %768 = vmatpush.msra.mxu0 %v767
      %v769 = vand.u32 %v277, 4294901760
      %770 = vmatpush.msra.mxu0 %v769
      %v771 = vand.u32 %v276, 4294901760
      %772 = vmatpush.msra.mxu0 %v771
      %v773 = vand.u32 %v275, 4294901760
      %774 = vmatpush.msra.mxu0 %v773
      %v775 = vand.u32 %v274, 4294901760
      %776 = vmatpush.msra.mxu0 %v775
      %v777 = vand.u32 %v273, 4294901760
      %778 = vmatpush.msra.mxu0 %v777
      %v779 = vand.u32 %v272, 4294901760
      %780 = vmatpush.msra.mxu0 %v779
      %v781 = vand.u32 %v271, 4294901760
      %782 = vmatpush.msra.mxu0 %v781
      %v783 = vand.u32 %v289, 4294901760
      %v784 = vsub.f32 %v289, %v783
      %v785 = vand.u32 %v784, 4294901760
      %786 = vmatmul.f32.gmra.mxu0 %v785
      %v787 = vpop.f32.mrf.mxu0
      %v788 = vadd.f32 %v678, %v787
      %v789 = vand.u32 %v292, 4294901760
      %v790 = vsub.f32 %v292, %v789
      %v791 = vand.u32 %v790, 4294901760
      %792 = vmatmul.f32.gmra.mxu0 %v791
      %v793 = vpop.f32.mrf.mxu0
      %v794 = vadd.f32 %v683, %v793
      %v795 = vand.u32 %v295, 4294901760
      %v796 = vsub.f32 %v295, %v795
      %v797 = vand.u32 %v796, 4294901760
      %798 = vmatmul.f32.gmra.mxu0 %v797
      %v799 = vpop.f32.mrf.mxu0
      %v800 = vadd.f32 %v688, %v799
      %v801 = vand.u32 %v298, 4294901760
      %v802 = vsub.f32 %v298, %v801
      %v803 = vand.u32 %v802, 4294901760
      %804 = vmatmul.f32.gmra.mxu0 %v803
      %v805 = vpop.f32.mrf.mxu0
      %v806 = vadd.f32 %v693, %v805
      %v807 = vand.u32 %v301, 4294901760
      %v808 = vsub.f32 %v301, %v807
      %v809 = vand.u32 %v808, 4294901760
      %810 = vmatmul.f32.gmra.mxu0 %v809
      %v811 = vpop.f32.mrf.mxu0
      %v812 = vadd.f32 %v698, %v811
      %v813 = vand.u32 %v304, 4294901760
      %v814 = vsub.f32 %v304, %v813
      %v815 = vand.u32 %v814, 4294901760
      %816 = vmatmul.f32.gmra.mxu0 %v815
      %v817 = vpop.f32.mrf.mxu0
      %v818 = vadd.f32 %v703, %v817
      %v819 = vand.u32 %v307, 4294901760
      %v820 = vsub.f32 %v307, %v819
      %v821 = vand.u32 %v820, 4294901760
      %822 = vmatmul.f32.gmra.mxu0 %v821
      %v823 = vpop.f32.mrf.mxu0
      %v824 = vadd.f32 %v708, %v823
      %v825 = vand.u32 %v310, 4294901760
      %v826 = vsub.f32 %v310, %v825
      %v827 = vand.u32 %v826, 4294901760
      %828 = vmatmul.f32.gmra.mxu0 %v827
      %v829 = vpop.f32.mrf.mxu0
      %v830 = vadd.f32 %v713, %v829
      %v831 = vand.u32 %v313, 4294901760
      %v832 = vsub.f32 %v313, %v831
      %v833 = vand.u32 %v832, 4294901760
      %834 = vmatmul.f32.gmra.mxu0 %v833
      %v835 = vpop.f32.mrf.mxu0
      %v836 = vadd.f32 %v718, %v835
      %v837 = vand.u32 %v316, 4294901760
      %v838 = vsub.f32 %v316, %v837
      %v839 = vand.u32 %v838, 4294901760
      %840 = vmatmul.f32.gmra.mxu0 %v839
      %v841 = vpop.f32.mrf.mxu0
      %v842 = vadd.f32 %v723, %v841
      %v843 = vand.u32 %v319, 4294901760
      %v844 = vsub.f32 %v319, %v843
      %v845 = vand.u32 %v844, 4294901760
      %846 = vmatmul.f32.gmra.mxu0 %v845
      %v847 = vpop.f32.mrf.mxu0
      %v848 = vadd.f32 %v728, %v847
      %v849 = vand.u32 %v322, 4294901760
      %v850 = vsub.f32 %v322, %v849
      %v851 = vand.u32 %v850, 4294901760
      %852 = vmatmul.f32.gmra.mxu0 %v851
      %v853 = vpop.f32.mrf.mxu0
      %v854 = vadd.f32 %v733, %v853
      %v855 = vand.u32 %v325, 4294901760
      %v856 = vsub.f32 %v325, %v855
      %v857 = vand.u32 %v856, 4294901760
      %858 = vmatmul.f32.gmra.mxu0 %v857
      %v859 = vpop.f32.mrf.mxu0
      %v860 = vadd.f32 %v738, %v859
      %v861 = vand.u32 %v328, 4294901760
      %v862 = vsub.f32 %v328, %v861
      %v863 = vand.u32 %v862, 4294901760
      %864 = vmatmul.f32.gmra.mxu0 %v863
      %v865 = vpop.f32.mrf.mxu0
      %v866 = vadd.f32 %v743, %v865
      %v867 = vand.u32 %v331, 4294901760
      %v868 = vsub.f32 %v331, %v867
      %v869 = vand.u32 %v868, 4294901760
      %870 = vmatmul.f32.gmra.mxu0 %v869
      %v871 = vpop.f32.mrf.mxu0
      %v872 = vadd.f32 %v748, %v871
      %v873 = vand.u32 %v334, 4294901760
      %v874 = vsub.f32 %v334, %v873
      %v875 = vand.u32 %v874, 4294901760
      %876 = vmatmul.f32.gmra.mxu0 %v875
      %v877 = vpop.f32.mrf.mxu0
      %v878 = vadd.f32 %v753, %v877
      %879 = vdwg.mxu0
      %880 = vmatpush.msra.mxu0 0.0
      %881 = vmatpush.msra.mxu0 0.0
      %882 = vmatpush.msra.mxu0 0.0
      %883 = vmatpush.msra.mxu0 0.0
      %v884 = vand.u32 %v282, 4294901760
      %v885 = vsub.f32 %v282, %v884
      %v886 = vand.u32 %v885, 4294901760
      %887 = vmatpush.msra.mxu0 %v886
      %v888 = vand.u32 %v281, 4294901760
      %v889 = vsub.f32 %v281, %v888
      %v890 = vand.u32 %v889, 4294901760
      %891 = vmatpush.msra.mxu0 %v890
      %v892 = vand.u32 %v280, 4294901760
      %v893 = vsub.f32 %v280, %v892
      %v894 = vand.u32 %v893, 4294901760
      %895 = vmatpush.msra.mxu0 %v894
      %v896 = vand.u32 %v279, 4294901760
      %v897 = vsub.f32 %v279, %v896
      %v898 = vand.u32 %v897, 4294901760
      %899 = vmatpush.msra.mxu0 %v898
      %v900 = vand.u32 %v278, 4294901760
      %v901 = vsub.f32 %v278, %v900
      %v902 = vand.u32 %v901, 4294901760
      %903 = vmatpush.msra.mxu0 %v902
      %v904 = vand.u32 %v277, 4294901760
      %v905 = vsub.f32 %v277, %v904
      %v906 = vand.u32 %v905, 4294901760
      %907 = vmatpush.msra.mxu0 %v906
      %v908 = vand.u32 %v276, 4294901760
      %v909 = vsub.f32 %v276, %v908
      %v910 = vand.u32 %v909, 4294901760
      %911 = vmatpush.msra.mxu0 %v910
      %v912 = vand.u32 %v275, 4294901760
      %v913 = vsub.f32 %v275, %v912
      %v914 = vand.u32 %v913, 4294901760
      %915 = vmatpush.msra.mxu0 %v914
      %v916 = vand.u32 %v274, 4294901760
      %v917 = vsub.f32 %v274, %v916
      %v918 = vand.u32 %v917, 4294901760
      %919 = vmatpush.msra.mxu0 %v918
      %v920 = vand.u32 %v273, 4294901760
      %v921 = vsub.f32 %v273, %v920
      %v922 = vand.u32 %v921, 4294901760
      %923 = vmatpush.msra.mxu0 %v922
      %v924 = vand.u32 %v272, 4294901760
      %v925 = vsub.f32 %v272, %v924
      %v926 = vand.u32 %v925, 4294901760
      %927 = vmatpush.msra.mxu0 %v926
      %v928 = vand.u32 %v271, 4294901760
      %v929 = vsub.f32 %v271, %v928
      %v930 = vand.u32 %v929, 4294901760
      %931 = vmatpush.msra.mxu0 %v930
      %v932 = vand.u32 %v289, 4294901760
      %933 = vmatmul.f32.gmra.mxu0 %v932
      %v934 = vpop.f32.mrf.mxu0
      %v935 = vadd.f32 %v788, %v934
      %v936 = vand.u32 %v292, 4294901760
      %937 = vmatmul.f32.gmra.mxu0 %v936
      %v938 = vpop.f32.mrf.mxu0
      %v939 = vadd.f32 %v794, %v938
      %v940 = vand.u32 %v295, 4294901760
      %941 = vmatmul.f32.gmra.mxu0 %v940
      %v942 = vpop.f32.mrf.mxu0
      %v943 = vadd.f32 %v800, %v942
      %v944 = vand.u32 %v298, 4294901760
      %945 = vmatmul.f32.gmra.mxu0 %v944
      %v946 = vpop.f32.mrf.mxu0
      %v947 = vadd.f32 %v806, %v946
      %v948 = vand.u32 %v301, 4294901760
      %949 = vmatmul.f32.gmra.mxu0 %v948
      %v950 = vpop.f32.mrf.mxu0
      %v951 = vadd.f32 %v812, %v950
      %v952 = vand.u32 %v304, 4294901760
      %953 = vmatmul.f32.gmra.mxu0 %v952
      %v954 = vpop.f32.mrf.mxu0
      %v955 = vadd.f32 %v818, %v954
      %v956 = vand.u32 %v307, 4294901760
      %957 = vmatmul.f32.gmra.mxu0 %v956
      %v958 = vpop.f32.mrf.mxu0
      %v959 = vadd.f32 %v824, %v958
      %v960 = vand.u32 %v310, 4294901760
      %961 = vmatmul.f32.gmra.mxu0 %v960
      %v962 = vpop.f32.mrf.mxu0
      %v963 = vadd.f32 %v830, %v962
      %v964 = vand.u32 %v313, 4294901760
      %965 = vmatmul.f32.gmra.mxu0 %v964
      %v966 = vpop.f32.mrf.mxu0
      %v967 = vadd.f32 %v836, %v966
      %v968 = vand.u32 %v316, 4294901760
      %969 = vmatmul.f32.gmra.mxu0 %v968
      %v970 = vpop.f32.mrf.mxu0
      %v971 = vadd.f32 %v842, %v970
      %v972 = vand.u32 %v319, 4294901760
      %973 = vmatmul.f32.gmra.mxu0 %v972
      %v974 = vpop.f32.mrf.mxu0
      %v975 = vadd.f32 %v848, %v974
      %v976 = vand.u32 %v322, 4294901760
      %977 = vmatmul.f32.gmra.mxu0 %v976
      %v978 = vpop.f32.mrf.mxu0
      %v979 = vadd.f32 %v854, %v978
      %v980 = vand.u32 %v325, 4294901760
      %981 = vmatmul.f32.gmra.mxu0 %v980
      %v982 = vpop.f32.mrf.mxu0
      %v983 = vadd.f32 %v860, %v982
      %v984 = vand.u32 %v328, 4294901760
      %985 = vmatmul.f32.gmra.mxu0 %v984
      %v986 = vpop.f32.mrf.mxu0
      %v987 = vadd.f32 %v866, %v986
      %v988 = vand.u32 %v331, 4294901760
      %989 = vmatmul.f32.gmra.mxu0 %v988
      %v990 = vpop.f32.mrf.mxu0
      %v991 = vadd.f32 %v872, %v990
      %v992 = vand.u32 %v334, 4294901760
      %993 = vmatmul.f32.gmra.mxu0 %v992
      %v994 = vpop.f32.mrf.mxu0
      %v995 = vadd.f32 %v878, %v994
      %996 = vdwg.mxu0
      %997 = vmatpush.msra.mxu0 0.0
      %998 = vmatpush.msra.mxu0 0.0
      %999 = vmatpush.msra.mxu0 0.0
      %1000 = vmatpush.msra.mxu0 0.0
      %v1001 = vand.u32 %v282, 4294901760
      %1002 = vmatpush.msra.mxu0 %v1001
      %v1003 = vand.u32 %v281, 4294901760
      %1004 = vmatpush.msra.mxu0 %v1003
      %v1005 = vand.u32 %v280, 4294901760
      %1006 = vmatpush.msra.mxu0 %v1005
      %v1007 = vand.u32 %v279, 4294901760
      %1008 = vmatpush.msra.mxu0 %v1007
      %v1009 = vand.u32 %v278, 4294901760
      %1010 = vmatpush.msra.mxu0 %v1009
      %v1011 = vand.u32 %v277, 4294901760
      %1012 = vmatpush.msra.mxu0 %v1011
      %v1013 = vand.u32 %v276, 4294901760
      %1014 = vmatpush.msra.mxu0 %v1013
      %v1015 = vand.u32 %v275, 4294901760
      %1016 = vmatpush.msra.mxu0 %v1015
      %v1017 = vand.u32 %v274, 4294901760
      %1018 = vmatpush.msra.mxu0 %v1017
      %v1019 = vand.u32 %v273, 4294901760
      %1020 = vmatpush.msra.mxu0 %v1019
      %v1021 = vand.u32 %v272, 4294901760
      %1022 = vmatpush.msra.mxu0 %v1021
      %v1023 = vand.u32 %v271, 4294901760
      %1024 = vmatpush.msra.mxu0 %v1023
      %v1025 = vand.u32 %v289, 4294901760
      %1026 = vmatmul.f32.gmra.mxu0 %v1025
      %v1027 = vpop.f32.mrf.mxu0
      %v1028 = vadd.f32 %v935, %v1027
      %v1029 = vand.u32 %v292, 4294901760
      %1030 = vmatmul.f32.gmra.mxu0 %v1029
      %v1031 = vpop.f32.mrf.mxu0
      %v1032 = vadd.f32 %v939, %v1031
      %v1033 = vand.u32 %v295, 4294901760
      %1034 = vmatmul.f32.gmra.mxu0 %v1033
      %v1035 = vpop.f32.mrf.mxu0
      %v1036 = vadd.f32 %v943, %v1035
      %v1037 = vand.u32 %v298, 4294901760
      %1038 = vmatmul.f32.gmra.mxu0 %v1037
      %v1039 = vpop.f32.mrf.mxu0
      %v1040 = vadd.f32 %v947, %v1039
      %v1041 = vand.u32 %v301, 4294901760
      %1042 = vmatmul.f32.gmra.mxu0 %v1041
      %v1043 = vpop.f32.mrf.mxu0
      %v1044 = vadd.f32 %v951, %v1043
      %v1045 = vand.u32 %v304, 4294901760
      %1046 = vmatmul.f32.gmra.mxu0 %v1045
      %v1047 = vpop.f32.mrf.mxu0
      %v1048 = vadd.f32 %v955, %v1047
      %v1049 = vand.u32 %v307, 4294901760
      %1050 = vmatmul.f32.gmra.mxu0 %v1049
      %v1051 = vpop.f32.mrf.mxu0
      %v1052 = vadd.f32 %v959, %v1051
      %v1053 = vand.u32 %v310, 4294901760
      %1054 = vmatmul.f32.gmra.mxu0 %v1053
      %v1055 = vpop.f32.mrf.mxu0
      %v1056 = vadd.f32 %v963, %v1055
      %v1057 = vand.u32 %v313, 4294901760
      %1058 = vmatmul.f32.gmra.mxu0 %v1057
      %v1059 = vpop.f32.mrf.mxu0
      %v1060 = vadd.f32 %v967, %v1059
      %v1061 = vand.u32 %v316, 4294901760
      %1062 = vmatmul.f32.gmra.mxu0 %v1061
      %v1063 = vpop.f32.mrf.mxu0
      %v1064 = vadd.f32 %v971, %v1063
      %v1065 = vand.u32 %v319, 4294901760
      %1066 = vmatmul.f32.gmra.mxu0 %v1065
      %v1067 = vpop.f32.mrf.mxu0
      %v1068 = vadd.f32 %v975, %v1067
      %v1069 = vand.u32 %v322, 4294901760
      %1070 = vmatmul.f32.gmra.mxu0 %v1069
      %v1071 = vpop.f32.mrf.mxu0
      %v1072 = vadd.f32 %v979, %v1071
      %v1073 = vand.u32 %v325, 4294901760
      %1074 = vmatmul.f32.gmra.mxu0 %v1073
      %v1075 = vpop.f32.mrf.mxu0
      %v1076 = vadd.f32 %v983, %v1075
      %v1077 = vand.u32 %v328, 4294901760
      %1078 = vmatmul.f32.gmra.mxu0 %v1077
      %v1079 = vpop.f32.mrf.mxu0
      %v1080 = vadd.f32 %v987, %v1079
      %v1081 = vand.u32 %v331, 4294901760
      %1082 = vmatmul.f32.gmra.mxu0 %v1081
      %v1083 = vpop.f32.mrf.mxu0
      %v1084 = vadd.f32 %v991, %v1083
      %v1085 = vand.u32 %v334, 4294901760
      %1086 = vmatmul.f32.gmra.mxu0 %v1085
      %v1087 = vpop.f32.mrf.mxu0
      %v1088 = vadd.f32 %v995, %v1087
      %1089 = vdwg.mxu0
      %v1090 = vtanh.pop %v1028
      %v1091 = vtanh.pop %v1032
      %v1092 = vtanh.pop %v1036
      %v1093 = vtanh.pop %v1040
      %v1094 = vtanh.pop %v1044
      %v1095 = vtanh.pop %v1048
      %v1096 = vtanh.pop %v1052
      %v1097 = vtanh.pop %v1056
      %v1098 = vtanh.pop %v1060
      %v1099 = vtanh.pop %v1064
      %v1100 = vtanh.pop %v1068
      %v1101 = vtanh.pop %v1072
      %v1102 = vtanh.pop %v1076
      %v1103 = vtanh.pop %v1080
      %v1104 = vtanh.pop %v1084
      %v1105 = vtanh.pop %v1088
      %v1106 = vld [vmem:[%s3] sm:$0xff]
      %v1107 = vld [vmem:[%s3 + $0x8] sm:$0xff]
      %v1108 = vld [vmem:[%s3 + $0x10] sm:$0xff]
      %v1109 = vld [vmem:[%s3 + $0x18] sm:$0xff]
      %v1110 = vld [vmem:[%s3 + $0x20] sm:$0xff]
      %v1111 = vld [vmem:[%s3 + $0x28] sm:$0xff]
      %v1112 = vld [vmem:[%s3 + $0x30] sm:$0xff]
      %v1113 = vld [vmem:[%s3 + $0x38] sm:$0xff]
      %v1114 = vld [vmem:[%s3 + $0x40] sm:$0xff]
      %v1115 = vld [vmem:[%s3 + $0x48] sm:$0xff]
      %v1116 = vld [vmem:[%s3 + $0x50] sm:$0xff]
      %v1117 = vld [vmem:[%s3 + $0x58] sm:$0xff]
      %v1119 = vsel %vm287, %v1090, 0
      %v1122 = vsel %vm287, %v1091, 0
      %v1125 = vsel %vm287, %v1092, 0
      %v1128 = vsel %vm287, %v1093, 0
      %v1131 = vsel %vm287, %v1094, 0
      %v1134 = vsel %vm287, %v1095, 0
      %v1137 = vsel %vm287, %v1096, 0
      %v1140 = vsel %vm287, %v1097, 0
      %v1143 = vsel %vm287, %v1098, 0
      %v1146 = vsel %vm287, %v1099, 0
      %v1149 = vsel %vm287, %v1100, 0
      %v1152 = vsel %vm287, %v1101, 0
      %v1155 = vsel %vm287, %v1102, 0
      %v1158 = vsel %vm287, %v1103, 0
      %v1161 = vsel %vm287, %v1104, 0
      %v1164 = vsel %vm287, %v1105, 0
      %1166 = vmatpush.msra.mxu0 0.0
      %1167 = vmatpush.msra.mxu0 0.0
      %1168 = vmatpush.msra.mxu0 0.0
      %1169 = vmatpush.msra.mxu0 0.0
      %v1170 = vand.u32 %v1117, 4294901760
      %1171 = vmatpush.msra.mxu0 %v1170
      %v1172 = vand.u32 %v1116, 4294901760
      %1173 = vmatpush.msra.mxu0 %v1172
      %v1174 = vand.u32 %v1115, 4294901760
      %1175 = vmatpush.msra.mxu0 %v1174
      %v1176 = vand.u32 %v1114, 4294901760
      %1177 = vmatpush.msra.mxu0 %v1176
      %v1178 = vand.u32 %v1113, 4294901760
      %1179 = vmatpush.msra.mxu0 %v1178
      %v1180 = vand.u32 %v1112, 4294901760
      %1181 = vmatpush.msra.mxu0 %v1180
      %v1182 = vand.u32 %v1111, 4294901760
      %1183 = vmatpush.msra.mxu0 %v1182
      %v1184 = vand.u32 %v1110, 4294901760
      %1185 = vmatpush.msra.mxu0 %v1184
      %v1186 = vand.u32 %v1109, 4294901760
      %1187 = vmatpush.msra.mxu0 %v1186
      %v1188 = vand.u32 %v1108, 4294901760
      %1189 = vmatpush.msra.mxu0 %v1188
      %v1190 = vand.u32 %v1107, 4294901760
      %1191 = vmatpush.msra.mxu0 %v1190
      %v1192 = vand.u32 %v1106, 4294901760
      %1193 = vmatpush.msra.mxu0 %v1192
      %v1194 = vand.u32 %v1119, 4294901760
      %v1195 = vsub.f32 %v1119, %v1194
      %v1196 = vand.u32 %v1195, 4294901760
      %v1197 = vsub.f32 %v1195, %v1196
      %v1198 = vand.u32 %v1197, 4294901760
      %1199 = vmatmul.f32.gmra.mxu0 %v1198
      %v1200 = vpop.f32.mrf.mxu0
      %v1201 = vadd.f32 0.0, %v1200
      %v1202 = vand.u32 %v1122, 4294901760
      %v1203 = vsub.f32 %v1122, %v1202
      %v1204 = vand.u32 %v1203, 4294901760
      %v1205 = vsub.f32 %v1203, %v1204
      %v1206 = vand.u32 %v1205, 4294901760
      %1207 = vmatmul.f32.gmra.mxu0 %v1206
      %v1208 = vpop.f32.mrf.mxu0
      %v1209 = vadd.f32 0.0, %v1208
      %v1210 = vand.u32 %v1125, 4294901760
      %v1211 = vsub.f32 %v1125, %v1210
      %v1212 = vand.u32 %v1211, 4294901760
      %v1213 = vsub.f32 %v1211, %v1212
      %v1214 = vand.u32 %v1213, 4294901760
      %1215 = vmatmul.f32.gmra.mxu0 %v1214
      %v1216 = vpop.f32.mrf.mxu0
      %v1217 = vadd.f32 0.0, %v1216
      %v1218 = vand.u32 %v1128, 4294901760
      %v1219 = vsub.f32 %v1128, %v1218
      %v1220 = vand.u32 %v1219, 4294901760
      %v1221 = vsub.f32 %v1219, %v1220
      %v1222 = vand.u32 %v1221, 4294901760
      %1223 = vmatmul.f32.gmra.mxu0 %v1222
      %v1224 = vpop.f32.mrf.mxu0
      %v1225 = vadd.f32 0.0, %v1224
      %v1226 = vand.u32 %v1131, 4294901760
      %v1227 = vsub.f32 %v1131, %v1226
      %v1228 = vand.u32 %v1227, 4294901760
      %v1229 = vsub.f32 %v1227, %v1228
      %v1230 = vand.u32 %v1229, 4294901760
      %1231 = vmatmul.f32.gmra.mxu0 %v1230
      %v1232 = vpop.f32.mrf.mxu0
      %v1233 = vadd.f32 0.0, %v1232
      %v1234 = vand.u32 %v1134, 4294901760
      %v1235 = vsub.f32 %v1134, %v1234
      %v1236 = vand.u32 %v1235, 4294901760
      %v1237 = vsub.f32 %v1235, %v1236
      %v1238 = vand.u32 %v1237, 4294901760
      %1239 = vmatmul.f32.gmra.mxu0 %v1238
      %v1240 = vpop.f32.mrf.mxu0
      %v1241 = vadd.f32 0.0, %v1240
      %v1242 = vand.u32 %v1137, 4294901760
      %v1243 = vsub.f32 %v1137, %v1242
      %v1244 = vand.u32 %v1243, 4294901760
      %v1245 = vsub.f32 %v1243, %v1244
      %v1246 = vand.u32 %v1245, 4294901760
      %1247 = vmatmul.f32.gmra.mxu0 %v1246
      %v1248 = vpop.f32.mrf.mxu0
      %v1249 = vadd.f32 0.0, %v1248
      %v1250 = vand.u32 %v1140, 4294901760
      %v1251 = vsub.f32 %v1140, %v1250
      %v1252 = vand.u32 %v1251, 4294901760
      %v1253 = vsub.f32 %v1251, %v1252
      %v1254 = vand.u32 %v1253, 4294901760
      %1255 = vmatmul.f32.gmra.mxu0 %v1254
      %v1256 = vpop.f32.mrf.mxu0
      %v1257 = vadd.f32 0.0, %v1256
      %v1258 = vand.u32 %v1143, 4294901760
      %v1259 = vsub.f32 %v1143, %v1258
      %v1260 = vand.u32 %v1259, 4294901760
      %v1261 = vsub.f32 %v1259, %v1260
      %v1262 = vand.u32 %v1261, 4294901760
      %1263 = vmatmul.f32.gmra.mxu0 %v1262
      %v1264 = vpop.f32.mrf.mxu0
      %v1265 = vadd.f32 0.0, %v1264
      %v1266 = vand.u32 %v1146, 4294901760
      %v1267 = vsub.f32 %v1146, %v1266
      %v1268 = vand.u32 %v1267, 4294901760
      %v1269 = vsub.f32 %v1267, %v1268
      %v1270 = vand.u32 %v1269, 4294901760
      %1271 = vmatmul.f32.gmra.mxu0 %v1270
      %v1272 = vpop.f32.mrf.mxu0
      %v1273 = vadd.f32 0.0, %v1272
      %v1274 = vand.u32 %v1149, 4294901760
      %v1275 = vsub.f32 %v1149, %v1274
      %v1276 = vand.u32 %v1275, 4294901760
      %v1277 = vsub.f32 %v1275, %v1276
      %v1278 = vand.u32 %v1277, 4294901760
      %1279 = vmatmul.f32.gmra.mxu0 %v1278
      %v1280 = vpop.f32.mrf.mxu0
      %v1281 = vadd.f32 0.0, %v1280
      %v1282 = vand.u32 %v1152, 4294901760
      %v1283 = vsub.f32 %v1152, %v1282
      %v1284 = vand.u32 %v1283, 4294901760
      %v1285 = vsub.f32 %v1283, %v1284
      %v1286 = vand.u32 %v1285, 4294901760
      %1287 = vmatmul.f32.gmra.mxu0 %v1286
      %v1288 = vpop.f32.mrf.mxu0
      %v1289 = vadd.f32 0.0, %v1288
      %v1290 = vand.u32 %v1155, 4294901760
      %v1291 = vsub.f32 %v1155, %v1290
      %v1292 = vand.u32 %v1291, 4294901760
      %v1293 = vsub.f32 %v1291, %v1292
      %v1294 = vand.u32 %v1293, 4294901760
      %1295 = vmatmul.f32.gmra.mxu0 %v1294
      %v1296 = vpop.f32.mrf.mxu0
      %v1297 = vadd.f32 0.0, %v1296
      %v1298 = vand.u32 %v1158, 4294901760
      %v1299 = vsub.f32 %v1158, %v1298
      %v1300 = vand.u32 %v1299, 4294901760
      %v1301 = vsub.f32 %v1299, %v1300
      %v1302 = vand.u32 %v1301, 4294901760
      %1303 = vmatmul.f32.gmra.mxu0 %v1302
      %v1304 = vpop.f32.mrf.mxu0
      %v1305 = vadd.f32 0.0, %v1304
      %v1306 = vand.u32 %v1161, 4294901760
      %v1307 = vsub.f32 %v1161, %v1306
      %v1308 = vand.u32 %v1307, 4294901760
      %v1309 = vsub.f32 %v1307, %v1308
      %v1310 = vand.u32 %v1309, 4294901760
      %1311 = vmatmul.f32.gmra.mxu0 %v1310
      %v1312 = vpop.f32.mrf.mxu0
      %v1313 = vadd.f32 0.0, %v1312
      %v1314 = vand.u32 %v1164, 4294901760
      %v1315 = vsub.f32 %v1164, %v1314
      %v1316 = vand.u32 %v1315, 4294901760
      %v1317 = vsub.f32 %v1315, %v1316
      %v1318 = vand.u32 %v1317, 4294901760
      %1319 = vmatmul.f32.gmra.mxu0 %v1318
      %v1320 = vpop.f32.mrf.mxu0
      %v1321 = vadd.f32 0.0, %v1320
      %1322 = vdwg.mxu0
      %1323 = vmatpush.msra.mxu0 0.0
      %1324 = vmatpush.msra.mxu0 0.0
      %1325 = vmatpush.msra.mxu0 0.0
      %1326 = vmatpush.msra.mxu0 0.0
      %v1327 = vand.u32 %v1117, 4294901760
      %v1328 = vsub.f32 %v1117, %v1327
      %v1329 = vand.u32 %v1328, 4294901760
      %v1330 = vsub.f32 %v1328, %v1329
      %v1331 = vand.u32 %v1330, 4294901760
      %1332 = vmatpush.msra.mxu0 %v1331
      %v1333 = vand.u32 %v1116, 4294901760
      %v1334 = vsub.f32 %v1116, %v1333
      %v1335 = vand.u32 %v1334, 4294901760
      %v1336 = vsub.f32 %v1334, %v1335
      %v1337 = vand.u32 %v1336, 4294901760
      %1338 = vmatpush.msra.mxu0 %v1337
      %v1339 = vand.u32 %v1115, 4294901760
      %v1340 = vsub.f32 %v1115, %v1339
      %v1341 = vand.u32 %v1340, 4294901760
      %v1342 = vsub.f32 %v1340, %v1341
      %v1343 = vand.u32 %v1342, 4294901760
      %1344 = vmatpush.msra.mxu0 %v1343
      %v1345 = vand.u32 %v1114, 4294901760
      %v1346 = vsub.f32 %v1114, %v1345
      %v1347 = vand.u32 %v1346, 4294901760
      %v1348 = vsub.f32 %v1346, %v1347
      %v1349 = vand.u32 %v1348, 4294901760
      %1350 = vmatpush.msra.mxu0 %v1349
      %v1351 = vand.u32 %v1113, 4294901760
      %v1352 = vsub.f32 %v1113, %v1351
      %v1353 = vand.u32 %v1352, 4294901760
      %v1354 = vsub.f32 %v1352, %v1353
      %v1355 = vand.u32 %v1354, 4294901760
      %1356 = vmatpush.msra.mxu0 %v1355
      %v1357 = vand.u32 %v1112, 4294901760
      %v1358 = vsub.f32 %v1112, %v1357
      %v1359 = vand.u32 %v1358, 4294901760
      %v1360 = vsub.f32 %v1358, %v1359
      %v1361 = vand.u32 %v1360, 4294901760
      %1362 = vmatpush.msra.mxu0 %v1361
      %v1363 = vand.u32 %v1111, 4294901760
      %v1364 = vsub.f32 %v1111, %v1363
      %v1365 = vand.u32 %v1364, 4294901760
      %v1366 = vsub.f32 %v1364, %v1365
      %v1367 = vand.u32 %v1366, 4294901760
      %1368 = vmatpush.msra.mxu0 %v1367
      %v1369 = vand.u32 %v1110, 4294901760
      %v1370 = vsub.f32 %v1110, %v1369
      %v1371 = vand.u32 %v1370, 4294901760
      %v1372 = vsub.f32 %v1370, %v1371
      %v1373 = vand.u32 %v1372, 4294901760
      %1374 = vmatpush.msra.mxu0 %v1373
      %v1375 = vand.u32 %v1109, 4294901760
      %v1376 = vsub.f32 %v1109, %v1375
      %v1377 = vand.u32 %v1376, 4294901760
      %v1378 = vsub.f32 %v1376, %v1377
      %v1379 = vand.u32 %v1378, 4294901760
      %1380 = vmatpush.msra.mxu0 %v1379
      %v1381 = vand.u32 %v1108, 4294901760
      %v1382 = vsub.f32 %v1108, %v1381
      %v1383 = vand.u32 %v1382, 4294901760
      %v1384 = vsub.f32 %v1382, %v1383
      %v1385 = vand.u32 %v1384, 4294901760
      %1386 = vmatpush.msra.mxu0 %v1385
      %v1387 = vand.u32 %v1107, 4294901760
      %v1388 = vsub.f32 %v1107, %v1387
      %v1389 = vand.u32 %v1388, 4294901760
      %v1390 = vsub.f32 %v1388, %v1389
      %v1391 = vand.u32 %v1390, 4294901760
      %1392 = vmatpush.msra.mxu0 %v1391
      %v1393 = vand.u32 %v1106, 4294901760
      %v1394 = vsub.f32 %v1106, %v1393
      %v1395 = vand.u32 %v1394, 4294901760
      %v1396 = vsub.f32 %v1394, %v1395
      %v1397 = vand.u32 %v1396, 4294901760
      %1398 = vmatpush.msra.mxu0 %v1397
      %v1399 = vand.u32 %v1119, 4294901760
      %1400 = vmatmul.f32.gmra.mxu0 %v1399
      %v1401 = vpop.f32.mrf.mxu0
      %v1402 = vadd.f32 %v1201, %v1401
      %v1403 = vand.u32 %v1122, 4294901760
      %1404 = vmatmul.f32.gmra.mxu0 %v1403
      %v1405 = vpop.f32.mrf.mxu0
      %v1406 = vadd.f32 %v1209, %v1405
      %v1407 = vand.u32 %v1125, 4294901760
      %1408 = vmatmul.f32.gmra.mxu0 %v1407
      %v1409 = vpop.f32.mrf.mxu0
      %v1410 = vadd.f32 %v1217, %v1409
      %v1411 = vand.u32 %v1128, 4294901760
      %1412 = vmatmul.f32.gmra.mxu0 %v1411
      %v1413 = vpop.f32.mrf.mxu0
      %v1414 = vadd.f32 %v1225, %v1413
      %v1415 = vand.u32 %v1131, 4294901760
      %1416 = vmatmul.f32.gmra.mxu0 %v1415
      %v1417 = vpop.f32.mrf.mxu0
      %v1418 = vadd.f32 %v1233, %v1417
      %v1419 = vand.u32 %v1134, 4294901760
      %1420 = vmatmul.f32.gmra.mxu0 %v1419
      %v1421 = vpop.f32.mrf.mxu0
      %v1422 = vadd.f32 %v1241, %v1421
      %v1423 = vand.u32 %v1137, 4294901760
      %1424 = vmatmul.f32.gmra.mxu0 %v1423
      %v1425 = vpop.f32.mrf.mxu0
      %v1426 = vadd.f32 %v1249, %v1425
      %v1427 = vand.u32 %v1140, 4294901760
      %1428 = vmatmul.f32.gmra.mxu0 %v1427
      %v1429 = vpop.f32.mrf.mxu0
      %v1430 = vadd.f32 %v1257, %v1429
      %v1431 = vand.u32 %v1143, 4294901760
      %1432 = vmatmul.f32.gmra.mxu0 %v1431
      %v1433 = vpop.f32.mrf.mxu0
      %v1434 = vadd.f32 %v1265, %v1433
      %v1435 = vand.u32 %v1146, 4294901760
      %1436 = vmatmul.f32.gmra.mxu0 %v1435
      %v1437 = vpop.f32.mrf.mxu0
      %v1438 = vadd.f32 %v1273, %v1437
      %v1439 = vand.u32 %v1149, 4294901760
      %1440 = vmatmul.f32.gmra.mxu0 %v1439
      %v1441 = vpop.f32.mrf.mxu0
      %v1442 = vadd.f32 %v1281, %v1441
      %v1443 = vand.u32 %v1152, 4294901760
      %1444 = vmatmul.f32.gmra.mxu0 %v1443
      %v1445 = vpop.f32.mrf.mxu0
      %v1446 = vadd.f32 %v1289, %v1445
      %v1447 = vand.u32 %v1155, 4294901760
      %1448 = vmatmul.f32.gmra.mxu0 %v1447
      %v1449 = vpop.f32.mrf.mxu0
      %v1450 = vadd.f32 %v1297, %v1449
      %v1451 = vand.u32 %v1158, 4294901760
      %1452 = vmatmul.f32.gmra.mxu0 %v1451
      %v1453 = vpop.f32.mrf.mxu0
      %v1454 = vadd.f32 %v1305, %v1453
      %v1455 = vand.u32 %v1161, 4294901760
      %1456 = vmatmul.f32.gmra.mxu0 %v1455
      %v1457 = vpop.f32.mrf.mxu0
      %v1458 = vadd.f32 %v1313, %v1457
      %v1459 = vand.u32 %v1164, 4294901760
      %1460 = vmatmul.f32.gmra.mxu0 %v1459
      %v1461 = vpop.f32.mrf.mxu0
      %v1462 = vadd.f32 %v1321, %v1461
      %1463 = vdwg.mxu0
      %1464 = vmatpush.msra.mxu0 0.0
      %1465 = vmatpush.msra.mxu0 0.0
      %1466 = vmatpush.msra.mxu0 0.0
      %1467 = vmatpush.msra.mxu0 0.0
      %v1468 = vand.u32 %v1117, 4294901760
      %v1469 = vsub.f32 %v1117, %v1468
      %1470 = vmatpush.msra.mxu0 %v1469
      %v1471 = vand.u32 %v1116, 4294901760
      %v1472 = vsub.f32 %v1116, %v1471
      %1473 = vmatpush.msra.mxu0 %v1472
      %v1474 = vand.u32 %v1115, 4294901760
      %v1475 = vsub.f32 %v1115, %v1474
      %1476 = vmatpush.msra.mxu0 %v1475
      %v1477 = vand.u32 %v1114, 4294901760
      %v1478 = vsub.f32 %v1114, %v1477
      %1479 = vmatpush.msra.mxu0 %v1478
      %v1480 = vand.u32 %v1113, 4294901760
      %v1481 = vsub.f32 %v1113, %v1480
      %1482 = vmatpush.msra.mxu0 %v1481
      %v1483 = vand.u32 %v1112, 4294901760
      %v1484 = vsub.f32 %v1112, %v1483
      %1485 = vmatpush.msra.mxu0 %v1484
      %v1486 = vand.u32 %v1111, 4294901760
      %v1487 = vsub.f32 %v1111, %v1486
      %1488 = vmatpush.msra.mxu0 %v1487
      %v1489 = vand.u32 %v1110, 4294901760
      %v1490 = vsub.f32 %v1110, %v1489
      %1491 = vmatpush.msra.mxu0 %v1490
      %v1492 = vand.u32 %v1109, 4294901760
      %v1493 = vsub.f32 %v1109, %v1492
      %1494 = vmatpush.msra.mxu0 %v1493
      %v1495 = vand.u32 %v1108, 4294901760
      %v1496 = vsub.f32 %v1108, %v1495
      %1497 = vmatpush.msra.mxu0 %v1496
      %v1498 = vand.u32 %v1107, 4294901760
      %v1499 = vsub.f32 %v1107, %v1498
      %1500 = vmatpush.msra.mxu0 %v1499
      %v1501 = vand.u32 %v1106, 4294901760
      %v1502 = vsub.f32 %v1106, %v1501
      %1503 = vmatpush.msra.mxu0 %v1502
      %v1504 = vand.u32 %v1119, 4294901760
      %v1505 = vsub.f32 %v1119, %v1504
      %1506 = vmatmul.f32.gmra.mxu0 %v1505
      %v1507 = vpop.f32.mrf.mxu0
      %v1508 = vadd.f32 %v1402, %v1507
      %v1509 = vand.u32 %v1122, 4294901760
      %v1510 = vsub.f32 %v1122, %v1509
      %1511 = vmatmul.f32.gmra.mxu0 %v1510
      %v1512 = vpop.f32.mrf.mxu0
      %v1513 = vadd.f32 %v1406, %v1512
      %v1514 = vand.u32 %v1125, 4294901760
      %v1515 = vsub.f32 %v1125, %v1514
      %1516 = vmatmul.f32.gmra.mxu0 %v1515
      %v1517 = vpop.f32.mrf.mxu0
      %v1518 = vadd.f32 %v1410, %v1517
      %v1519 = vand.u32 %v1128, 4294901760
      %v1520 = vsub.f32 %v1128, %v1519
      %1521 = vmatmul.f32.gmra.mxu0 %v1520
      %v1522 = vpop.f32.mrf.mxu0
      %v1523 = vadd.f32 %v1414, %v1522
      %v1524 = vand.u32 %v1131, 4294901760
      %v1525 = vsub.f32 %v1131, %v1524
      %1526 = vmatmul.f32.gmra.mxu0 %v1525
      %v1527 = vpop.f32.mrf.mxu0
      %v1528 = vadd.f32 %v1418, %v1527
      %v1529 = vand.u32 %v1134, 4294901760
      %v1530 = vsub.f32 %v1134, %v1529
      %1531 = vmatmul.f32.gmra.mxu0 %v1530
      %v1532 = vpop.f32.mrf.mxu0
      %v1533 = vadd.f32 %v1422, %v1532
      %v1534 = vand.u32 %v1137, 4294901760
      %v1535 = vsub.f32 %v1137, %v1534
      %1536 = vmatmul.f32.gmra.mxu0 %v1535
      %v1537 = vpop.f32.mrf.mxu0
      %v1538 = vadd.f32 %v1426, %v1537
      %v1539 = vand.u32 %v1140, 4294901760
      %v1540 = vsub.f32 %v1140, %v1539
      %1541 = vmatmul.f32.gmra.mxu0 %v1540
      %v1542 = vpop.f32.mrf.mxu0
      %v1543 = vadd.f32 %v1430, %v1542
      %v1544 = vand.u32 %v1143, 4294901760
      %v1545 = vsub.f32 %v1143, %v1544
      %1546 = vmatmul.f32.gmra.mxu0 %v1545
      %v1547 = vpop.f32.mrf.mxu0
      %v1548 = vadd.f32 %v1434, %v1547
      %v1549 = vand.u32 %v1146, 4294901760
      %v1550 = vsub.f32 %v1146, %v1549
      %1551 = vmatmul.f32.gmra.mxu0 %v1550
      %v1552 = vpop.f32.mrf.mxu0
      %v1553 = vadd.f32 %v1438, %v1552
      %v1554 = vand.u32 %v1149, 4294901760
      %v1555 = vsub.f32 %v1149, %v1554
      %1556 = vmatmul.f32.gmra.mxu0 %v1555
      %v1557 = vpop.f32.mrf.mxu0
      %v1558 = vadd.f32 %v1442, %v1557
      %v1559 = vand.u32 %v1152, 4294901760
      %v1560 = vsub.f32 %v1152, %v1559
      %1561 = vmatmul.f32.gmra.mxu0 %v1560
      %v1562 = vpop.f32.mrf.mxu0
      %v1563 = vadd.f32 %v1446, %v1562
      %v1564 = vand.u32 %v1155, 4294901760
      %v1565 = vsub.f32 %v1155, %v1564
      %1566 = vmatmul.f32.gmra.mxu0 %v1565
      %v1567 = vpop.f32.mrf.mxu0
      %v1568 = vadd.f32 %v1450, %v1567
      %v1569 = vand.u32 %v1158, 4294901760
      %v1570 = vsub.f32 %v1158, %v1569
      %1571 = vmatmul.f32.gmra.mxu0 %v1570
      %v1572 = vpop.f32.mrf.mxu0
      %v1573 = vadd.f32 %v1454, %v1572
      %v1574 = vand.u32 %v1161, 4294901760
      %v1575 = vsub.f32 %v1161, %v1574
      %1576 = vmatmul.f32.gmra.mxu0 %v1575
      %v1577 = vpop.f32.mrf.mxu0
      %v1578 = vadd.f32 %v1458, %v1577
      %v1579 = vand.u32 %v1164, 4294901760
      %v1580 = vsub.f32 %v1164, %v1579
      %1581 = vmatmul.f32.gmra.mxu0 %v1580
      %v1582 = vpop.f32.mrf.mxu0
      %v1583 = vadd.f32 %v1462, %v1582
      %1584 = vdwg.mxu0
      %1585 = vmatpush.msra.mxu0 0.0
      %1586 = vmatpush.msra.mxu0 0.0
      %1587 = vmatpush.msra.mxu0 0.0
      %1588 = vmatpush.msra.mxu0 0.0
      %v1589 = vand.u32 %v1117, 4294901760
      %1590 = vmatpush.msra.mxu0 %v1589
      %v1591 = vand.u32 %v1116, 4294901760
      %1592 = vmatpush.msra.mxu0 %v1591
      %v1593 = vand.u32 %v1115, 4294901760
      %1594 = vmatpush.msra.mxu0 %v1593
      %v1595 = vand.u32 %v1114, 4294901760
      %1596 = vmatpush.msra.mxu0 %v1595
      %v1597 = vand.u32 %v1113, 4294901760
      %1598 = vmatpush.msra.mxu0 %v1597
      %v1599 = vand.u32 %v1112, 4294901760
      %1600 = vmatpush.msra.mxu0 %v1599
      %v1601 = vand.u32 %v1111, 4294901760
      %1602 = vmatpush.msra.mxu0 %v1601
      %v1603 = vand.u32 %v1110, 4294901760
      %1604 = vmatpush.msra.mxu0 %v1603
      %v1605 = vand.u32 %v1109, 4294901760
      %1606 = vmatpush.msra.mxu0 %v1605
      %v1607 = vand.u32 %v1108, 4294901760
      %1608 = vmatpush.msra.mxu0 %v1607
      %v1609 = vand.u32 %v1107, 4294901760
      %1610 = vmatpush.msra.mxu0 %v1609
      %v1611 = vand.u32 %v1106, 4294901760
      %1612 = vmatpush.msra.mxu0 %v1611
      %v1613 = vand.u32 %v1119, 4294901760
      %v1614 = vsub.f32 %v1119, %v1613
      %v1615 = vand.u32 %v1614, 4294901760
      %1616 = vmatmul.f32.gmra.mxu0 %v1615
      %v1617 = vpop.f32.mrf.mxu0
      %v1618 = vadd.f32 %v1508, %v1617
      %v1619 = vand.u32 %v1122, 4294901760
      %v1620 = vsub.f32 %v1122, %v1619
      %v1621 = vand.u32 %v1620, 4294901760
      %1622 = vmatmul.f32.gmra.mxu0 %v1621
      %v1623 = vpop.f32.mrf.mxu0
      %v1624 = vadd.f32 %v1513, %v1623
      %v1625 = vand.u32 %v1125, 4294901760
      %v1626 = vsub.f32 %v1125, %v1625
      %v1627 = vand.u32 %v1626, 4294901760
      %1628 = vmatmul.f32.gmra.mxu0 %v1627
      %v1629 = vpop.f32.mrf.mxu0
      %v1630 = vadd.f32 %v1518, %v1629
      %v1631 = vand.u32 %v1128, 4294901760
      %v1632 = vsub.f32 %v1128, %v1631
      %v1633 = vand.u32 %v1632, 4294901760
      %1634 = vmatmul.f32.gmra.mxu0 %v1633
      %v1635 = vpop.f32.mrf.mxu0
      %v1636 = vadd.f32 %v1523, %v1635
      %v1637 = vand.u32 %v1131, 4294901760
      %v1638 = vsub.f32 %v1131, %v1637
      %v1639 = vand.u32 %v1638, 4294901760
      %1640 = vmatmul.f32.gmra.mxu0 %v1639
      %v1641 = vpop.f32.mrf.mxu0
      %v1642 = vadd.f32 %v1528, %v1641
      %v1643 = vand.u32 %v1134, 4294901760
      %v1644 = vsub.f32 %v1134, %v1643
      %v1645 = vand.u32 %v1644, 4294901760
      %1646 = vmatmul.f32.gmra.mxu0 %v1645
      %v1647 = vpop.f32.mrf.mxu0
      %v1648 = vadd.f32 %v1533, %v1647
      %v1649 = vand.u32 %v1137, 4294901760
      %v1650 = vsub.f32 %v1137, %v1649
      %v1651 = vand.u32 %v1650, 4294901760
      %1652 = vmatmul.f32.gmra.mxu0 %v1651
      %v1653 = vpop.f32.mrf.mxu0
      %v1654 = vadd.f32 %v1538, %v1653
      %v1655 = vand.u32 %v1140, 4294901760
      %v1656 = vsub.f32 %v1140, %v1655
      %v1657 = vand.u32 %v1656, 4294901760
      %1658 = vmatmul.f32.gmra.mxu0 %v1657
      %v1659 = vpop.f32.mrf.mxu0
      %v1660 = vadd.f32 %v1543, %v1659
      %v1661 = vand.u32 %v1143, 4294901760
      %v1662 = vsub.f32 %v1143, %v1661
      %v1663 = vand.u32 %v1662, 4294901760
      %1664 = vmatmul.f32.gmra.mxu0 %v1663
      %v1665 = vpop.f32.mrf.mxu0
      %v1666 = vadd.f32 %v1548, %v1665
      %v1667 = vand.u32 %v1146, 4294901760
      %v1668 = vsub.f32 %v1146, %v1667
      %v1669 = vand.u32 %v1668, 4294901760
      %1670 = vmatmul.f32.gmra.mxu0 %v1669
      %v1671 = vpop.f32.mrf.mxu0
      %v1672 = vadd.f32 %v1553, %v1671
      %v1673 = vand.u32 %v1149, 4294901760
      %v1674 = vsub.f32 %v1149, %v1673
      %v1675 = vand.u32 %v1674, 4294901760
      %1676 = vmatmul.f32.gmra.mxu0 %v1675
      %v1677 = vpop.f32.mrf.mxu0
      %v1678 = vadd.f32 %v1558, %v1677
      %v1679 = vand.u32 %v1152, 4294901760
      %v1680 = vsub.f32 %v1152, %v1679
      %v1681 = vand.u32 %v1680, 4294901760
      %1682 = vmatmul.f32.gmra.mxu0 %v1681
      %v1683 = vpop.f32.mrf.mxu0
      %v1684 = vadd.f32 %v1563, %v1683
      %v1685 = vand.u32 %v1155, 4294901760
      %v1686 = vsub.f32 %v1155, %v1685
      %v1687 = vand.u32 %v1686, 4294901760
      %1688 = vmatmul.f32.gmra.mxu0 %v1687
      %v1689 = vpop.f32.mrf.mxu0
      %v1690 = vadd.f32 %v1568, %v1689
      %v1691 = vand.u32 %v1158, 4294901760
      %v1692 = vsub.f32 %v1158, %v1691
      %v1693 = vand.u32 %v1692, 4294901760
      %1694 = vmatmul.f32.gmra.mxu0 %v1693
      %v1695 = vpop.f32.mrf.mxu0
      %v1696 = vadd.f32 %v1573, %v1695
      %v1697 = vand.u32 %v1161, 4294901760
      %v1698 = vsub.f32 %v1161, %v1697
      %v1699 = vand.u32 %v1698, 4294901760
      %1700 = vmatmul.f32.gmra.mxu0 %v1699
      %v1701 = vpop.f32.mrf.mxu0
      %v1702 = vadd.f32 %v1578, %v1701
      %v1703 = vand.u32 %v1164, 4294901760
      %v1704 = vsub.f32 %v1164, %v1703
      %v1705 = vand.u32 %v1704, 4294901760
      %1706 = vmatmul.f32.gmra.mxu0 %v1705
      %v1707 = vpop.f32.mrf.mxu0
      %v1708 = vadd.f32 %v1583, %v1707
      %1709 = vdwg.mxu0
      %1710 = vmatpush.msra.mxu0 0.0
      %1711 = vmatpush.msra.mxu0 0.0
      %1712 = vmatpush.msra.mxu0 0.0
      %1713 = vmatpush.msra.mxu0 0.0
      %v1714 = vand.u32 %v1117, 4294901760
      %v1715 = vsub.f32 %v1117, %v1714
      %v1716 = vand.u32 %v1715, 4294901760
      %1717 = vmatpush.msra.mxu0 %v1716
      %v1718 = vand.u32 %v1116, 4294901760
      %v1719 = vsub.f32 %v1116, %v1718
      %v1720 = vand.u32 %v1719, 4294901760
      %1721 = vmatpush.msra.mxu0 %v1720
      %v1722 = vand.u32 %v1115, 4294901760
      %v1723 = vsub.f32 %v1115, %v1722
      %v1724 = vand.u32 %v1723, 4294901760
      %1725 = vmatpush.msra.mxu0 %v1724
      %v1726 = vand.u32 %v1114, 4294901760
      %v1727 = vsub.f32 %v1114, %v1726
      %v1728 = vand.u32 %v1727, 4294901760
      %1729 = vmatpush.msra.mxu0 %v1728
      %v1730 = vand.u32 %v1113, 4294901760
      %v1731 = vsub.f32 %v1113, %v1730
      %v1732 = vand.u32 %v1731, 4294901760
      %1733 = vmatpush.msra.mxu0 %v1732
      %v1734 = vand.u32 %v1112, 4294901760
      %v1735 = vsub.f32 %v1112, %v1734
      %v1736 = vand.u32 %v1735, 4294901760
      %1737 = vmatpush.msra.mxu0 %v1736
      %v1738 = vand.u32 %v1111, 4294901760
      %v1739 = vsub.f32 %v1111, %v1738
      %v1740 = vand.u32 %v1739, 4294901760
      %1741 = vmatpush.msra.mxu0 %v1740
      %v1742 = vand.u32 %v1110, 4294901760
      %v1743 = vsub.f32 %v1110, %v1742
      %v1744 = vand.u32 %v1743, 4294901760
      %1745 = vmatpush.msra.mxu0 %v1744
      %v1746 = vand.u32 %v1109, 4294901760
      %v1747 = vsub.f32 %v1109, %v1746
      %v1748 = vand.u32 %v1747, 4294901760
      %1749 = vmatpush.msra.mxu0 %v1748
      %v1750 = vand.u32 %v1108, 4294901760
      %v1751 = vsub.f32 %v1108, %v1750
      %v1752 = vand.u32 %v1751, 4294901760
      %1753 = vmatpush.msra.mxu0 %v1752
      %v1754 = vand.u32 %v1107, 4294901760
      %v1755 = vsub.f32 %v1107, %v1754
      %v1756 = vand.u32 %v1755, 4294901760
      %1757 = vmatpush.msra.mxu0 %v1756
      %v1758 = vand.u32 %v1106, 4294901760
      %v1759 = vsub.f32 %v1106, %v1758
      %v1760 = vand.u32 %v1759, 4294901760
      %1761 = vmatpush.msra.mxu0 %v1760
      %v1762 = vand.u32 %v1119, 4294901760
      %1763 = vmatmul.f32.gmra.mxu0 %v1762
      %v1764 = vpop.f32.mrf.mxu0
      %v1765 = vadd.f32 %v1618, %v1764
      %v1766 = vand.u32 %v1122, 4294901760
      %1767 = vmatmul.f32.gmra.mxu0 %v1766
      %v1768 = vpop.f32.mrf.mxu0
      %v1769 = vadd.f32 %v1624, %v1768
      %v1770 = vand.u32 %v1125, 4294901760
      %1771 = vmatmul.f32.gmra.mxu0 %v1770
      %v1772 = vpop.f32.mrf.mxu0
      %v1773 = vadd.f32 %v1630, %v1772
      %v1774 = vand.u32 %v1128, 4294901760
      %1775 = vmatmul.f32.gmra.mxu0 %v1774
      %v1776 = vpop.f32.mrf.mxu0
      %v1777 = vadd.f32 %v1636, %v1776
      %v1778 = vand.u32 %v1131, 4294901760
      %1779 = vmatmul.f32.gmra.mxu0 %v1778
      %v1780 = vpop.f32.mrf.mxu0
      %v1781 = vadd.f32 %v1642, %v1780
      %v1782 = vand.u32 %v1134, 4294901760
      %1783 = vmatmul.f32.gmra.mxu0 %v1782
      %v1784 = vpop.f32.mrf.mxu0
      %v1785 = vadd.f32 %v1648, %v1784
      %v1786 = vand.u32 %v1137, 4294901760
      %1787 = vmatmul.f32.gmra.mxu0 %v1786
      %v1788 = vpop.f32.mrf.mxu0
      %v1789 = vadd.f32 %v1654, %v1788
      %v1790 = vand.u32 %v1140, 4294901760
      %1791 = vmatmul.f32.gmra.mxu0 %v1790
      %v1792 = vpop.f32.mrf.mxu0
      %v1793 = vadd.f32 %v1660, %v1792
      %v1794 = vand.u32 %v1143, 4294901760
      %1795 = vmatmul.f32.gmra.mxu0 %v1794
      %v1796 = vpop.f32.mrf.mxu0
      %v1797 = vadd.f32 %v1666, %v1796
      %v1798 = vand.u32 %v1146, 4294901760
      %1799 = vmatmul.f32.gmra.mxu0 %v1798
      %v1800 = vpop.f32.mrf.mxu0
      %v1801 = vadd.f32 %v1672, %v1800
      %v1802 = vand.u32 %v1149, 4294901760
      %1803 = vmatmul.f32.gmra.mxu0 %v1802
      %v1804 = vpop.f32.mrf.mxu0
      %v1805 = vadd.f32 %v1678, %v1804
      %v1806 = vand.u32 %v1152, 4294901760
      %1807 = vmatmul.f32.gmra.mxu0 %v1806
      %v1808 = vpop.f32.mrf.mxu0
      %v1809 = vadd.f32 %v1684, %v1808
      %v1810 = vand.u32 %v1155, 4294901760
      %1811 = vmatmul.f32.gmra.mxu0 %v1810
      %v1812 = vpop.f32.mrf.mxu0
      %v1813 = vadd.f32 %v1690, %v1812
      %v1814 = vand.u32 %v1158, 4294901760
      %1815 = vmatmul.f32.gmra.mxu0 %v1814
      %v1816 = vpop.f32.mrf.mxu0
      %v1817 = vadd.f32 %v1696, %v1816
      %v1818 = vand.u32 %v1161, 4294901760
      %1819 = vmatmul.f32.gmra.mxu0 %v1818
      %v1820 = vpop.f32.mrf.mxu0
      %v1821 = vadd.f32 %v1702, %v1820
      %v1822 = vand.u32 %v1164, 4294901760
      %1823 = vmatmul.f32.gmra.mxu0 %v1822
      %v1824 = vpop.f32.mrf.mxu0
      %v1825 = vadd.f32 %v1708, %v1824
      %1826 = vdwg.mxu0
      %1827 = vmatpush.msra.mxu0 0.0
      %1828 = vmatpush.msra.mxu0 0.0
      %1829 = vmatpush.msra.mxu0 0.0
      %1830 = vmatpush.msra.mxu0 0.0
      %v1831 = vand.u32 %v1117, 4294901760
      %1832 = vmatpush.msra.mxu0 %v1831
      %v1833 = vand.u32 %v1116, 4294901760
      %1834 = vmatpush.msra.mxu0 %v1833
      %v1835 = vand.u32 %v1115, 4294901760
      %1836 = vmatpush.msra.mxu0 %v1835
      %v1837 = vand.u32 %v1114, 4294901760
      %1838 = vmatpush.msra.mxu0 %v1837
      %v1839 = vand.u32 %v1113, 4294901760
      %1840 = vmatpush.msra.mxu0 %v1839
      %v1841 = vand.u32 %v1112, 4294901760
      %1842 = vmatpush.msra.mxu0 %v1841
      %v1843 = vand.u32 %v1111, 4294901760
      %1844 = vmatpush.msra.mxu0 %v1843
      %v1845 = vand.u32 %v1110, 4294901760
      %1846 = vmatpush.msra.mxu0 %v1845
      %v1847 = vand.u32 %v1109, 4294901760
      %1848 = vmatpush.msra.mxu0 %v1847
      %v1849 = vand.u32 %v1108, 4294901760
      %1850 = vmatpush.msra.mxu0 %v1849
      %v1851 = vand.u32 %v1107, 4294901760
      %1852 = vmatpush.msra.mxu0 %v1851
      %v1853 = vand.u32 %v1106, 4294901760
      %1854 = vmatpush.msra.mxu0 %v1853
      %v1855 = vand.u32 %v1119, 4294901760
      %1856 = vmatmul.f32.gmra.mxu0 %v1855
      %v1857 = vpop.f32.mrf.mxu0
      %v1858 = vadd.f32 %v1765, %v1857
      %v1859 = vand.u32 %v1122, 4294901760
      %1860 = vmatmul.f32.gmra.mxu0 %v1859
      %v1861 = vpop.f32.mrf.mxu0
      %v1862 = vadd.f32 %v1769, %v1861
      %v1863 = vand.u32 %v1125, 4294901760
      %1864 = vmatmul.f32.gmra.mxu0 %v1863
      %v1865 = vpop.f32.mrf.mxu0
      %v1866 = vadd.f32 %v1773, %v1865
      %v1867 = vand.u32 %v1128, 4294901760
      %1868 = vmatmul.f32.gmra.mxu0 %v1867
      %v1869 = vpop.f32.mrf.mxu0
      %v1870 = vadd.f32 %v1777, %v1869
      %v1871 = vand.u32 %v1131, 4294901760
      %1872 = vmatmul.f32.gmra.mxu0 %v1871
      %v1873 = vpop.f32.mrf.mxu0
      %v1874 = vadd.f32 %v1781, %v1873
      %v1875 = vand.u32 %v1134, 4294901760
      %1876 = vmatmul.f32.gmra.mxu0 %v1875
      %v1877 = vpop.f32.mrf.mxu0
      %v1878 = vadd.f32 %v1785, %v1877
      %v1879 = vand.u32 %v1137, 4294901760
      %1880 = vmatmul.f32.gmra.mxu0 %v1879
      %v1881 = vpop.f32.mrf.mxu0
      %v1882 = vadd.f32 %v1789, %v1881
      %v1883 = vand.u32 %v1140, 4294901760
      %1884 = vmatmul.f32.gmra.mxu0 %v1883
      %v1885 = vpop.f32.mrf.mxu0
      %v1886 = vadd.f32 %v1793, %v1885
      %v1887 = vand.u32 %v1143, 4294901760
      %1888 = vmatmul.f32.gmra.mxu0 %v1887
      %v1889 = vpop.f32.mrf.mxu0
      %v1890 = vadd.f32 %v1797, %v1889
      %v1891 = vand.u32 %v1146, 4294901760
      %1892 = vmatmul.f32.gmra.mxu0 %v1891
      %v1893 = vpop.f32.mrf.mxu0
      %v1894 = vadd.f32 %v1801, %v1893
      %v1895 = vand.u32 %v1149, 4294901760
      %1896 = vmatmul.f32.gmra.mxu0 %v1895
      %v1897 = vpop.f32.mrf.mxu0
      %v1898 = vadd.f32 %v1805, %v1897
      %v1899 = vand.u32 %v1152, 4294901760
      %1900 = vmatmul.f32.gmra.mxu0 %v1899
      %v1901 = vpop.f32.mrf.mxu0
      %v1902 = vadd.f32 %v1809, %v1901
      %v1903 = vand.u32 %v1155, 4294901760
      %1904 = vmatmul.f32.gmra.mxu0 %v1903
      %v1905 = vpop.f32.mrf.mxu0
      %v1906 = vadd.f32 %v1813, %v1905
      %v1907 = vand.u32 %v1158, 4294901760
      %1908 = vmatmul.f32.gmra.mxu0 %v1907
      %v1909 = vpop.f32.mrf.mxu0
      %v1910 = vadd.f32 %v1817, %v1909
      %v1911 = vand.u32 %v1161, 4294901760
      %1912 = vmatmul.f32.gmra.mxu0 %v1911
      %v1913 = vpop.f32.mrf.mxu0
      %v1914 = vadd.f32 %v1821, %v1913
      %v1915 = vand.u32 %v1164, 4294901760
      %1916 = vmatmul.f32.gmra.mxu0 %v1915
      %v1917 = vpop.f32.mrf.mxu0
      %v1918 = vadd.f32 %v1825, %v1917
      %1919 = vdwg.mxu0
      %vm1920 = vcmask 23552
      %v1921 = vsel %vm1920, %v1858, -inf
      %1922 = vmax.xlane.f32.xlu0 %v1921
      %v1923 = vpop.xlane.xlu0 %1922
      %v1924 = vsel %vm1920, %v1862, -inf
      %1925 = vmax.xlane.f32.xlu0 %v1924
      %v1926 = vpop.xlane.xlu0 %1925
      %v1927 = vsel %vm1920, %v1866, -inf
      %1928 = vmax.xlane.f32.xlu0 %v1927
      %v1929 = vpop.xlane.xlu0 %1928
      %v1930 = vsel %vm1920, %v1870, -inf
      %1931 = vmax.xlane.f32.xlu0 %v1930
      %v1932 = vpop.xlane.xlu0 %1931
      %v1933 = vsel %vm1920, %v1874, -inf
      %1934 = vmax.xlane.f32.xlu0 %v1933
      %v1935 = vpop.xlane.xlu0 %1934
      %v1936 = vsel %vm1920, %v1878, -inf
      %1937 = vmax.xlane.f32.xlu0 %v1936
      %v1938 = vpop.xlane.xlu0 %1937
      %v1939 = vsel %vm1920, %v1882, -inf
      %1940 = vmax.xlane.f32.xlu0 %v1939
      %v1941 = vpop.xlane.xlu0 %1940
      %v1942 = vsel %vm1920, %v1886, -inf
      %1943 = vmax.xlane.f32.xlu0 %v1942
      %v1944 = vpop.xlane.xlu0 %1943
      %v1945 = vsel %vm1920, %v1890, -inf
      %1946 = vmax.xlane.f32.xlu0 %v1945
      %v1947 = vpop.xlane.xlu0 %1946
      %v1948 = vsel %vm1920, %v1894, -inf
      %1949 = vmax.xlane.f32.xlu0 %v1948
      %v1950 = vpop.xlane.xlu0 %1949
      %v1951 = vsel %vm1920, %v1898, -inf
      %1952 = vmax.xlane.f32.xlu0 %v1951
      %v1953 = vpop.xlane.xlu0 %1952
      %v1954 = vsel %vm1920, %v1902, -inf
      %1955 = vmax.xlane.f32.xlu0 %v1954
      %v1956 = vpop.xlane.xlu0 %1955
      %v1957 = vsel %vm1920, %v1906, -inf
      %1958 = vmax.xlane.f32.xlu0 %v1957
      %v1959 = vpop.xlane.xlu0 %1958
      %v1960 = vsel %vm1920, %v1910, -inf
      %1961 = vmax.xlane.f32.xlu0 %v1960
      %v1962 = vpop.xlane.xlu0 %1961
      %v1963 = vsel %vm1920, %v1914, -inf
      %1964 = vmax.xlane.f32.xlu0 %v1963
      %v1965 = vpop.xlane.xlu0 %1964
      %v1966 = vsel %vm1920, %v1918, -inf
      %1967 = vmax.xlane.f32.xlu0 %v1966
      %v1968 = vpop.xlane.xlu0 %1967
      %v1969 = vsub.f32 %v1858, %v1923
      %v1970 = vsub.f32 %v1862, %v1926
      %v1971 = vsub.f32 %v1866, %v1929
      %v1972 = vsub.f32 %v1870, %v1932
      %v1973 = vsub.f32 %v1874, %v1935
      %v1974 = vsub.f32 %v1878, %v1938
      %v1975 = vsub.f32 %v1882, %v1941
      %v1976 = vsub.f32 %v1886, %v1944
      %v1977 = vsub.f32 %v1890, %v1947
      %v1978 = vsub.f32 %v1894, %v1950
      %v1979 = vsub.f32 %v1898, %v1953
      %v1980 = vsub.f32 %v1902, %v1956
      %v1981 = vsub.f32 %v1906, %v1959
      %v1982 = vsub.f32 %v1910, %v1962
      %v1983 = vsub.f32 %v1914, %v1965
      %v1984 = vsub.f32 %v1918, %v1968
      %v1985 = vmul.f32 %v1969, 1.442695
      %v1986 = vpow.pop %v1985
      %v1987 = vmul.f32 %v1970, 1.442695
      %v1988 = vpow.pop %v1987
      %v1989 = vmul.f32 %v1971, 1.442695
      %v1990 = vpow.pop %v1989
      %v1991 = vmul.f32 %v1972, 1.442695
      %v1992 = vpow.pop %v1991
      %v1993 = vmul.f32 %v1973, 1.442695
      %v1994 = vpow.pop %v1993
      %v1995 = vmul.f32 %v1974, 1.442695
      %v1996 = vpow.pop %v1995
      %v1997 = vmul.f32 %v1975, 1.442695
      %v1998 = vpow.pop %v1997
      %v1999 = vmul.f32 %v1976, 1.442695
      %v2000 = vpow.pop %v1999
      %v2001 = vmul.f32 %v1977, 1.442695
      %v2002 = vpow.pop %v2001
      %v2003 = vmul.f32 %v1978, 1.442695
      %v2004 = vpow.pop %v2003
      %v2005 = vmul.f32 %v1979, 1.442695
      %v2006 = vpow.pop %v2005
      %v2007 = vmul.f32 %v1980, 1.442695
      %v2008 = vpow.pop %v2007
      %v2009 = vmul.f32 %v1981, 1.442695
      %v2010 = vpow.pop %v2009
      %v2011 = vmul.f32 %v1982, 1.442695
      %v2012 = vpow.pop %v2011
      %v2013 = vmul.f32 %v1983, 1.442695
      %v2014 = vpow.pop %v2013
      %v2015 = vmul.f32 %v1984, 1.442695
      %v2016 = vpow.pop %v2015
      %v2017 = vsel %vm1920, %v1986, 0.0
      %2018 = vadd.xlane.f32.xlu0 %v2017
      %v2019 = vpop.xlane.xlu0 %2018
      %v2020 = vsel %vm1920, %v1988, 0.0
      %2021 = vadd.xlane.f32.xlu0 %v2020
      %v2022 = vpop.xlane.xlu0 %2021
      %v2023 = vsel %vm1920, %v1990, 0.0
      %2024 = vadd.xlane.f32.xlu0 %v2023
      %v2025 = vpop.xlane.xlu0 %2024
      %v2026 = vsel %vm1920, %v1992, 0.0
      %2027 = vadd.xlane.f32.xlu0 %v2026
      %v2028 = vpop.xlane.xlu0 %2027
      %v2029 = vsel %vm1920, %v1994, 0.0
      %2030 = vadd.xlane.f32.xlu0 %v2029
      %v2031 = vpop.xlane.xlu0 %2030
      %v2032 = vsel %vm1920, %v1996, 0.0
      %2033 = vadd.xlane.f32.xlu0 %v2032
      %v2034 = vpop.xlane.xlu0 %2033
      %v2035 = vsel %vm1920, %v1998, 0.0
      %2036 = vadd.xlane.f32.xlu0 %v2035
      %v2037 = vpop.xlane.xlu0 %2036
      %v2038 = vsel %vm1920, %v2000, 0.0
      %2039 = vadd.xlane.f32.xlu0 %v2038
      %v2040 = vpop.xlane.xlu0 %2039
      %v2041 = vsel %vm1920, %v2002, 0.0
      %2042 = vadd.xlane.f32.xlu0 %v2041
      %v2043 = vpop.xlane.xlu0 %2042
      %v2044 = vsel %vm1920, %v2004, 0.0
      %2045 = vadd.xlane.f32.xlu0 %v2044
      %v2046 = vpop.xlane.xlu0 %2045
      %v2047 = vsel %vm1920, %v2006, 0.0
      %2048 = vadd.xlane.f32.xlu0 %v2047
      %v2049 = vpop.xlane.xlu0 %2048
      %v2050 = vsel %vm1920, %v2008, 0.0
      %2051 = vadd.xlane.f32.xlu0 %v2050
      %v2052 = vpop.xlane.xlu0 %2051
      %v2053 = vsel %vm1920, %v2010, 0.0
      %2054 = vadd.xlane.f32.xlu0 %v2053
      %v2055 = vpop.xlane.xlu0 %2054
      %v2056 = vsel %vm1920, %v2012, 0.0
      %2057 = vadd.xlane.f32.xlu0 %v2056
      %v2058 = vpop.xlane.xlu0 %2057
      %v2059 = vsel %vm1920, %v2014, 0.0
      %2060 = vadd.xlane.f32.xlu0 %v2059
      %v2061 = vpop.xlane.xlu0 %2060
      %v2062 = vsel %vm1920, %v2016, 0.0
      %2063 = vadd.xlane.f32.xlu0 %v2062
      %v2064 = vpop.xlane.xlu0 %2063
      %v2065 = vrcp.pop %v2019
      %v2066 = vmul.f32 %v2019, %v2065
      %v2067 = vsub.f32 1.0, %v2066
      %v2068 = vmul.f32 %v2065, %v2067
      %v2069 = vadd.f32 %v2065, %v2068
      %vm2070 = vweird.f32 %v2019
      %vm2071 = vweird.f32 %v2065
      %vm2072 = vmor %vm2070, %vm2071
      %v2073 = vsel %vm2072, %v2065, %v2069
      %v2074 = vand.u32 2147483647, %v2019
      %vm2075 = vcmp.eq.f32.partialorder %v2074, 8.507059e+37
      %v2076 = vand.u32 %v2019, 2147483648
      %v2077 = vor.u32 1.1754944e-38, %v2076
      %v2078 = vsel %vm2075, %v2077, %v2073
      %v2079 = vmul.f32 %v1986, %v2078
      %v2080 = vrcp.pop %v2022
      %v2081 = vmul.f32 %v2022, %v2080
      %v2082 = vsub.f32 1.0, %v2081
      %v2083 = vmul.f32 %v2080, %v2082
      %v2084 = vadd.f32 %v2080, %v2083
      %vm2085 = vweird.f32 %v2022
      %vm2086 = vweird.f32 %v2080
      %vm2087 = vmor %vm2085, %vm2086
      %v2088 = vsel %vm2087, %v2080, %v2084
      %v2089 = vand.u32 2147483647, %v2022
      %vm2090 = vcmp.eq.f32.partialorder %v2089, 8.507059e+37
      %v2091 = vand.u32 %v2022, 2147483648
      %v2092 = vor.u32 1.1754944e-38, %v2091
      %v2093 = vsel %vm2090, %v2092, %v2088
      %v2094 = vmul.f32 %v1988, %v2093
      %v2095 = vrcp.pop %v2025
      %v2096 = vmul.f32 %v2025, %v2095
      %v2097 = vsub.f32 1.0, %v2096
      %v2098 = vmul.f32 %v2095, %v2097
      %v2099 = vadd.f32 %v2095, %v2098
      %vm2100 = vweird.f32 %v2025
      %vm2101 = vweird.f32 %v2095
      %vm2102 = vmor %vm2100, %vm2101
      %v2103 = vsel %vm2102, %v2095, %v2099
      %v2104 = vand.u32 2147483647, %v2025
      %vm2105 = vcmp.eq.f32.partialorder %v2104, 8.507059e+37
      %v2106 = vand.u32 %v2025, 2147483648
      %v2107 = vor.u32 1.1754944e-38, %v2106
      %v2108 = vsel %vm2105, %v2107, %v2103
      %v2109 = vmul.f32 %v1990, %v2108
      %v2110 = vrcp.pop %v2028
      %v2111 = vmul.f32 %v2028, %v2110
      %v2112 = vsub.f32 1.0, %v2111
      %v2113 = vmul.f32 %v2110, %v2112
      %v2114 = vadd.f32 %v2110, %v2113
      %vm2115 = vweird.f32 %v2028
      %vm2116 = vweird.f32 %v2110
      %vm2117 = vmor %vm2115, %vm2116
      %v2118 = vsel %vm2117, %v2110, %v2114
      %v2119 = vand.u32 2147483647, %v2028
      %vm2120 = vcmp.eq.f32.partialorder %v2119, 8.507059e+37
      %v2121 = vand.u32 %v2028, 2147483648
      %v2122 = vor.u32 1.1754944e-38, %v2121
      %v2123 = vsel %vm2120, %v2122, %v2118
      %v2124 = vmul.f32 %v1992, %v2123
      %v2125 = vrcp.pop %v2031
      %v2126 = vmul.f32 %v2031, %v2125
      %v2127 = vsub.f32 1.0, %v2126
      %v2128 = vmul.f32 %v2125, %v2127
      %v2129 = vadd.f32 %v2125, %v2128
      %vm2130 = vweird.f32 %v2031
      %vm2131 = vweird.f32 %v2125
      %vm2132 = vmor %vm2130, %vm2131
      %v2133 = vsel %vm2132, %v2125, %v2129
      %v2134 = vand.u32 2147483647, %v2031
      %vm2135 = vcmp.eq.f32.partialorder %v2134, 8.507059e+37
      %v2136 = vand.u32 %v2031, 2147483648
      %v2137 = vor.u32 1.1754944e-38, %v2136
      %v2138 = vsel %vm2135, %v2137, %v2133
      %v2139 = vmul.f32 %v1994, %v2138
      %v2140 = vrcp.pop %v2034
      %v2141 = vmul.f32 %v2034, %v2140
      %v2142 = vsub.f32 1.0, %v2141
      %v2143 = vmul.f32 %v2140, %v2142
      %v2144 = vadd.f32 %v2140, %v2143
      %vm2145 = vweird.f32 %v2034
      %vm2146 = vweird.f32 %v2140
      %vm2147 = vmor %vm2145, %vm2146
      %v2148 = vsel %vm2147, %v2140, %v2144
      %v2149 = vand.u32 2147483647, %v2034
      %vm2150 = vcmp.eq.f32.partialorder %v2149, 8.507059e+37
      %v2151 = vand.u32 %v2034, 2147483648
      %v2152 = vor.u32 1.1754944e-38, %v2151
      %v2153 = vsel %vm2150, %v2152, %v2148
      %v2154 = vmul.f32 %v1996, %v2153
      %v2155 = vrcp.pop %v2037
      %v2156 = vmul.f32 %v2037, %v2155
      %v2157 = vsub.f32 1.0, %v2156
      %v2158 = vmul.f32 %v2155, %v2157
      %v2159 = vadd.f32 %v2155, %v2158
      %vm2160 = vweird.f32 %v2037
      %vm2161 = vweird.f32 %v2155
      %vm2162 = vmor %vm2160, %vm2161
      %v2163 = vsel %vm2162, %v2155, %v2159
      %v2164 = vand.u32 2147483647, %v2037
      %vm2165 = vcmp.eq.f32.partialorder %v2164, 8.507059e+37
      %v2166 = vand.u32 %v2037, 2147483648
      %v2167 = vor.u32 1.1754944e-38, %v2166
      %v2168 = vsel %vm2165, %v2167, %v2163
      %v2169 = vmul.f32 %v1998, %v2168
      %v2170 = vrcp.pop %v2040
      %v2171 = vmul.f32 %v2040, %v2170
      %v2172 = vsub.f32 1.0, %v2171
      %v2173 = vmul.f32 %v2170, %v2172
      %v2174 = vadd.f32 %v2170, %v2173
      %vm2175 = vweird.f32 %v2040
      %vm2176 = vweird.f32 %v2170
      %vm2177 = vmor %vm2175, %vm2176
      %v2178 = vsel %vm2177, %v2170, %v2174
      %v2179 = vand.u32 2147483647, %v2040
      %vm2180 = vcmp.eq.f32.partialorder %v2179, 8.507059e+37
      %v2181 = vand.u32 %v2040, 2147483648
      %v2182 = vor.u32 1.1754944e-38, %v2181
      %v2183 = vsel %vm2180, %v2182, %v2178
      %v2184 = vmul.f32 %v2000, %v2183
      %v2185 = vrcp.pop %v2043
      %v2186 = vmul.f32 %v2043, %v2185
      %v2187 = vsub.f32 1.0, %v2186
      %v2188 = vmul.f32 %v2185, %v2187
      %v2189 = vadd.f32 %v2185, %v2188
      %vm2190 = vweird.f32 %v2043
      %vm2191 = vweird.f32 %v2185
      %vm2192 = vmor %vm2190, %vm2191
      %v2193 = vsel %vm2192, %v2185, %v2189
      %v2194 = vand.u32 2147483647, %v2043
      %vm2195 = vcmp.eq.f32.partialorder %v2194, 8.507059e+37
      %v2196 = vand.u32 %v2043, 2147483648
      %v2197 = vor.u32 1.1754944e-38, %v2196
      %v2198 = vsel %vm2195, %v2197, %v2193
      %v2199 = vmul.f32 %v2002, %v2198
      %v2200 = vrcp.pop %v2046
      %v2201 = vmul.f32 %v2046, %v2200
      %v2202 = vsub.f32 1.0, %v2201
      %v2203 = vmul.f32 %v2200, %v2202
      %v2204 = vadd.f32 %v2200, %v2203
      %vm2205 = vweird.f32 %v2046
      %vm2206 = vweird.f32 %v2200
      %vm2207 = vmor %vm2205, %vm2206
      %v2208 = vsel %vm2207, %v2200, %v2204
      %v2209 = vand.u32 2147483647, %v2046
      %vm2210 = vcmp.eq.f32.partialorder %v2209, 8.507059e+37
      %v2211 = vand.u32 %v2046, 2147483648
      %v2212 = vor.u32 1.1754944e-38, %v2211
      %v2213 = vsel %vm2210, %v2212, %v2208
      %v2214 = vmul.f32 %v2004, %v2213
      %v2215 = vrcp.pop %v2049
      %v2216 = vmul.f32 %v2049, %v2215
      %v2217 = vsub.f32 1.0, %v2216
      %v2218 = vmul.f32 %v2215, %v2217
      %v2219 = vadd.f32 %v2215, %v2218
      %vm2220 = vweird.f32 %v2049
      %vm2221 = vweird.f32 %v2215
      %vm2222 = vmor %vm2220, %vm2221
      %v2223 = vsel %vm2222, %v2215, %v2219
      %v2224 = vand.u32 2147483647, %v2049
      %vm2225 = vcmp.eq.f32.partialorder %v2224, 8.507059e+37
      %v2226 = vand.u32 %v2049, 2147483648
      %v2227 = vor.u32 1.1754944e-38, %v2226
      %v2228 = vsel %vm2225, %v2227, %v2223
      %v2229 = vmul.f32 %v2006, %v2228
      %v2230 = vrcp.pop %v2052
      %v2231 = vmul.f32 %v2052, %v2230
      %v2232 = vsub.f32 1.0, %v2231
      %v2233 = vmul.f32 %v2230, %v2232
      %v2234 = vadd.f32 %v2230, %v2233
      %vm2235 = vweird.f32 %v2052
      %vm2236 = vweird.f32 %v2230
      %vm2237 = vmor %vm2235, %vm2236
      %v2238 = vsel %vm2237, %v2230, %v2234
      %v2239 = vand.u32 2147483647, %v2052
      %vm2240 = vcmp.eq.f32.partialorder %v2239, 8.507059e+37
      %v2241 = vand.u32 %v2052, 2147483648
      %v2242 = vor.u32 1.1754944e-38, %v2241
      %v2243 = vsel %vm2240, %v2242, %v2238
      %v2244 = vmul.f32 %v2008, %v2243
      %v2245 = vrcp.pop %v2055
      %v2246 = vmul.f32 %v2055, %v2245
      %v2247 = vsub.f32 1.0, %v2246
      %v2248 = vmul.f32 %v2245, %v2247
      %v2249 = vadd.f32 %v2245, %v2248
      %vm2250 = vweird.f32 %v2055
      %vm2251 = vweird.f32 %v2245
      %vm2252 = vmor %vm2250, %vm2251
      %v2253 = vsel %vm2252, %v2245, %v2249
      %v2254 = vand.u32 2147483647, %v2055
      %vm2255 = vcmp.eq.f32.partialorder %v2254, 8.507059e+37
      %v2256 = vand.u32 %v2055, 2147483648
      %v2257 = vor.u32 1.1754944e-38, %v2256
      %v2258 = vsel %vm2255, %v2257, %v2253
      %v2259 = vmul.f32 %v2010, %v2258
      %v2260 = vrcp.pop %v2058
      %v2261 = vmul.f32 %v2058, %v2260
      %v2262 = vsub.f32 1.0, %v2261
      %v2263 = vmul.f32 %v2260, %v2262
      %v2264 = vadd.f32 %v2260, %v2263
      %vm2265 = vweird.f32 %v2058
      %vm2266 = vweird.f32 %v2260
      %vm2267 = vmor %vm2265, %vm2266
      %v2268 = vsel %vm2267, %v2260, %v2264
      %v2269 = vand.u32 2147483647, %v2058
      %vm2270 = vcmp.eq.f32.partialorder %v2269, 8.507059e+37
      %v2271 = vand.u32 %v2058, 2147483648
      %v2272 = vor.u32 1.1754944e-38, %v2271
      %v2273 = vsel %vm2270, %v2272, %v2268
      %v2274 = vmul.f32 %v2012, %v2273
      %v2275 = vrcp.pop %v2061
      %v2276 = vmul.f32 %v2061, %v2275
      %v2277 = vsub.f32 1.0, %v2276
      %v2278 = vmul.f32 %v2275, %v2277
      %v2279 = vadd.f32 %v2275, %v2278
      %vm2280 = vweird.f32 %v2061
      %vm2281 = vweird.f32 %v2275
      %vm2282 = vmor %vm2280, %vm2281
      %v2283 = vsel %vm2282, %v2275, %v2279
      %v2284 = vand.u32 2147483647, %v2061
      %vm2285 = vcmp.eq.f32.partialorder %v2284, 8.507059e+37
      %v2286 = vand.u32 %v2061, 2147483648
      %v2287 = vor.u32 1.1754944e-38, %v2286
      %v2288 = vsel %vm2285, %v2287, %v2283
      %v2289 = vmul.f32 %v2014, %v2288
      %v2290 = vrcp.pop %v2064
      %v2291 = vmul.f32 %v2064, %v2290
      %v2292 = vsub.f32 1.0, %v2291
      %v2293 = vmul.f32 %v2290, %v2292
      %v2294 = vadd.f32 %v2290, %v2293
      %vm2295 = vweird.f32 %v2064
      %vm2296 = vweird.f32 %v2290
      %vm2297 = vmor %vm2295, %vm2296
      %v2298 = vsel %vm2297, %v2290, %v2294
      %v2299 = vand.u32 2147483647, %v2064
      %vm2300 = vcmp.eq.f32.partialorder %v2299, 8.507059e+37
      %v2301 = vand.u32 %v2064, 2147483648
      %v2302 = vor.u32 1.1754944e-38, %v2301
      %v2303 = vsel %vm2300, %v2302, %v2298
      %v2304 = vmul.f32 %v2016, %v2303
      %v2305 = vld [vmem:[%s4] sm:$0x7]
      %v2307 = vsel %vm1920, %v2079, 0
      %v2310 = vsel %vm1920, %v2094, 0
      %v2313 = vsel %vm1920, %v2109, 0
      %v2316 = vsel %vm1920, %v2124, 0
      %v2319 = vsel %vm1920, %v2139, 0
      %v2322 = vsel %vm1920, %v2154, 0
      %v2325 = vsel %vm1920, %v2169, 0
      %v2328 = vsel %vm1920, %v2184, 0
      %v2331 = vsel %vm1920, %v2199, 0
      %v2334 = vsel %vm1920, %v2214, 0
      %v2337 = vsel %vm1920, %v2229, 0
      %v2340 = vsel %vm1920, %v2244, 0
      %v2343 = vsel %vm1920, %v2259, 0
      %v2346 = vsel %vm1920, %v2274, 0
      %v2349 = vsel %vm1920, %v2289, 0
      %v2352 = vsel %vm1920, %v2304, 0
      %vm2354 = vcmask 1042432
      %v2356 = vsel %vm2354, %v2305, 0
      %2358 = vmatpush.msra.mxu0 0.0
      %2359 = vmatpush.msra.mxu0 0.0
      %2360 = vmatpush.msra.mxu0 0.0
      %2361 = vmatpush.msra.mxu0 0.0
      %2362 = vmatpush.msra.mxu0 0.0
      %2363 = vmatpush.msra.mxu0 0.0
      %2364 = vmatpush.msra.mxu0 0.0
      %2365 = vmatpush.msra.mxu0 0.0
      %2366 = vmatpush.msra.mxu0 0.0
      %2367 = vmatpush.msra.mxu0 0.0
      %2368 = vmatpush.msra.mxu0 0.0
      %2369 = vmatpush.msra.mxu0 0.0
      %2370 = vmatpush.msra.mxu0 0.0
      %2371 = vmatpush.msra.mxu0 0.0
      %2372 = vmatpush.msra.mxu0 0.0
      %v2373 = vand.u32 %v2356, 4294901760
      %2374 = vmatpush.msra.mxu0 %v2373
      %v2375 = vand.u32 %v2307, 4294901760
      %v2376 = vsub.f32 %v2307, %v2375
      %v2377 = vand.u32 %v2376, 4294901760
      %v2378 = vsub.f32 %v2376, %v2377
      %v2379 = vand.u32 %v2378, 4294901760
      %2380 = vmatmul.f32.gmra.mxu0 %v2379
      %v2381 = vpop.f32.mrf.mxu0
      %v2382 = vadd.f32 0.0, %v2381
      %v2383 = vand.u32 %v2310, 4294901760
      %v2384 = vsub.f32 %v2310, %v2383
      %v2385 = vand.u32 %v2384, 4294901760
      %v2386 = vsub.f32 %v2384, %v2385
      %v2387 = vand.u32 %v2386, 4294901760
      %2388 = vmatmul.f32.gmra.mxu0 %v2387
      %v2389 = vpop.f32.mrf.mxu0
      %v2390 = vadd.f32 0.0, %v2389
      %v2391 = vand.u32 %v2313, 4294901760
      %v2392 = vsub.f32 %v2313, %v2391
      %v2393 = vand.u32 %v2392, 4294901760
      %v2394 = vsub.f32 %v2392, %v2393
      %v2395 = vand.u32 %v2394, 4294901760
      %2396 = vmatmul.f32.gmra.mxu0 %v2395
      %v2397 = vpop.f32.mrf.mxu0
      %v2398 = vadd.f32 0.0, %v2397
      %v2399 = vand.u32 %v2316, 4294901760
      %v2400 = vsub.f32 %v2316, %v2399
      %v2401 = vand.u32 %v2400, 4294901760
      %v2402 = vsub.f32 %v2400, %v2401
      %v2403 = vand.u32 %v2402, 4294901760
      %2404 = vmatmul.f32.gmra.mxu0 %v2403
      %v2405 = vpop.f32.mrf.mxu0
      %v2406 = vadd.f32 0.0, %v2405
      %v2407 = vand.u32 %v2319, 4294901760
      %v2408 = vsub.f32 %v2319, %v2407
      %v2409 = vand.u32 %v2408, 4294901760
      %v2410 = vsub.f32 %v2408, %v2409
      %v2411 = vand.u32 %v2410, 4294901760
      %2412 = vmatmul.f32.gmra.mxu0 %v2411
      %v2413 = vpop.f32.mrf.mxu0
      %v2414 = vadd.f32 0.0, %v2413
      %v2415 = vand.u32 %v2322, 4294901760
      %v2416 = vsub.f32 %v2322, %v2415
      %v2417 = vand.u32 %v2416, 4294901760
      %v2418 = vsub.f32 %v2416, %v2417
      %v2419 = vand.u32 %v2418, 4294901760
      %2420 = vmatmul.f32.gmra.mxu0 %v2419
      %v2421 = vpop.f32.mrf.mxu0
      %v2422 = vadd.f32 0.0, %v2421
      %v2423 = vand.u32 %v2325, 4294901760
      %v2424 = vsub.f32 %v2325, %v2423
      %v2425 = vand.u32 %v2424, 4294901760
      %v2426 = vsub.f32 %v2424, %v2425
      %v2427 = vand.u32 %v2426, 4294901760
      %2428 = vmatmul.f32.gmra.mxu0 %v2427
      %v2429 = vpop.f32.mrf.mxu0
      %v2430 = vadd.f32 0.0, %v2429
      %v2431 = vand.u32 %v2328, 4294901760
      %v2432 = vsub.f32 %v2328, %v2431
      %v2433 = vand.u32 %v2432, 4294901760
      %v2434 = vsub.f32 %v2432, %v2433
      %v2435 = vand.u32 %v2434, 4294901760
      %2436 = vmatmul.f32.gmra.mxu0 %v2435
      %v2437 = vpop.f32.mrf.mxu0
      %v2438 = vadd.f32 0.0, %v2437
      %v2439 = vand.u32 %v2331, 4294901760
      %v2440 = vsub.f32 %v2331, %v2439
      %v2441 = vand.u32 %v2440, 4294901760
      %v2442 = vsub.f32 %v2440, %v2441
      %v2443 = vand.u32 %v2442, 4294901760
      %2444 = vmatmul.f32.gmra.mxu0 %v2443
      %v2445 = vpop.f32.mrf.mxu0
      %v2446 = vadd.f32 0.0, %v2445
      %v2447 = vand.u32 %v2334, 4294901760
      %v2448 = vsub.f32 %v2334, %v2447
      %v2449 = vand.u32 %v2448, 4294901760
      %v2450 = vsub.f32 %v2448, %v2449
      %v2451 = vand.u32 %v2450, 4294901760
      %2452 = vmatmul.f32.gmra.mxu0 %v2451
      %v2453 = vpop.f32.mrf.mxu0
      %v2454 = vadd.f32 0.0, %v2453
      %v2455 = vand.u32 %v2337, 4294901760
      %v2456 = vsub.f32 %v2337, %v2455
      %v2457 = vand.u32 %v2456, 4294901760
      %v2458 = vsub.f32 %v2456, %v2457
      %v2459 = vand.u32 %v2458, 4294901760
      %2460 = vmatmul.f32.gmra.mxu0 %v2459
      %v2461 = vpop.f32.mrf.mxu0
      %v2462 = vadd.f32 0.0, %v2461
      %v2463 = vand.u32 %v2340, 4294901760
      %v2464 = vsub.f32 %v2340, %v2463
      %v2465 = vand.u32 %v2464, 4294901760
      %v2466 = vsub.f32 %v2464, %v2465
      %v2467 = vand.u32 %v2466, 4294901760
      %2468 = vmatmul.f32.gmra.mxu0 %v2467
      %v2469 = vpop.f32.mrf.mxu0
      %v2470 = vadd.f32 0.0, %v2469
      %v2471 = vand.u32 %v2343, 4294901760
      %v2472 = vsub.f32 %v2343, %v2471
      %v2473 = vand.u32 %v2472, 4294901760
      %v2474 = vsub.f32 %v2472, %v2473
      %v2475 = vand.u32 %v2474, 4294901760
      %2476 = vmatmul.f32.gmra.mxu0 %v2475
      %v2477 = vpop.f32.mrf.mxu0
      %v2478 = vadd.f32 0.0, %v2477
      %v2479 = vand.u32 %v2346, 4294901760
      %v2480 = vsub.f32 %v2346, %v2479
      %v2481 = vand.u32 %v2480, 4294901760
      %v2482 = vsub.f32 %v2480, %v2481
      %v2483 = vand.u32 %v2482, 4294901760
      %2484 = vmatmul.f32.gmra.mxu0 %v2483
      %v2485 = vpop.f32.mrf.mxu0
      %v2486 = vadd.f32 0.0, %v2485
      %v2487 = vand.u32 %v2349, 4294901760
      %v2488 = vsub.f32 %v2349, %v2487
      %v2489 = vand.u32 %v2488, 4294901760
      %v2490 = vsub.f32 %v2488, %v2489
      %v2491 = vand.u32 %v2490, 4294901760
      %2492 = vmatmul.f32.gmra.mxu0 %v2491
      %v2493 = vpop.f32.mrf.mxu0
      %v2494 = vadd.f32 0.0, %v2493
      %v2495 = vand.u32 %v2352, 4294901760
      %v2496 = vsub.f32 %v2352, %v2495
      %v2497 = vand.u32 %v2496, 4294901760
      %v2498 = vsub.f32 %v2496, %v2497
      %v2499 = vand.u32 %v2498, 4294901760
      %2500 = vmatmul.f32.gmra.mxu0 %v2499
      %v2501 = vpop.f32.mrf.mxu0
      %v2502 = vadd.f32 0.0, %v2501
      %2503 = vdwg.mxu0
      %2504 = vmatpush.msra.mxu0 0.0
      %2505 = vmatpush.msra.mxu0 0.0
      %2506 = vmatpush.msra.mxu0 0.0
      %2507 = vmatpush.msra.mxu0 0.0
      %2508 = vmatpush.msra.mxu0 0.0
      %2509 = vmatpush.msra.mxu0 0.0
      %2510 = vmatpush.msra.mxu0 0.0
      %2511 = vmatpush.msra.mxu0 0.0
      %2512 = vmatpush.msra.mxu0 0.0
      %2513 = vmatpush.msra.mxu0 0.0
      %2514 = vmatpush.msra.mxu0 0.0
      %2515 = vmatpush.msra.mxu0 0.0
      %2516 = vmatpush.msra.mxu0 0.0
      %2517 = vmatpush.msra.mxu0 0.0
      %2518 = vmatpush.msra.mxu0 0.0
      %v2519 = vand.u32 %v2356, 4294901760
      %v2520 = vsub.f32 %v2356, %v2519
      %v2521 = vand.u32 %v2520, 4294901760
      %v2522 = vsub.f32 %v2520, %v2521
      %v2523 = vand.u32 %v2522, 4294901760
      %2524 = vmatpush.msra.mxu0 %v2523
      %v2525 = vand.u32 %v2307, 4294901760
      %2526 = vmatmul.f32.gmra.mxu0 %v2525
      %v2527 = vpop.f32.mrf.mxu0
      %v2528 = vadd.f32 %v2382, %v2527
      %v2529 = vand.u32 %v2310, 4294901760
      %2530 = vmatmul.f32.gmra.mxu0 %v2529
      %v2531 = vpop.f32.mrf.mxu0
      %v2532 = vadd.f32 %v2390, %v2531
      %v2533 = vand.u32 %v2313, 4294901760
      %2534 = vmatmul.f32.gmra.mxu0 %v2533
      %v2535 = vpop.f32.mrf.mxu0
      %v2536 = vadd.f32 %v2398, %v2535
      %v2537 = vand.u32 %v2316, 4294901760
      %2538 = vmatmul.f32.gmra.mxu0 %v2537
      %v2539 = vpop.f32.mrf.mxu0
      %v2540 = vadd.f32 %v2406, %v2539
      %v2541 = vand.u32 %v2319, 4294901760
      %2542 = vmatmul.f32.gmra.mxu0 %v2541
      %v2543 = vpop.f32.mrf.mxu0
      %v2544 = vadd.f32 %v2414, %v2543
      %v2545 = vand.u32 %v2322, 4294901760
      %2546 = vmatmul.f32.gmra.mxu0 %v2545
      %v2547 = vpop.f32.mrf.mxu0
      %v2548 = vadd.f32 %v2422, %v2547
      %v2549 = vand.u32 %v2325, 4294901760
      %2550 = vmatmul.f32.gmra.mxu0 %v2549
      %v2551 = vpop.f32.mrf.mxu0
      %v2552 = vadd.f32 %v2430, %v2551
      %v2553 = vand.u32 %v2328, 4294901760
      %2554 = vmatmul.f32.gmra.mxu0 %v2553
      %v2555 = vpop.f32.mrf.mxu0
      %v2556 = vadd.f32 %v2438, %v2555
      %v2557 = vand.u32 %v2331, 4294901760
      %2558 = vmatmul.f32.gmra.mxu0 %v2557
      %v2559 = vpop.f32.mrf.mxu0
      %v2560 = vadd.f32 %v2446, %v2559
      %v2561 = vand.u32 %v2334, 4294901760
      %2562 = vmatmul.f32.gmra.mxu0 %v2561
      %v2563 = vpop.f32.mrf.mxu0
      %v2564 = vadd.f32 %v2454, %v2563
      %v2565 = vand.u32 %v2337, 4294901760
      %2566 = vmatmul.f32.gmra.mxu0 %v2565
      %v2567 = vpop.f32.mrf.mxu0
      %v2568 = vadd.f32 %v2462, %v2567
      %v2569 = vand.u32 %v2340, 4294901760
      %2570 = vmatmul.f32.gmra.mxu0 %v2569
      %v2571 = vpop.f32.mrf.mxu0
      %v2572 = vadd.f32 %v2470, %v2571
      %v2573 = vand.u32 %v2343, 4294901760
      %2574 = vmatmul.f32.gmra.mxu0 %v2573
      %v2575 = vpop.f32.mrf.mxu0
      %v2576 = vadd.f32 %v2478, %v2575
      %v2577 = vand.u32 %v2346, 4294901760
      %2578 = vmatmul.f32.gmra.mxu0 %v2577
      %v2579 = vpop.f32.mrf.mxu0
      %v2580 = vadd.f32 %v2486, %v2579
      %v2581 = vand.u32 %v2349, 4294901760
      %2582 = vmatmul.f32.gmra.mxu0 %v2581
      %v2583 = vpop.f32.mrf.mxu0
      %v2584 = vadd.f32 %v2494, %v2583
      %v2585 = vand.u32 %v2352, 4294901760
      %2586 = vmatmul.f32.gmra.mxu0 %v2585
      %v2587 = vpop.f32.mrf.mxu0
      %v2588 = vadd.f32 %v2502, %v2587
      %2589 = vdwg.mxu0
      %2590 = vmatpush.msra.mxu0 0.0
      %2591 = vmatpush.msra.mxu0 0.0
      %2592 = vmatpush.msra.mxu0 0.0
      %2593 = vmatpush.msra.mxu0 0.0
      %2594 = vmatpush.msra.mxu0 0.0
      %2595 = vmatpush.msra.mxu0 0.0
      %2596 = vmatpush.msra.mxu0 0.0
      %2597 = vmatpush.msra.mxu0 0.0
      %2598 = vmatpush.msra.mxu0 0.0
      %2599 = vmatpush.msra.mxu0 0.0
      %2600 = vmatpush.msra.mxu0 0.0
      %2601 = vmatpush.msra.mxu0 0.0
      %2602 = vmatpush.msra.mxu0 0.0
      %2603 = vmatpush.msra.mxu0 0.0
      %2604 = vmatpush.msra.mxu0 0.0
      %v2605 = vand.u32 %v2356, 4294901760
      %v2606 = vsub.f32 %v2356, %v2605
      %2607 = vmatpush.msra.mxu0 %v2606
      %v2608 = vand.u32 %v2307, 4294901760
      %v2609 = vsub.f32 %v2307, %v2608
      %2610 = vmatmul.f32.gmra.mxu0 %v2609
      %v2611 = vpop.f32.mrf.mxu0
      %v2612 = vadd.f32 %v2528, %v2611
      %v2613 = vand.u32 %v2310, 4294901760
      %v2614 = vsub.f32 %v2310, %v2613
      %2615 = vmatmul.f32.gmra.mxu0 %v2614
      %v2616 = vpop.f32.mrf.mxu0
      %v2617 = vadd.f32 %v2532, %v2616
      %v2618 = vand.u32 %v2313, 4294901760
      %v2619 = vsub.f32 %v2313, %v2618
      %2620 = vmatmul.f32.gmra.mxu0 %v2619
      %v2621 = vpop.f32.mrf.mxu0
      %v2622 = vadd.f32 %v2536, %v2621
      %v2623 = vand.u32 %v2316, 4294901760
      %v2624 = vsub.f32 %v2316, %v2623
      %2625 = vmatmul.f32.gmra.mxu0 %v2624
      %v2626 = vpop.f32.mrf.mxu0
      %v2627 = vadd.f32 %v2540, %v2626
      %v2628 = vand.u32 %v2319, 4294901760
      %v2629 = vsub.f32 %v2319, %v2628
      %2630 = vmatmul.f32.gmra.mxu0 %v2629
      %v2631 = vpop.f32.mrf.mxu0
      %v2632 = vadd.f32 %v2544, %v2631
      %v2633 = vand.u32 %v2322, 4294901760
      %v2634 = vsub.f32 %v2322, %v2633
      %2635 = vmatmul.f32.gmra.mxu0 %v2634
      %v2636 = vpop.f32.mrf.mxu0
      %v2637 = vadd.f32 %v2548, %v2636
      %v2638 = vand.u32 %v2325, 4294901760
      %v2639 = vsub.f32 %v2325, %v2638
      %2640 = vmatmul.f32.gmra.mxu0 %v2639
      %v2641 = vpop.f32.mrf.mxu0
      %v2642 = vadd.f32 %v2552, %v2641
      %v2643 = vand.u32 %v2328, 4294901760
      %v2644 = vsub.f32 %v2328, %v2643
      %2645 = vmatmul.f32.gmra.mxu0 %v2644
      %v2646 = vpop.f32.mrf.mxu0
      %v2647 = vadd.f32 %v2556, %v2646
      %v2648 = vand.u32 %v2331, 4294901760
      %v2649 = vsub.f32 %v2331, %v2648
      %2650 = vmatmul.f32.gmra.mxu0 %v2649
      %v2651 = vpop.f32.mrf.mxu0
      %v2652 = vadd.f32 %v2560, %v2651
      %v2653 = vand.u32 %v2334, 4294901760
      %v2654 = vsub.f32 %v2334, %v2653
      %2655 = vmatmul.f32.gmra.mxu0 %v2654
      %v2656 = vpop.f32.mrf.mxu0
      %v2657 = vadd.f32 %v2564, %v2656
      %v2658 = vand.u32 %v2337, 4294901760
      %v2659 = vsub.f32 %v2337, %v2658
      %2660 = vmatmul.f32.gmra.mxu0 %v2659
      %v2661 = vpop.f32.mrf.mxu0
      %v2662 = vadd.f32 %v2568, %v2661
      %v2663 = vand.u32 %v2340, 4294901760
      %v2664 = vsub.f32 %v2340, %v2663
      %2665 = vmatmul.f32.gmra.mxu0 %v2664
      %v2666 = vpop.f32.mrf.mxu0
      %v2667 = vadd.f32 %v2572, %v2666
      %v2668 = vand.u32 %v2343, 4294901760
      %v2669 = vsub.f32 %v2343, %v2668
      %2670 = vmatmul.f32.gmra.mxu0 %v2669
      %v2671 = vpop.f32.mrf.mxu0
      %v2672 = vadd.f32 %v2576, %v2671
      %v2673 = vand.u32 %v2346, 4294901760
      %v2674 = vsub.f32 %v2346, %v2673
      %2675 = vmatmul.f32.gmra.mxu0 %v2674
      %v2676 = vpop.f32.mrf.mxu0
      %v2677 = vadd.f32 %v2580, %v2676
      %v2678 = vand.u32 %v2349, 4294901760
      %v2679 = vsub.f32 %v2349, %v2678
      %2680 = vmatmul.f32.gmra.mxu0 %v2679
      %v2681 = vpop.f32.mrf.mxu0
      %v2682 = vadd.f32 %v2584, %v2681
      %v2683 = vand.u32 %v2352, 4294901760
      %v2684 = vsub.f32 %v2352, %v2683
      %2685 = vmatmul.f32.gmra.mxu0 %v2684
      %v2686 = vpop.f32.mrf.mxu0
      %v2687 = vadd.f32 %v2588, %v2686
      %2688 = vdwg.mxu0
      %2689 = vmatpush.msra.mxu0 0.0
      %2690 = vmatpush.msra.mxu0 0.0
      %2691 = vmatpush.msra.mxu0 0.0
      %2692 = vmatpush.msra.mxu0 0.0
      %2693 = vmatpush.msra.mxu0 0.0
      %2694 = vmatpush.msra.mxu0 0.0
      %2695 = vmatpush.msra.mxu0 0.0
      %2696 = vmatpush.msra.mxu0 0.0
      %2697 = vmatpush.msra.mxu0 0.0
      %2698 = vmatpush.msra.mxu0 0.0
      %2699 = vmatpush.msra.mxu0 0.0
      %2700 = vmatpush.msra.mxu0 0.0
      %2701 = vmatpush.msra.mxu0 0.0
      %2702 = vmatpush.msra.mxu0 0.0
      %2703 = vmatpush.msra.mxu0 0.0
      %v2704 = vand.u32 %v2356, 4294901760
      %2705 = vmatpush.msra.mxu0 %v2704
      %v2706 = vand.u32 %v2307, 4294901760
      %v2707 = vsub.f32 %v2307, %v2706
      %v2708 = vand.u32 %v2707, 4294901760
      %2709 = vmatmul.f32.gmra.mxu0 %v2708
      %v2710 = vpop.f32.mrf.mxu0
      %v2711 = vadd.f32 %v2612, %v2710
      %v2712 = vand.u32 %v2310, 4294901760
      %v2713 = vsub.f32 %v2310, %v2712
      %v2714 = vand.u32 %v2713, 4294901760
      %2715 = vmatmul.f32.gmra.mxu0 %v2714
      %v2716 = vpop.f32.mrf.mxu0
      %v2717 = vadd.f32 %v2617, %v2716
      %v2718 = vand.u32 %v2313, 4294901760
      %v2719 = vsub.f32 %v2313, %v2718
      %v2720 = vand.u32 %v2719, 4294901760
      %2721 = vmatmul.f32.gmra.mxu0 %v2720
      %v2722 = vpop.f32.mrf.mxu0
      %v2723 = vadd.f32 %v2622, %v2722
      %v2724 = vand.u32 %v2316, 4294901760
      %v2725 = vsub.f32 %v2316, %v2724
      %v2726 = vand.u32 %v2725, 4294901760
      %2727 = vmatmul.f32.gmra.mxu0 %v2726
      %v2728 = vpop.f32.mrf.mxu0
      %v2729 = vadd.f32 %v2627, %v2728
      %v2730 = vand.u32 %v2319, 4294901760
      %v2731 = vsub.f32 %v2319, %v2730
      %v2732 = vand.u32 %v2731, 4294901760
      %2733 = vmatmul.f32.gmra.mxu0 %v2732
      %v2734 = vpop.f32.mrf.mxu0
      %v2735 = vadd.f32 %v2632, %v2734
      %v2736 = vand.u32 %v2322, 4294901760
      %v2737 = vsub.f32 %v2322, %v2736
      %v2738 = vand.u32 %v2737, 4294901760
      %2739 = vmatmul.f32.gmra.mxu0 %v2738
      %v2740 = vpop.f32.mrf.mxu0
      %v2741 = vadd.f32 %v2637, %v2740
      %v2742 = vand.u32 %v2325, 4294901760
      %v2743 = vsub.f32 %v2325, %v2742
      %v2744 = vand.u32 %v2743, 4294901760
      %2745 = vmatmul.f32.gmra.mxu0 %v2744
      %v2746 = vpop.f32.mrf.mxu0
      %v2747 = vadd.f32 %v2642, %v2746
      %v2748 = vand.u32 %v2328, 4294901760
      %v2749 = vsub.f32 %v2328, %v2748
      %v2750 = vand.u32 %v2749, 4294901760
      %2751 = vmatmul.f32.gmra.mxu0 %v2750
      %v2752 = vpop.f32.mrf.mxu0
      %v2753 = vadd.f32 %v2647, %v2752
      %v2754 = vand.u32 %v2331, 4294901760
      %v2755 = vsub.f32 %v2331, %v2754
      %v2756 = vand.u32 %v2755, 4294901760
      %2757 = vmatmul.f32.gmra.mxu0 %v2756
      %v2758 = vpop.f32.mrf.mxu0
      %v2759 = vadd.f32 %v2652, %v2758
      %v2760 = vand.u32 %v2334, 4294901760
      %v2761 = vsub.f32 %v2334, %v2760
      %v2762 = vand.u32 %v2761, 4294901760
      %2763 = vmatmul.f32.gmra.mxu0 %v2762
      %v2764 = vpop.f32.mrf.mxu0
      %v2765 = vadd.f32 %v2657, %v2764
      %v2766 = vand.u32 %v2337, 4294901760
      %v2767 = vsub.f32 %v2337, %v2766
      %v2768 = vand.u32 %v2767, 4294901760
      %2769 = vmatmul.f32.gmra.mxu0 %v2768
      %v2770 = vpop.f32.mrf.mxu0
      %v2771 = vadd.f32 %v2662, %v2770
      %v2772 = vand.u32 %v2340, 4294901760
      %v2773 = vsub.f32 %v2340, %v2772
      %v2774 = vand.u32 %v2773, 4294901760
      %2775 = vmatmul.f32.gmra.mxu0 %v2774
      %v2776 = vpop.f32.mrf.mxu0
      %v2777 = vadd.f32 %v2667, %v2776
      %v2778 = vand.u32 %v2343, 4294901760
      %v2779 = vsub.f32 %v2343, %v2778
      %v2780 = vand.u32 %v2779, 4294901760
      %2781 = vmatmul.f32.gmra.mxu0 %v2780
      %v2782 = vpop.f32.mrf.mxu0
      %v2783 = vadd.f32 %v2672, %v2782
      %v2784 = vand.u32 %v2346, 4294901760
      %v2785 = vsub.f32 %v2346, %v2784
      %v2786 = vand.u32 %v2785, 4294901760
      %2787 = vmatmul.f32.gmra.mxu0 %v2786
      %v2788 = vpop.f32.mrf.mxu0
      %v2789 = vadd.f32 %v2677, %v2788
      %v2790 = vand.u32 %v2349, 4294901760
      %v2791 = vsub.f32 %v2349, %v2790
      %v2792 = vand.u32 %v2791, 4294901760
      %2793 = vmatmul.f32.gmra.mxu0 %v2792
      %v2794 = vpop.f32.mrf.mxu0
      %v2795 = vadd.f32 %v2682, %v2794
      %v2796 = vand.u32 %v2352, 4294901760
      %v2797 = vsub.f32 %v2352, %v2796
      %v2798 = vand.u32 %v2797, 4294901760
      %2799 = vmatmul.f32.gmra.mxu0 %v2798
      %v2800 = vpop.f32.mrf.mxu0
      %v2801 = vadd.f32 %v2687, %v2800
      %2802 = vdwg.mxu0
      %2803 = vmatpush.msra.mxu0 0.0
      %2804 = vmatpush.msra.mxu0 0.0
      %2805 = vmatpush.msra.mxu0 0.0
      %2806 = vmatpush.msra.mxu0 0.0
      %2807 = vmatpush.msra.mxu0 0.0
      %2808 = vmatpush.msra.mxu0 0.0
      %2809 = vmatpush.msra.mxu0 0.0
      %2810 = vmatpush.msra.mxu0 0.0
      %2811 = vmatpush.msra.mxu0 0.0
      %2812 = vmatpush.msra.mxu0 0.0
      %2813 = vmatpush.msra.mxu0 0.0
      %2814 = vmatpush.msra.mxu0 0.0
      %2815 = vmatpush.msra.mxu0 0.0
      %2816 = vmatpush.msra.mxu0 0.0
      %2817 = vmatpush.msra.mxu0 0.0
      %v2818 = vand.u32 %v2356, 4294901760
      %v2819 = vsub.f32 %v2356, %v2818
      %v2820 = vand.u32 %v2819, 4294901760
      %2821 = vmatpush.msra.mxu0 %v2820
      %v2822 = vand.u32 %v2307, 4294901760
      %2823 = vmatmul.f32.gmra.mxu0 %v2822
      %v2824 = vpop.f32.mrf.mxu0
      %v2825 = vadd.f32 %v2711, %v2824
      %v2826 = vand.u32 %v2310, 4294901760
      %2827 = vmatmul.f32.gmra.mxu0 %v2826
      %v2828 = vpop.f32.mrf.mxu0
      %v2829 = vadd.f32 %v2717, %v2828
      %v2830 = vand.u32 %v2313, 4294901760
      %2831 = vmatmul.f32.gmra.mxu0 %v2830
      %v2832 = vpop.f32.mrf.mxu0
      %v2833 = vadd.f32 %v2723, %v2832
      %v2834 = vand.u32 %v2316, 4294901760
      %2835 = vmatmul.f32.gmra.mxu0 %v2834
      %v2836 = vpop.f32.mrf.mxu0
      %v2837 = vadd.f32 %v2729, %v2836
      %v2838 = vand.u32 %v2319, 4294901760
      %2839 = vmatmul.f32.gmra.mxu0 %v2838
      %v2840 = vpop.f32.mrf.mxu0
      %v2841 = vadd.f32 %v2735, %v2840
      %v2842 = vand.u32 %v2322, 4294901760
      %2843 = vmatmul.f32.gmra.mxu0 %v2842
      %v2844 = vpop.f32.mrf.mxu0
      %v2845 = vadd.f32 %v2741, %v2844
      %v2846 = vand.u32 %v2325, 4294901760
      %2847 = vmatmul.f32.gmra.mxu0 %v2846
      %v2848 = vpop.f32.mrf.mxu0
      %v2849 = vadd.f32 %v2747, %v2848
      %v2850 = vand.u32 %v2328, 4294901760
      %2851 = vmatmul.f32.gmra.mxu0 %v2850
      %v2852 = vpop.f32.mrf.mxu0
      %v2853 = vadd.f32 %v2753, %v2852
      %v2854 = vand.u32 %v2331, 4294901760
      %2855 = vmatmul.f32.gmra.mxu0 %v2854
      %v2856 = vpop.f32.mrf.mxu0
      %v2857 = vadd.f32 %v2759, %v2856
      %v2858 = vand.u32 %v2334, 4294901760
      %2859 = vmatmul.f32.gmra.mxu0 %v2858
      %v2860 = vpop.f32.mrf.mxu0
      %v2861 = vadd.f32 %v2765, %v2860
      %v2862 = vand.u32 %v2337, 4294901760
      %2863 = vmatmul.f32.gmra.mxu0 %v2862
      %v2864 = vpop.f32.mrf.mxu0
      %v2865 = vadd.f32 %v2771, %v2864
      %v2866 = vand.u32 %v2340, 4294901760
      %2867 = vmatmul.f32.gmra.mxu0 %v2866
      %v2868 = vpop.f32.mrf.mxu0
      %v2869 = vadd.f32 %v2777, %v2868
      %v2870 = vand.u32 %v2343, 4294901760
      %2871 = vmatmul.f32.gmra.mxu0 %v2870
      %v2872 = vpop.f32.mrf.mxu0
      %v2873 = vadd.f32 %v2783, %v2872
      %v2874 = vand.u32 %v2346, 4294901760
      %2875 = vmatmul.f32.gmra.mxu0 %v2874
      %v2876 = vpop.f32.mrf.mxu0
      %v2877 = vadd.f32 %v2789, %v2876
      %v2878 = vand.u32 %v2349, 4294901760
      %2879 = vmatmul.f32.gmra.mxu0 %v2878
      %v2880 = vpop.f32.mrf.mxu0
      %v2881 = vadd.f32 %v2795, %v2880
      %v2882 = vand.u32 %v2352, 4294901760
      %2883 = vmatmul.f32.gmra.mxu0 %v2882
      %v2884 = vpop.f32.mrf.mxu0
      %v2885 = vadd.f32 %v2801, %v2884
      %2886 = vdwg.mxu0
      %2887 = vmatpush.msra.mxu0 0.0
      %2888 = vmatpush.msra.mxu0 0.0
      %2889 = vmatpush.msra.mxu0 0.0
      %2890 = vmatpush.msra.mxu0 0.0
      %2891 = vmatpush.msra.mxu0 0.0
      %2892 = vmatpush.msra.mxu0 0.0
      %2893 = vmatpush.msra.mxu0 0.0
      %2894 = vmatpush.msra.mxu0 0.0
      %2895 = vmatpush.msra.mxu0 0.0
      %2896 = vmatpush.msra.mxu0 0.0
      %2897 = vmatpush.msra.mxu0 0.0
      %2898 = vmatpush.msra.mxu0 0.0
      %2899 = vmatpush.msra.mxu0 0.0
      %2900 = vmatpush.msra.mxu0 0.0
      %2901 = vmatpush.msra.mxu0 0.0
      %v2902 = vand.u32 %v2356, 4294901760
      %2903 = vmatpush.msra.mxu0 %v2902
      %v2904 = vand.u32 %v2307, 4294901760
      %2905 = vmatmul.f32.gmra.mxu0 %v2904
      %v2906 = vpop.f32.mrf.mxu0
      %v2907 = vadd.f32 %v2825, %v2906
      %v2908 = vand.u32 %v2310, 4294901760
      %2909 = vmatmul.f32.gmra.mxu0 %v2908
      %v2910 = vpop.f32.mrf.mxu0
      %v2911 = vadd.f32 %v2829, %v2910
      %v2912 = vand.u32 %v2313, 4294901760
      %2913 = vmatmul.f32.gmra.mxu0 %v2912
      %v2914 = vpop.f32.mrf.mxu0
      %v2915 = vadd.f32 %v2833, %v2914
      %v2916 = vand.u32 %v2316, 4294901760
      %2917 = vmatmul.f32.gmra.mxu0 %v2916
      %v2918 = vpop.f32.mrf.mxu0
      %v2919 = vadd.f32 %v2837, %v2918
      %v2920 = vand.u32 %v2319, 4294901760
      %2921 = vmatmul.f32.gmra.mxu0 %v2920
      %v2922 = vpop.f32.mrf.mxu0
      %v2923 = vadd.f32 %v2841, %v2922
      %v2924 = vand.u32 %v2322, 4294901760
      %2925 = vmatmul.f32.gmra.mxu0 %v2924
      %v2926 = vpop.f32.mrf.mxu0
      %v2927 = vadd.f32 %v2845, %v2926
      %v2928 = vand.u32 %v2325, 4294901760
      %2929 = vmatmul.f32.gmra.mxu0 %v2928
      %v2930 = vpop.f32.mrf.mxu0
      %v2931 = vadd.f32 %v2849, %v2930
      %v2932 = vand.u32 %v2328, 4294901760
      %2933 = vmatmul.f32.gmra.mxu0 %v2932
      %v2934 = vpop.f32.mrf.mxu0
      %v2935 = vadd.f32 %v2853, %v2934
      %v2936 = vand.u32 %v2331, 4294901760
      %2937 = vmatmul.f32.gmra.mxu0 %v2936
      %v2938 = vpop.f32.mrf.mxu0
      %v2939 = vadd.f32 %v2857, %v2938
      %v2940 = vand.u32 %v2334, 4294901760
      %2941 = vmatmul.f32.gmra.mxu0 %v2940
      %v2942 = vpop.f32.mrf.mxu0
      %v2943 = vadd.f32 %v2861, %v2942
      %v2944 = vand.u32 %v2337, 4294901760
      %2945 = vmatmul.f32.gmra.mxu0 %v2944
      %v2946 = vpop.f32.mrf.mxu0
      %v2947 = vadd.f32 %v2865, %v2946
      %v2948 = vand.u32 %v2340, 4294901760
      %2949 = vmatmul.f32.gmra.mxu0 %v2948
      %v2950 = vpop.f32.mrf.mxu0
      %v2951 = vadd.f32 %v2869, %v2950
      %v2952 = vand.u32 %v2343, 4294901760
      %2953 = vmatmul.f32.gmra.mxu0 %v2952
      %v2954 = vpop.f32.mrf.mxu0
      %v2955 = vadd.f32 %v2873, %v2954
      %v2956 = vand.u32 %v2346, 4294901760
      %2957 = vmatmul.f32.gmra.mxu0 %v2956
      %v2958 = vpop.f32.mrf.mxu0
      %v2959 = vadd.f32 %v2877, %v2958
      %v2960 = vand.u32 %v2349, 4294901760
      %2961 = vmatmul.f32.gmra.mxu0 %v2960
      %v2962 = vpop.f32.mrf.mxu0
      %v2963 = vadd.f32 %v2881, %v2962
      %v2964 = vand.u32 %v2352, 4294901760
      %2965 = vmatmul.f32.gmra.mxu0 %v2964
      %v2966 = vpop.f32.mrf.mxu0
      %v2967 = vadd.f32 %v2885, %v2966
      %2968 = vdwg.mxu0
      %v2969 = vmul.f32 %v2907, %v255
      %v2970 = vmul.f32 %v2911, %v256
      %v2971 = vmul.f32 %v2915, %v257
      %v2972 = vmul.f32 %v2919, %v258
      %v2973 = vmul.f32 %v2923, %v259
      %v2974 = vmul.f32 %v2927, %v260
      %v2975 = vmul.f32 %v2931, %v261
      %v2976 = vmul.f32 %v2935, %v262
      %v2977 = vmul.f32 %v2939, %v263
      %v2978 = vmul.f32 %v2943, %v264
      %v2979 = vmul.f32 %v2947, %v265
      %v2980 = vmul.f32 %v2951, %v266
      %v2981 = vmul.f32 %v2955, %v267
      %v2982 = vmul.f32 %v2959, %v268
      %v2983 = vmul.f32 %v2963, %v269
      %v2984 = vmul.f32 %v2967, %v270
      %v2985 = vld [vmem:[%s5] sm:$0xff]
      %v2986 = vld [vmem:[%s5 + $0x8] sm:$0xff]
      %v2987 = vld [vmem:[%s5 + $0x10] sm:$0xff]
      %v2988 = vld [vmem:[%s5 + $0x18] sm:$0xff]
      %v2989 = vld [vmem:[%s5 + $0x20] sm:$0xff]
      %v2990 = vld [vmem:[%s5 + $0x28] sm:$0xff]
      %v2991 = vld [vmem:[%s5 + $0x30] sm:$0xff]
      %v2992 = vld [vmem:[%s5 + $0x38] sm:$0xff]
      %v2993 = vld [vmem:[%s5 + $0x40] sm:$0xff]
      %v2994 = vld [vmem:[%s5 + $0x48] sm:$0xff]
      %v2995 = vld [vmem:[%s5 + $0x50] sm:$0xff]
      %v2996 = vld [vmem:[%s5 + $0x58] sm:$0xff]
      %v2998 = vsel %vm287, %v2969, 0
      %v3001 = vsel %vm287, %v2970, 0
      %v3004 = vsel %vm287, %v2971, 0
      %v3007 = vsel %vm287, %v2972, 0
      %v3010 = vsel %vm287, %v2973, 0
      %v3013 = vsel %vm287, %v2974, 0
      %v3016 = vsel %vm287, %v2975, 0
      %v3019 = vsel %vm287, %v2976, 0
      %v3022 = vsel %vm287, %v2977, 0
      %v3025 = vsel %vm287, %v2978, 0
      %v3028 = vsel %vm287, %v2979, 0
      %v3031 = vsel %vm287, %v2980, 0
      %v3034 = vsel %vm287, %v2981, 0
      %v3037 = vsel %vm287, %v2982, 0
      %v3040 = vsel %vm287, %v2983, 0
      %v3043 = vsel %vm287, %v2984, 0
      %3045 = vmatpush.msra.mxu0 0.0
      %3046 = vmatpush.msra.mxu0 0.0
      %3047 = vmatpush.msra.mxu0 0.0
      %3048 = vmatpush.msra.mxu0 0.0
      %v3049 = vand.u32 %v2996, 4294901760
      %3050 = vmatpush.msra.mxu0 %v3049
      %v3051 = vand.u32 %v2995, 4294901760
      %3052 = vmatpush.msra.mxu0 %v3051
      %v3053 = vand.u32 %v2994, 4294901760
      %3054 = vmatpush.msra.mxu0 %v3053
      %v3055 = vand.u32 %v2993, 4294901760
      %3056 = vmatpush.msra.mxu0 %v3055
      %v3057 = vand.u32 %v2992, 4294901760
      %3058 = vmatpush.msra.mxu0 %v3057
      %v3059 = vand.u32 %v2991, 4294901760
      %3060 = vmatpush.msra.mxu0 %v3059
      %v3061 = vand.u32 %v2990, 4294901760
      %3062 = vmatpush.msra.mxu0 %v3061
      %v3063 = vand.u32 %v2989, 4294901760
      %3064 = vmatpush.msra.mxu0 %v3063
      %v3065 = vand.u32 %v2988, 4294901760
      %3066 = vmatpush.msra.mxu0 %v3065
      %v3067 = vand.u32 %v2987, 4294901760
      %3068 = vmatpush.msra.mxu0 %v3067
      %v3069 = vand.u32 %v2986, 4294901760
      %3070 = vmatpush.msra.mxu0 %v3069
      %v3071 = vand.u32 %v2985, 4294901760
      %3072 = vmatpush.msra.mxu0 %v3071
      %v3073 = vand.u32 %v2998, 4294901760
      %v3074 = vsub.f32 %v2998, %v3073
      %v3075 = vand.u32 %v3074, 4294901760
      %v3076 = vsub.f32 %v3074, %v3075
      %v3077 = vand.u32 %v3076, 4294901760
      %3078 = vmatmul.f32.gmra.mxu0 %v3077
      %v3079 = vpop.f32.mrf.mxu0
      %v3080 = vadd.f32 0.0, %v3079
      %v3081 = vand.u32 %v3001, 4294901760
      %v3082 = vsub.f32 %v3001, %v3081
      %v3083 = vand.u32 %v3082, 4294901760
      %v3084 = vsub.f32 %v3082, %v3083
      %v3085 = vand.u32 %v3084, 4294901760
      %3086 = vmatmul.f32.gmra.mxu0 %v3085
      %v3087 = vpop.f32.mrf.mxu0
      %v3088 = vadd.f32 0.0, %v3087
      %v3089 = vand.u32 %v3004, 4294901760
      %v3090 = vsub.f32 %v3004, %v3089
      %v3091 = vand.u32 %v3090, 4294901760
      %v3092 = vsub.f32 %v3090, %v3091
      %v3093 = vand.u32 %v3092, 4294901760
      %3094 = vmatmul.f32.gmra.mxu0 %v3093
      %v3095 = vpop.f32.mrf.mxu0
      %v3096 = vadd.f32 0.0, %v3095
      %v3097 = vand.u32 %v3007, 4294901760
      %v3098 = vsub.f32 %v3007, %v3097
      %v3099 = vand.u32 %v3098, 4294901760
      %v3100 = vsub.f32 %v3098, %v3099
      %v3101 = vand.u32 %v3100, 4294901760
      %3102 = vmatmul.f32.gmra.mxu0 %v3101
      %v3103 = vpop.f32.mrf.mxu0
      %v3104 = vadd.f32 0.0, %v3103
      %v3105 = vand.u32 %v3010, 4294901760
      %v3106 = vsub.f32 %v3010, %v3105
      %v3107 = vand.u32 %v3106, 4294901760
      %v3108 = vsub.f32 %v3106, %v3107
      %v3109 = vand.u32 %v3108, 4294901760
      %3110 = vmatmul.f32.gmra.mxu0 %v3109
      %v3111 = vpop.f32.mrf.mxu0
      %v3112 = vadd.f32 0.0, %v3111
      %v3113 = vand.u32 %v3013, 4294901760
      %v3114 = vsub.f32 %v3013, %v3113
      %v3115 = vand.u32 %v3114, 4294901760
      %v3116 = vsub.f32 %v3114, %v3115
      %v3117 = vand.u32 %v3116, 4294901760
      %3118 = vmatmul.f32.gmra.mxu0 %v3117
      %v3119 = vpop.f32.mrf.mxu0
      %v3120 = vadd.f32 0.0, %v3119
      %v3121 = vand.u32 %v3016, 4294901760
      %v3122 = vsub.f32 %v3016, %v3121
      %v3123 = vand.u32 %v3122, 4294901760
      %v3124 = vsub.f32 %v3122, %v3123
      %v3125 = vand.u32 %v3124, 4294901760
      %3126 = vmatmul.f32.gmra.mxu0 %v3125
      %v3127 = vpop.f32.mrf.mxu0
      %v3128 = vadd.f32 0.0, %v3127
      %v3129 = vand.u32 %v3019, 4294901760
      %v3130 = vsub.f32 %v3019, %v3129
      %v3131 = vand.u32 %v3130, 4294901760
      %v3132 = vsub.f32 %v3130, %v3131
      %v3133 = vand.u32 %v3132, 4294901760
      %3134 = vmatmul.f32.gmra.mxu0 %v3133
      %v3135 = vpop.f32.mrf.mxu0
      %v3136 = vadd.f32 0.0, %v3135
      %v3137 = vand.u32 %v3022, 4294901760
      %v3138 = vsub.f32 %v3022, %v3137
      %v3139 = vand.u32 %v3138, 4294901760
      %v3140 = vsub.f32 %v3138, %v3139
      %v3141 = vand.u32 %v3140, 4294901760
      %3142 = vmatmul.f32.gmra.mxu0 %v3141
      %v3143 = vpop.f32.mrf.mxu0
      %v3144 = vadd.f32 0.0, %v3143
      %v3145 = vand.u32 %v3025, 4294901760
      %v3146 = vsub.f32 %v3025, %v3145
      %v3147 = vand.u32 %v3146, 4294901760
      %v3148 = vsub.f32 %v3146, %v3147
      %v3149 = vand.u32 %v3148, 4294901760
      %3150 = vmatmul.f32.gmra.mxu0 %v3149
      %v3151 = vpop.f32.mrf.mxu0
      %v3152 = vadd.f32 0.0, %v3151
      %v3153 = vand.u32 %v3028, 4294901760
      %v3154 = vsub.f32 %v3028, %v3153
      %v3155 = vand.u32 %v3154, 4294901760
      %v3156 = vsub.f32 %v3154, %v3155
      %v3157 = vand.u32 %v3156, 4294901760
      %3158 = vmatmul.f32.gmra.mxu0 %v3157
      %v3159 = vpop.f32.mrf.mxu0
      %v3160 = vadd.f32 0.0, %v3159
      %v3161 = vand.u32 %v3031, 4294901760
      %v3162 = vsub.f32 %v3031, %v3161
      %v3163 = vand.u32 %v3162, 4294901760
      %v3164 = vsub.f32 %v3162, %v3163
      %v3165 = vand.u32 %v3164, 4294901760
      %3166 = vmatmul.f32.gmra.mxu0 %v3165
      %v3167 = vpop.f32.mrf.mxu0
      %v3168 = vadd.f32 0.0, %v3167
      %v3169 = vand.u32 %v3034, 4294901760
      %v3170 = vsub.f32 %v3034, %v3169
      %v3171 = vand.u32 %v3170, 4294901760
      %v3172 = vsub.f32 %v3170, %v3171
      %v3173 = vand.u32 %v3172, 4294901760
      %3174 = vmatmul.f32.gmra.mxu0 %v3173
      %v3175 = vpop.f32.mrf.mxu0
      %v3176 = vadd.f32 0.0, %v3175
      %v3177 = vand.u32 %v3037, 4294901760
      %v3178 = vsub.f32 %v3037, %v3177
      %v3179 = vand.u32 %v3178, 4294901760
      %v3180 = vsub.f32 %v3178, %v3179
      %v3181 = vand.u32 %v3180, 4294901760
      %3182 = vmatmul.f32.gmra.mxu0 %v3181
      %v3183 = vpop.f32.mrf.mxu0
      %v3184 = vadd.f32 0.0, %v3183
      %v3185 = vand.u32 %v3040, 4294901760
      %v3186 = vsub.f32 %v3040, %v3185
      %v3187 = vand.u32 %v3186, 4294901760
      %v3188 = vsub.f32 %v3186, %v3187
      %v3189 = vand.u32 %v3188, 4294901760
      %3190 = vmatmul.f32.gmra.mxu0 %v3189
      %v3191 = vpop.f32.mrf.mxu0
      %v3192 = vadd.f32 0.0, %v3191
      %v3193 = vand.u32 %v3043, 4294901760
      %v3194 = vsub.f32 %v3043, %v3193
      %v3195 = vand.u32 %v3194, 4294901760
      %v3196 = vsub.f32 %v3194, %v3195
      %v3197 = vand.u32 %v3196, 4294901760
      %3198 = vmatmul.f32.gmra.mxu0 %v3197
      %v3199 = vpop.f32.mrf.mxu0
      %v3200 = vadd.f32 0.0, %v3199
      %3201 = vdwg.mxu0
      %3202 = vmatpush.msra.mxu0 0.0
      %3203 = vmatpush.msra.mxu0 0.0
      %3204 = vmatpush.msra.mxu0 0.0
      %3205 = vmatpush.msra.mxu0 0.0
      %v3206 = vand.u32 %v2996, 4294901760
      %v3207 = vsub.f32 %v2996, %v3206
      %v3208 = vand.u32 %v3207, 4294901760
      %v3209 = vsub.f32 %v3207, %v3208
      %v3210 = vand.u32 %v3209, 4294901760
      %3211 = vmatpush.msra.mxu0 %v3210
      %v3212 = vand.u32 %v2995, 4294901760
      %v3213 = vsub.f32 %v2995, %v3212
      %v3214 = vand.u32 %v3213, 4294901760
      %v3215 = vsub.f32 %v3213, %v3214
      %v3216 = vand.u32 %v3215, 4294901760
      %3217 = vmatpush.msra.mxu0 %v3216
      %v3218 = vand.u32 %v2994, 4294901760
      %v3219 = vsub.f32 %v2994, %v3218
      %v3220 = vand.u32 %v3219, 4294901760
      %v3221 = vsub.f32 %v3219, %v3220
      %v3222 = vand.u32 %v3221, 4294901760
      %3223 = vmatpush.msra.mxu0 %v3222
      %v3224 = vand.u32 %v2993, 4294901760
      %v3225 = vsub.f32 %v2993, %v3224
      %v3226 = vand.u32 %v3225, 4294901760
      %v3227 = vsub.f32 %v3225, %v3226
      %v3228 = vand.u32 %v3227, 4294901760
      %3229 = vmatpush.msra.mxu0 %v3228
      %v3230 = vand.u32 %v2992, 4294901760
      %v3231 = vsub.f32 %v2992, %v3230
      %v3232 = vand.u32 %v3231, 4294901760
      %v3233 = vsub.f32 %v3231, %v3232
      %v3234 = vand.u32 %v3233, 4294901760
      %3235 = vmatpush.msra.mxu0 %v3234
      %v3236 = vand.u32 %v2991, 4294901760
      %v3237 = vsub.f32 %v2991, %v3236
      %v3238 = vand.u32 %v3237, 4294901760
      %v3239 = vsub.f32 %v3237, %v3238
      %v3240 = vand.u32 %v3239, 4294901760
      %3241 = vmatpush.msra.mxu0 %v3240
      %v3242 = vand.u32 %v2990, 4294901760
      %v3243 = vsub.f32 %v2990, %v3242
      %v3244 = vand.u32 %v3243, 4294901760
      %v3245 = vsub.f32 %v3243, %v3244
      %v3246 = vand.u32 %v3245, 4294901760
      %3247 = vmatpush.msra.mxu0 %v3246
      %v3248 = vand.u32 %v2989, 4294901760
      %v3249 = vsub.f32 %v2989, %v3248
      %v3250 = vand.u32 %v3249, 4294901760
      %v3251 = vsub.f32 %v3249, %v3250
      %v3252 = vand.u32 %v3251, 4294901760
      %3253 = vmatpush.msra.mxu0 %v3252
      %v3254 = vand.u32 %v2988, 4294901760
      %v3255 = vsub.f32 %v2988, %v3254
      %v3256 = vand.u32 %v3255, 4294901760
      %v3257 = vsub.f32 %v3255, %v3256
      %v3258 = vand.u32 %v3257, 4294901760
      %3259 = vmatpush.msra.mxu0 %v3258
      %v3260 = vand.u32 %v2987, 4294901760
      %v3261 = vsub.f32 %v2987, %v3260
      %v3262 = vand.u32 %v3261, 4294901760
      %v3263 = vsub.f32 %v3261, %v3262
      %v3264 = vand.u32 %v3263, 4294901760
      %3265 = vmatpush.msra.mxu0 %v3264
      %v3266 = vand.u32 %v2986, 4294901760
      %v3267 = vsub.f32 %v2986, %v3266
      %v3268 = vand.u32 %v3267, 4294901760
      %v3269 = vsub.f32 %v3267, %v3268
      %v3270 = vand.u32 %v3269, 4294901760
      %3271 = vmatpush.msra.mxu0 %v3270
      %v3272 = vand.u32 %v2985, 4294901760
      %v3273 = vsub.f32 %v2985, %v3272
      %v3274 = vand.u32 %v3273, 4294901760
      %v3275 = vsub.f32 %v3273, %v3274
      %v3276 = vand.u32 %v3275, 4294901760
      %3277 = vmatpush.msra.mxu0 %v3276
      %v3278 = vand.u32 %v2998, 4294901760
      %3279 = vmatmul.f32.gmra.mxu0 %v3278
      %v3280 = vpop.f32.mrf.mxu0
      %v3281 = vadd.f32 %v3080, %v3280
      %v3282 = vand.u32 %v3001, 4294901760
      %3283 = vmatmul.f32.gmra.mxu0 %v3282
      %v3284 = vpop.f32.mrf.mxu0
      %v3285 = vadd.f32 %v3088, %v3284
      %v3286 = vand.u32 %v3004, 4294901760
      %3287 = vmatmul.f32.gmra.mxu0 %v3286
      %v3288 = vpop.f32.mrf.mxu0
      %v3289 = vadd.f32 %v3096, %v3288
      %v3290 = vand.u32 %v3007, 4294901760
      %3291 = vmatmul.f32.gmra.mxu0 %v3290
      %v3292 = vpop.f32.mrf.mxu0
      %v3293 = vadd.f32 %v3104, %v3292
      %v3294 = vand.u32 %v3010, 4294901760
      %3295 = vmatmul.f32.gmra.mxu0 %v3294
      %v3296 = vpop.f32.mrf.mxu0
      %v3297 = vadd.f32 %v3112, %v3296
      %v3298 = vand.u32 %v3013, 4294901760
      %3299 = vmatmul.f32.gmra.mxu0 %v3298
      %v3300 = vpop.f32.mrf.mxu0
      %v3301 = vadd.f32 %v3120, %v3300
      %v3302 = vand.u32 %v3016, 4294901760
      %3303 = vmatmul.f32.gmra.mxu0 %v3302
      %v3304 = vpop.f32.mrf.mxu0
      %v3305 = vadd.f32 %v3128, %v3304
      %v3306 = vand.u32 %v3019, 4294901760
      %3307 = vmatmul.f32.gmra.mxu0 %v3306
      %v3308 = vpop.f32.mrf.mxu0
      %v3309 = vadd.f32 %v3136, %v3308
      %v3310 = vand.u32 %v3022, 4294901760
      %3311 = vmatmul.f32.gmra.mxu0 %v3310
      %v3312 = vpop.f32.mrf.mxu0
      %v3313 = vadd.f32 %v3144, %v3312
      %v3314 = vand.u32 %v3025, 4294901760
      %3315 = vmatmul.f32.gmra.mxu0 %v3314
      %v3316 = vpop.f32.mrf.mxu0
      %v3317 = vadd.f32 %v3152, %v3316
      %v3318 = vand.u32 %v3028, 4294901760
      %3319 = vmatmul.f32.gmra.mxu0 %v3318
      %v3320 = vpop.f32.mrf.mxu0
      %v3321 = vadd.f32 %v3160, %v3320
      %v3322 = vand.u32 %v3031, 4294901760
      %3323 = vmatmul.f32.gmra.mxu0 %v3322
      %v3324 = vpop.f32.mrf.mxu0
      %v3325 = vadd.f32 %v3168, %v3324
      %v3326 = vand.u32 %v3034, 4294901760
      %3327 = vmatmul.f32.gmra.mxu0 %v3326
      %v3328 = vpop.f32.mrf.mxu0
      %v3329 = vadd.f32 %v3176, %v3328
      %v3330 = vand.u32 %v3037, 4294901760
      %3331 = vmatmul.f32.gmra.mxu0 %v3330
      %v3332 = vpop.f32.mrf.mxu0
      %v3333 = vadd.f32 %v3184, %v3332
      %v3334 = vand.u32 %v3040, 4294901760
      %3335 = vmatmul.f32.gmra.mxu0 %v3334
      %v3336 = vpop.f32.mrf.mxu0
      %v3337 = vadd.f32 %v3192, %v3336
      %v3338 = vand.u32 %v3043, 4294901760
      %3339 = vmatmul.f32.gmra.mxu0 %v3338
      %v3340 = vpop.f32.mrf.mxu0
      %v3341 = vadd.f32 %v3200, %v3340
      %3342 = vdwg.mxu0
      %3343 = vmatpush.msra.mxu0 0.0
      %3344 = vmatpush.msra.mxu0 0.0
      %3345 = vmatpush.msra.mxu0 0.0
      %3346 = vmatpush.msra.mxu0 0.0
      %v3347 = vand.u32 %v2996, 4294901760
      %v3348 = vsub.f32 %v2996, %v3347
      %3349 = vmatpush.msra.mxu0 %v3348
      %v3350 = vand.u32 %v2995, 4294901760
      %v3351 = vsub.f32 %v2995, %v3350
      %3352 = vmatpush.msra.mxu0 %v3351
      %v3353 = vand.u32 %v2994, 4294901760
      %v3354 = vsub.f32 %v2994, %v3353
      %3355 = vmatpush.msra.mxu0 %v3354
      %v3356 = vand.u32 %v2993, 4294901760
      %v3357 = vsub.f32 %v2993, %v3356
      %3358 = vmatpush.msra.mxu0 %v3357
      %v3359 = vand.u32 %v2992, 4294901760
      %v3360 = vsub.f32 %v2992, %v3359
      %3361 = vmatpush.msra.mxu0 %v3360
      %v3362 = vand.u32 %v2991, 4294901760
      %v3363 = vsub.f32 %v2991, %v3362
      %3364 = vmatpush.msra.mxu0 %v3363
      %v3365 = vand.u32 %v2990, 4294901760
      %v3366 = vsub.f32 %v2990, %v3365
      %3367 = vmatpush.msra.mxu0 %v3366
      %v3368 = vand.u32 %v2989, 4294901760
      %v3369 = vsub.f32 %v2989, %v3368
      %3370 = vmatpush.msra.mxu0 %v3369
      %v3371 = vand.u32 %v2988, 4294901760
      %v3372 = vsub.f32 %v2988, %v3371
      %3373 = vmatpush.msra.mxu0 %v3372
      %v3374 = vand.u32 %v2987, 4294901760
      %v3375 = vsub.f32 %v2987, %v3374
      %3376 = vmatpush.msra.mxu0 %v3375
      %v3377 = vand.u32 %v2986, 4294901760
      %v3378 = vsub.f32 %v2986, %v3377
      %3379 = vmatpush.msra.mxu0 %v3378
      %v3380 = vand.u32 %v2985, 4294901760
      %v3381 = vsub.f32 %v2985, %v3380
      %3382 = vmatpush.msra.mxu0 %v3381
      %v3383 = vand.u32 %v2998, 4294901760
      %v3384 = vsub.f32 %v2998, %v3383
      %3385 = vmatmul.f32.gmra.mxu0 %v3384
      %v3386 = vpop.f32.mrf.mxu0
      %v3387 = vadd.f32 %v3281, %v3386
      %v3388 = vand.u32 %v3001, 4294901760
      %v3389 = vsub.f32 %v3001, %v3388
      %3390 = vmatmul.f32.gmra.mxu0 %v3389
      %v3391 = vpop.f32.mrf.mxu0
      %v3392 = vadd.f32 %v3285, %v3391
      %v3393 = vand.u32 %v3004, 4294901760
      %v3394 = vsub.f32 %v3004, %v3393
      %3395 = vmatmul.f32.gmra.mxu0 %v3394
      %v3396 = vpop.f32.mrf.mxu0
      %v3397 = vadd.f32 %v3289, %v3396
      %v3398 = vand.u32 %v3007, 4294901760
      %v3399 = vsub.f32 %v3007, %v3398
      %3400 = vmatmul.f32.gmra.mxu0 %v3399
      %v3401 = vpop.f32.mrf.mxu0
      %v3402 = vadd.f32 %v3293, %v3401
      %v3403 = vand.u32 %v3010, 4294901760
      %v3404 = vsub.f32 %v3010, %v3403
      %3405 = vmatmul.f32.gmra.mxu0 %v3404
      %v3406 = vpop.f32.mrf.mxu0
      %v3407 = vadd.f32 %v3297, %v3406
      %v3408 = vand.u32 %v3013, 4294901760
      %v3409 = vsub.f32 %v3013, %v3408
      %3410 = vmatmul.f32.gmra.mxu0 %v3409
      %v3411 = vpop.f32.mrf.mxu0
      %v3412 = vadd.f32 %v3301, %v3411
      %v3413 = vand.u32 %v3016, 4294901760
      %v3414 = vsub.f32 %v3016, %v3413
      %3415 = vmatmul.f32.gmra.mxu0 %v3414
      %v3416 = vpop.f32.mrf.mxu0
      %v3417 = vadd.f32 %v3305, %v3416
      %v3418 = vand.u32 %v3019, 4294901760
      %v3419 = vsub.f32 %v3019, %v3418
      %3420 = vmatmul.f32.gmra.mxu0 %v3419
      %v3421 = vpop.f32.mrf.mxu0
      %v3422 = vadd.f32 %v3309, %v3421
      %v3423 = vand.u32 %v3022, 4294901760
      %v3424 = vsub.f32 %v3022, %v3423
      %3425 = vmatmul.f32.gmra.mxu0 %v3424
      %v3426 = vpop.f32.mrf.mxu0
      %v3427 = vadd.f32 %v3313, %v3426
      %v3428 = vand.u32 %v3025, 4294901760
      %v3429 = vsub.f32 %v3025, %v3428
      %3430 = vmatmul.f32.gmra.mxu0 %v3429
      %v3431 = vpop.f32.mrf.mxu0
      %v3432 = vadd.f32 %v3317, %v3431
      %v3433 = vand.u32 %v3028, 4294901760
      %v3434 = vsub.f32 %v3028, %v3433
      %3435 = vmatmul.f32.gmra.mxu0 %v3434
      %v3436 = vpop.f32.mrf.mxu0
      %v3437 = vadd.f32 %v3321, %v3436
      %v3438 = vand.u32 %v3031, 4294901760
      %v3439 = vsub.f32 %v3031, %v3438
      %3440 = vmatmul.f32.gmra.mxu0 %v3439
      %v3441 = vpop.f32.mrf.mxu0
      %v3442 = vadd.f32 %v3325, %v3441
      %v3443 = vand.u32 %v3034, 4294901760
      %v3444 = vsub.f32 %v3034, %v3443
      %3445 = vmatmul.f32.gmra.mxu0 %v3444
      %v3446 = vpop.f32.mrf.mxu0
      %v3447 = vadd.f32 %v3329, %v3446
      %v3448 = vand.u32 %v3037, 4294901760
      %v3449 = vsub.f32 %v3037, %v3448
      %3450 = vmatmul.f32.gmra.mxu0 %v3449
      %v3451 = vpop.f32.mrf.mxu0
      %v3452 = vadd.f32 %v3333, %v3451
      %v3453 = vand.u32 %v3040, 4294901760
      %v3454 = vsub.f32 %v3040, %v3453
      %3455 = vmatmul.f32.gmra.mxu0 %v3454
      %v3456 = vpop.f32.mrf.mxu0
      %v3457 = vadd.f32 %v3337, %v3456
      %v3458 = vand.u32 %v3043, 4294901760
      %v3459 = vsub.f32 %v3043, %v3458
      %3460 = vmatmul.f32.gmra.mxu0 %v3459
      %v3461 = vpop.f32.mrf.mxu0
      %v3462 = vadd.f32 %v3341, %v3461
      %3463 = vdwg.mxu0
      %3464 = vmatpush.msra.mxu0 0.0
      %3465 = vmatpush.msra.mxu0 0.0
      %3466 = vmatpush.msra.mxu0 0.0
      %3467 = vmatpush.msra.mxu0 0.0
      %v3468 = vand.u32 %v2996, 4294901760
      %3469 = vmatpush.msra.mxu0 %v3468
      %v3470 = vand.u32 %v2995, 4294901760
      %3471 = vmatpush.msra.mxu0 %v3470
      %v3472 = vand.u32 %v2994, 4294901760
      %3473 = vmatpush.msra.mxu0 %v3472
      %v3474 = vand.u32 %v2993, 4294901760
      %3475 = vmatpush.msra.mxu0 %v3474
      %v3476 = vand.u32 %v2992, 4294901760
      %3477 = vmatpush.msra.mxu0 %v3476
      %v3478 = vand.u32 %v2991, 4294901760
      %3479 = vmatpush.msra.mxu0 %v3478
      %v3480 = vand.u32 %v2990, 4294901760
      %3481 = vmatpush.msra.mxu0 %v3480
      %v3482 = vand.u32 %v2989, 4294901760
      %3483 = vmatpush.msra.mxu0 %v3482
      %v3484 = vand.u32 %v2988, 4294901760
      %3485 = vmatpush.msra.mxu0 %v3484
      %v3486 = vand.u32 %v2987, 4294901760
      %3487 = vmatpush.msra.mxu0 %v3486
      %v3488 = vand.u32 %v2986, 4294901760
      %3489 = vmatpush.msra.mxu0 %v3488
      %v3490 = vand.u32 %v2985, 4294901760
      %3491 = vmatpush.msra.mxu0 %v3490
      %v3492 = vand.u32 %v2998, 4294901760
      %v3493 = vsub.f32 %v2998, %v3492
      %v3494 = vand.u32 %v3493, 4294901760
      %3495 = vmatmul.f32.gmra.mxu0 %v3494
      %v3496 = vpop.f32.mrf.mxu0
      %v3497 = vadd.f32 %v3387, %v3496
      %v3498 = vand.u32 %v3001, 4294901760
      %v3499 = vsub.f32 %v3001, %v3498
      %v3500 = vand.u32 %v3499, 4294901760
      %3501 = vmatmul.f32.gmra.mxu0 %v3500
      %v3502 = vpop.f32.mrf.mxu0
      %v3503 = vadd.f32 %v3392, %v3502
      %v3504 = vand.u32 %v3004, 4294901760
      %v3505 = vsub.f32 %v3004, %v3504
      %v3506 = vand.u32 %v3505, 4294901760
      %3507 = vmatmul.f32.gmra.mxu0 %v3506
      %v3508 = vpop.f32.mrf.mxu0
      %v3509 = vadd.f32 %v3397, %v3508
      %v3510 = vand.u32 %v3007, 4294901760
      %v3511 = vsub.f32 %v3007, %v3510
      %v3512 = vand.u32 %v3511, 4294901760
      %3513 = vmatmul.f32.gmra.mxu0 %v3512
      %v3514 = vpop.f32.mrf.mxu0
      %v3515 = vadd.f32 %v3402, %v3514
      %v3516 = vand.u32 %v3010, 4294901760
      %v3517 = vsub.f32 %v3010, %v3516
      %v3518 = vand.u32 %v3517, 4294901760
      %3519 = vmatmul.f32.gmra.mxu0 %v3518
      %v3520 = vpop.f32.mrf.mxu0
      %v3521 = vadd.f32 %v3407, %v3520
      %v3522 = vand.u32 %v3013, 4294901760
      %v3523 = vsub.f32 %v3013, %v3522
      %v3524 = vand.u32 %v3523, 4294901760
      %3525 = vmatmul.f32.gmra.mxu0 %v3524
      %v3526 = vpop.f32.mrf.mxu0
      %v3527 = vadd.f32 %v3412, %v3526
      %v3528 = vand.u32 %v3016, 4294901760
      %v3529 = vsub.f32 %v3016, %v3528
      %v3530 = vand.u32 %v3529, 4294901760
      %3531 = vmatmul.f32.gmra.mxu0 %v3530
      %v3532 = vpop.f32.mrf.mxu0
      %v3533 = vadd.f32 %v3417, %v3532
      %v3534 = vand.u32 %v3019, 4294901760
      %v3535 = vsub.f32 %v3019, %v3534
      %v3536 = vand.u32 %v3535, 4294901760
      %3537 = vmatmul.f32.gmra.mxu0 %v3536
      %v3538 = vpop.f32.mrf.mxu0
      %v3539 = vadd.f32 %v3422, %v3538
      %v3540 = vand.u32 %v3022, 4294901760
      %v3541 = vsub.f32 %v3022, %v3540
      %v3542 = vand.u32 %v3541, 4294901760
      %3543 = vmatmul.f32.gmra.mxu0 %v3542
      %v3544 = vpop.f32.mrf.mxu0
      %v3545 = vadd.f32 %v3427, %v3544
      %v3546 = vand.u32 %v3025, 4294901760
      %v3547 = vsub.f32 %v3025, %v3546
      %v3548 = vand.u32 %v3547, 4294901760
      %3549 = vmatmul.f32.gmra.mxu0 %v3548
      %v3550 = vpop.f32.mrf.mxu0
      %v3551 = vadd.f32 %v3432, %v3550
      %v3552 = vand.u32 %v3028, 4294901760
      %v3553 = vsub.f32 %v3028, %v3552
      %v3554 = vand.u32 %v3553, 4294901760
      %3555 = vmatmul.f32.gmra.mxu0 %v3554
      %v3556 = vpop.f32.mrf.mxu0
      %v3557 = vadd.f32 %v3437, %v3556
      %v3558 = vand.u32 %v3031, 4294901760
      %v3559 = vsub.f32 %v3031, %v3558
      %v3560 = vand.u32 %v3559, 4294901760
      %3561 = vmatmul.f32.gmra.mxu0 %v3560
      %v3562 = vpop.f32.mrf.mxu0
      %v3563 = vadd.f32 %v3442, %v3562
      %v3564 = vand.u32 %v3034, 4294901760
      %v3565 = vsub.f32 %v3034, %v3564
      %v3566 = vand.u32 %v3565, 4294901760
      %3567 = vmatmul.f32.gmra.mxu0 %v3566
      %v3568 = vpop.f32.mrf.mxu0
      %v3569 = vadd.f32 %v3447, %v3568
      %v3570 = vand.u32 %v3037, 4294901760
      %v3571 = vsub.f32 %v3037, %v3570
      %v3572 = vand.u32 %v3571, 4294901760
      %3573 = vmatmul.f32.gmra.mxu0 %v3572
      %v3574 = vpop.f32.mrf.mxu0
      %v3575 = vadd.f32 %v3452, %v3574
      %v3576 = vand.u32 %v3040, 4294901760
      %v3577 = vsub.f32 %v3040, %v3576
      %v3578 = vand.u32 %v3577, 4294901760
      %3579 = vmatmul.f32.gmra.mxu0 %v3578
      %v3580 = vpop.f32.mrf.mxu0
      %v3581 = vadd.f32 %v3457, %v3580
      %v3582 = vand.u32 %v3043, 4294901760
      %v3583 = vsub.f32 %v3043, %v3582
      %v3584 = vand.u32 %v3583, 4294901760
      %3585 = vmatmul.f32.gmra.mxu0 %v3584
      %v3586 = vpop.f32.mrf.mxu0
      %v3587 = vadd.f32 %v3462, %v3586
      %3588 = vdwg.mxu0
      %3589 = vmatpush.msra.mxu0 0.0
      %3590 = vmatpush.msra.mxu0 0.0
      %3591 = vmatpush.msra.mxu0 0.0
      %3592 = vmatpush.msra.mxu0 0.0
      %v3593 = vand.u32 %v2996, 4294901760
      %v3594 = vsub.f32 %v2996, %v3593
      %v3595 = vand.u32 %v3594, 4294901760
      %3596 = vmatpush.msra.mxu0 %v3595
      %v3597 = vand.u32 %v2995, 4294901760
      %v3598 = vsub.f32 %v2995, %v3597
      %v3599 = vand.u32 %v3598, 4294901760
      %3600 = vmatpush.msra.mxu0 %v3599
      %v3601 = vand.u32 %v2994, 4294901760
      %v3602 = vsub.f32 %v2994, %v3601
      %v3603 = vand.u32 %v3602, 4294901760
      %3604 = vmatpush.msra.mxu0 %v3603
      %v3605 = vand.u32 %v2993, 4294901760
      %v3606 = vsub.f32 %v2993, %v3605
      %v3607 = vand.u32 %v3606, 4294901760
      %3608 = vmatpush.msra.mxu0 %v3607
      %v3609 = vand.u32 %v2992, 4294901760
      %v3610 = vsub.f32 %v2992, %v3609
      %v3611 = vand.u32 %v3610, 4294901760
      %3612 = vmatpush.msra.mxu0 %v3611
      %v3613 = vand.u32 %v2991, 4294901760
      %v3614 = vsub.f32 %v2991, %v3613
      %v3615 = vand.u32 %v3614, 4294901760
      %3616 = vmatpush.msra.mxu0 %v3615
      %v3617 = vand.u32 %v2990, 4294901760
      %v3618 = vsub.f32 %v2990, %v3617
      %v3619 = vand.u32 %v3618, 4294901760
      %3620 = vmatpush.msra.mxu0 %v3619
      %v3621 = vand.u32 %v2989, 4294901760
      %v3622 = vsub.f32 %v2989, %v3621
      %v3623 = vand.u32 %v3622, 4294901760
      %3624 = vmatpush.msra.mxu0 %v3623
      %v3625 = vand.u32 %v2988, 4294901760
      %v3626 = vsub.f32 %v2988, %v3625
      %v3627 = vand.u32 %v3626, 4294901760
      %3628 = vmatpush.msra.mxu0 %v3627
      %v3629 = vand.u32 %v2987, 4294901760
      %v3630 = vsub.f32 %v2987, %v3629
      %v3631 = vand.u32 %v3630, 4294901760
      %3632 = vmatpush.msra.mxu0 %v3631
      %v3633 = vand.u32 %v2986, 4294901760
      %v3634 = vsub.f32 %v2986, %v3633
      %v3635 = vand.u32 %v3634, 4294901760
      %3636 = vmatpush.msra.mxu0 %v3635
      %v3637 = vand.u32 %v2985, 4294901760
      %v3638 = vsub.f32 %v2985, %v3637
      %v3639 = vand.u32 %v3638, 4294901760
      %3640 = vmatpush.msra.mxu0 %v3639
      %v3641 = vand.u32 %v2998, 4294901760
      %3642 = vmatmul.f32.gmra.mxu0 %v3641
      %v3643 = vpop.f32.mrf.mxu0
      %v3644 = vadd.f32 %v3497, %v3643
      %v3645 = vand.u32 %v3001, 4294901760
      %3646 = vmatmul.f32.gmra.mxu0 %v3645
      %v3647 = vpop.f32.mrf.mxu0
      %v3648 = vadd.f32 %v3503, %v3647
      %v3649 = vand.u32 %v3004, 4294901760
      %3650 = vmatmul.f32.gmra.mxu0 %v3649
      %v3651 = vpop.f32.mrf.mxu0
      %v3652 = vadd.f32 %v3509, %v3651
      %v3653 = vand.u32 %v3007, 4294901760
      %3654 = vmatmul.f32.gmra.mxu0 %v3653
      %v3655 = vpop.f32.mrf.mxu0
      %v3656 = vadd.f32 %v3515, %v3655
      %v3657 = vand.u32 %v3010, 4294901760
      %3658 = vmatmul.f32.gmra.mxu0 %v3657
      %v3659 = vpop.f32.mrf.mxu0
      %v3660 = vadd.f32 %v3521, %v3659
      %v3661 = vand.u32 %v3013, 4294901760
      %3662 = vmatmul.f32.gmra.mxu0 %v3661
      %v3663 = vpop.f32.mrf.mxu0
      %v3664 = vadd.f32 %v3527, %v3663
      %v3665 = vand.u32 %v3016, 4294901760
      %3666 = vmatmul.f32.gmra.mxu0 %v3665
      %v3667 = vpop.f32.mrf.mxu0
      %v3668 = vadd.f32 %v3533, %v3667
      %v3669 = vand.u32 %v3019, 4294901760
      %3670 = vmatmul.f32.gmra.mxu0 %v3669
      %v3671 = vpop.f32.mrf.mxu0
      %v3672 = vadd.f32 %v3539, %v3671
      %v3673 = vand.u32 %v3022, 4294901760
      %3674 = vmatmul.f32.gmra.mxu0 %v3673
      %v3675 = vpop.f32.mrf.mxu0
      %v3676 = vadd.f32 %v3545, %v3675
      %v3677 = vand.u32 %v3025, 4294901760
      %3678 = vmatmul.f32.gmra.mxu0 %v3677
      %v3679 = vpop.f32.mrf.mxu0
      %v3680 = vadd.f32 %v3551, %v3679
      %v3681 = vand.u32 %v3028, 4294901760
      %3682 = vmatmul.f32.gmra.mxu0 %v3681
      %v3683 = vpop.f32.mrf.mxu0
      %v3684 = vadd.f32 %v3557, %v3683
      %v3685 = vand.u32 %v3031, 4294901760
      %3686 = vmatmul.f32.gmra.mxu0 %v3685
      %v3687 = vpop.f32.mrf.mxu0
      %v3688 = vadd.f32 %v3563, %v3687
      %v3689 = vand.u32 %v3034, 4294901760
      %3690 = vmatmul.f32.gmra.mxu0 %v3689
      %v3691 = vpop.f32.mrf.mxu0
      %v3692 = vadd.f32 %v3569, %v3691
      %v3693 = vand.u32 %v3037, 4294901760
      %3694 = vmatmul.f32.gmra.mxu0 %v3693
      %v3695 = vpop.f32.mrf.mxu0
      %v3696 = vadd.f32 %v3575, %v3695
      %v3697 = vand.u32 %v3040, 4294901760
      %3698 = vmatmul.f32.gmra.mxu0 %v3697
      %v3699 = vpop.f32.mrf.mxu0
      %v3700 = vadd.f32 %v3581, %v3699
      %v3701 = vand.u32 %v3043, 4294901760
      %3702 = vmatmul.f32.gmra.mxu0 %v3701
      %v3703 = vpop.f32.mrf.mxu0
      %v3704 = vadd.f32 %v3587, %v3703
      %3705 = vdwg.mxu0
      %3706 = vmatpush.msra.mxu0 0.0
      %3707 = vmatpush.msra.mxu0 0.0
      %3708 = vmatpush.msra.mxu0 0.0
      %3709 = vmatpush.msra.mxu0 0.0
      %v3710 = vand.u32 %v2996, 4294901760
      %3711 = vmatpush.msra.mxu0 %v3710
      %v3712 = vand.u32 %v2995, 4294901760
      %3713 = vmatpush.msra.mxu0 %v3712
      %v3714 = vand.u32 %v2994, 4294901760
      %3715 = vmatpush.msra.mxu0 %v3714
      %v3716 = vand.u32 %v2993, 4294901760
      %3717 = vmatpush.msra.mxu0 %v3716
      %v3718 = vand.u32 %v2992, 4294901760
      %3719 = vmatpush.msra.mxu0 %v3718
      %v3720 = vand.u32 %v2991, 4294901760
      %3721 = vmatpush.msra.mxu0 %v3720
      %v3722 = vand.u32 %v2990, 4294901760
      %3723 = vmatpush.msra.mxu0 %v3722
      %v3724 = vand.u32 %v2989, 4294901760
      %3725 = vmatpush.msra.mxu0 %v3724
      %v3726 = vand.u32 %v2988, 4294901760
      %3727 = vmatpush.msra.mxu0 %v3726
      %v3728 = vand.u32 %v2987, 4294901760
      %3729 = vmatpush.msra.mxu0 %v3728
      %v3730 = vand.u32 %v2986, 4294901760
      %3731 = vmatpush.msra.mxu0 %v3730
      %v3732 = vand.u32 %v2985, 4294901760
      %3733 = vmatpush.msra.mxu0 %v3732
      %v3734 = vand.u32 %v2998, 4294901760
      %3735 = vmatmul.f32.gmra.mxu0 %v3734
      %v3736 = vpop.f32.mrf.mxu0
      %v3737 = vadd.f32 %v3644, %v3736
      %v3738 = vand.u32 %v3001, 4294901760
      %3739 = vmatmul.f32.gmra.mxu0 %v3738
      %v3740 = vpop.f32.mrf.mxu0
      %v3741 = vadd.f32 %v3648, %v3740
      %v3742 = vand.u32 %v3004, 4294901760
      %3743 = vmatmul.f32.gmra.mxu0 %v3742
      %v3744 = vpop.f32.mrf.mxu0
      %v3745 = vadd.f32 %v3652, %v3744
      %v3746 = vand.u32 %v3007, 4294901760
      %3747 = vmatmul.f32.gmra.mxu0 %v3746
      %v3748 = vpop.f32.mrf.mxu0
      %v3749 = vadd.f32 %v3656, %v3748
      %v3750 = vand.u32 %v3010, 4294901760
      %3751 = vmatmul.f32.gmra.mxu0 %v3750
      %v3752 = vpop.f32.mrf.mxu0
      %v3753 = vadd.f32 %v3660, %v3752
      %v3754 = vand.u32 %v3013, 4294901760
      %3755 = vmatmul.f32.gmra.mxu0 %v3754
      %v3756 = vpop.f32.mrf.mxu0
      %v3757 = vadd.f32 %v3664, %v3756
      %v3758 = vand.u32 %v3016, 4294901760
      %3759 = vmatmul.f32.gmra.mxu0 %v3758
      %v3760 = vpop.f32.mrf.mxu0
      %v3761 = vadd.f32 %v3668, %v3760
      %v3762 = vand.u32 %v3019, 4294901760
      %3763 = vmatmul.f32.gmra.mxu0 %v3762
      %v3764 = vpop.f32.mrf.mxu0
      %v3765 = vadd.f32 %v3672, %v3764
      %v3766 = vand.u32 %v3022, 4294901760
      %3767 = vmatmul.f32.gmra.mxu0 %v3766
      %v3768 = vpop.f32.mrf.mxu0
      %v3769 = vadd.f32 %v3676, %v3768
      %v3770 = vand.u32 %v3025, 4294901760
      %3771 = vmatmul.f32.gmra.mxu0 %v3770
      %v3772 = vpop.f32.mrf.mxu0
      %v3773 = vadd.f32 %v3680, %v3772
      %v3774 = vand.u32 %v3028, 4294901760
      %3775 = vmatmul.f32.gmra.mxu0 %v3774
      %v3776 = vpop.f32.mrf.mxu0
      %v3777 = vadd.f32 %v3684, %v3776
      %v3778 = vand.u32 %v3031, 4294901760
      %3779 = vmatmul.f32.gmra.mxu0 %v3778
      %v3780 = vpop.f32.mrf.mxu0
      %v3781 = vadd.f32 %v3688, %v3780
      %v3782 = vand.u32 %v3034, 4294901760
      %3783 = vmatmul.f32.gmra.mxu0 %v3782
      %v3784 = vpop.f32.mrf.mxu0
      %v3785 = vadd.f32 %v3692, %v3784
      %v3786 = vand.u32 %v3037, 4294901760
      %3787 = vmatmul.f32.gmra.mxu0 %v3786
      %v3788 = vpop.f32.mrf.mxu0
      %v3789 = vadd.f32 %v3696, %v3788
      %v3790 = vand.u32 %v3040, 4294901760
      %3791 = vmatmul.f32.gmra.mxu0 %v3790
      %v3792 = vpop.f32.mrf.mxu0
      %v3793 = vadd.f32 %v3700, %v3792
      %v3794 = vand.u32 %v3043, 4294901760
      %3795 = vmatmul.f32.gmra.mxu0 %v3794
      %v3796 = vpop.f32.mrf.mxu0
      %v3797 = vadd.f32 %v3704, %v3796
      %3798 = vdwg.mxu0
      %vm3799 = vcmask 261120
      %3800 = vst.msk [vmem:[%s253] sm:$0xff] %vm3799, %v3737
      %3801 = vst.msk [vmem:[%s253 + $0x8] sm:$0xff] %vm3799, %v3741
      %3802 = vst.msk [vmem:[%s253 + $0x10] sm:$0xff] %vm3799, %v3745
      %3803 = vst.msk [vmem:[%s253 + $0x18] sm:$0xff] %vm3799, %v3749
      %3804 = vst.msk [vmem:[%s253 + $0x20] sm:$0xff] %vm3799, %v3753
      %3805 = vst.msk [vmem:[%s253 + $0x28] sm:$0xff] %vm3799, %v3757
      %3806 = vst.msk [vmem:[%s253 + $0x30] sm:$0xff] %vm3799, %v3761
      %3807 = vst.msk [vmem:[%s253 + $0x38] sm:$0xff] %vm3799, %v3765
      %3808 = vst.msk [vmem:[%s253 + $0x40] sm:$0xff] %vm3799, %v3769
      %3809 = vst.msk [vmem:[%s253 + $0x48] sm:$0xff] %vm3799, %v3773
      %3810 = vst.msk [vmem:[%s253 + $0x50] sm:$0xff] %vm3799, %v3777
      %3811 = vst.msk [vmem:[%s253 + $0x58] sm:$0xff] %vm3799, %v3781
      %3812 = vst.msk [vmem:[%s253 + $0x60] sm:$0xff] %vm3799, %v3785
      %3813 = vst.msk [vmem:[%s253 + $0x68] sm:$0xff] %vm3799, %v3789
      %3814 = vst.msk [vmem:[%s253 + $0x70] sm:$0xff] %vm3799, %v3793
      %3815 = vst.msk [vmem:[%s253 + $0x78] sm:$0xff] %vm3799, %v3797
      %s3816 = smul.u32 16, %s17
      %p3817 = scmp.lt.s32.totalorder %s3816, 31
      %s3818 = scalar_select %p3817, %s3816, 31
      %s3819 = smul.addr %s3818, 8
      %s3820 = scalar_lea.vmem %s6, %s3819
      // Predicated region
      $region45: #{tpu_custom_call.1} parent=43 // pred_check
        %p3821 = pneg %p166
      $region46: #{tpu_custom_call.1} parent=43 // pred_check_branch
        %3823 = sbr.rel (%p3821) target = $region48
      $region47: #{tpu_custom_call.1} parent=43 // pred_region
        %s3824 = smul.u32 16, %s17
      $region48: #{tpu_custom_call.1} parent=43 // pred_fallthru
        _
    $region44: #{tpu_custom_call.1} parent=5 // pred_fallthru
      _
    %p3825 = scmp.le.s32.totalorder 2, %s12
    // Predicated region
    $region49: #{tpu_custom_call.1} parent=5 // pred_check
      %p3826 = pneg %p3825
    $region50: #{tpu_custom_call.1} parent=5 // pred_check_branch
      %3828 = sbr.rel (%p3826) target = $region52
    $region51: #{tpu_custom_call.1} parent=5 // pred_region
      %s3829 = ssub.s32 %s12, 2
      // Predicated region
      $region53: #{tpu_custom_call.1} parent=51 // pred_check
        %p3830 = pneg %p172
      $region54: #{tpu_custom_call.1} parent=51 // pred_check_branch
        %3832 = sbr.rel (%p3830) target = $region56
      $region55: #{tpu_custom_call.1} parent=51 // pred_region
        %s3833 = smul.u32 16, %s18
        %p3834 = scmp.lt.s32.totalorder %s3833, 31
        %s3835 = scalar_select %p3834, %s3833, 31
        %s3836 = smul.addr %s3835, 8
        %s3837 = scalar_lea.vmem %s6, %s3836
      $region56: #{tpu_custom_call.1} parent=51 // pred_fallthru
        _
    $region52: #{tpu_custom_call.1} parent=5 // pred_fallthru
      _
  $region6: #{tpu_custom_call.1} parent=0 // loop_footer
    %s16 = sadd.s32 1, %s12
  $region7: #{tpu_custom_call.1} parent=0 // loop_footer_branch
    %11 = sbr.rel target = $region3
  $region8: #{tpu_custom_call.1} parent=0 // loop_exit
    _

</llo_original>
